<compile_context>
chip_gen: v7x
topology: tpu7x:2x2x1
jax: 0.10.0
libtpu: 0.0.40
codegen_flags: <defaults>
</compile_context>

<pallas_src>
from functools import partial

import jax
import jax.numpy as jnp
from jax.experimental import pallas as pl
from jax.experimental.pallas import tpu as pltpu


# ------------------------ Pallas kernel: one image per grid step ---------------

def convnet_step_kernel(p0_ref, mask_ref, w0_ref, b0_ref, w1_ref, b1_ref,
                        fw0_hbm, fb0_ref, fw1_ref, fb1_ref,
                        o_ref, fw0_vmem, fw0_sem, *, H, W):
    """Fused per-image forward.

    p0_ref   : (9*Cin, (H+2)*(W+2))  conv0 im2col patches on the padded-output grid
    mask_ref : (1, (H+2)*(W+2))      1.0 on the interior (== conv1's zero pad)
    w0_ref   : (C0, 9*Cin)           conv0 weight, taps concatenated along K
    b0_ref   : (C0, 1)
    w1_ref   : (C1, 9*C0)            conv1 weight, taps concatenated along K
    b1_ref   : (C1, 1)
    fw0_hbm  : (C1*H*W, F0) bf16     fc0 weight, left in HBM (pl.ANY)
    fb0_ref  : (1, F0)
    fw1_ref  : (F0, F1)
    fb1_ref  : (1, F1)
    o_ref    : (1, F1)
    fw0_vmem : (C1*H*W, F0) bf16     VMEM landing buffer for fw0
    fw0_sem  : DMA semaphore
    """
    # fc0's weight is the only large operand: start its HBM->VMEM copy now so
    # it overlaps the conv compute, wait only right before the fc0 matmul.
    # (Per-step re-copy keeps this correct under any megacore grid split; at
    # large batch one would switch to a copy-once scheme.)
    fw0_cp = pltpu.make_async_copy(fw0_hbm, fw0_vmem, fw0_sem)
    fw0_cp.start()

    HP, WP = H + 2, W + 2
    C0 = w0_ref.shape[0]
    C1 = w1_ref.shape[0]

    # ---- conv0: single K=9*Cin matmul, lane-dense (channels x padded grid) ----
    # Evaluated on the (H+2)x(W+2) padded-output grid; zeroing the border ring
    # after ReLU reproduces conv1's zero padding exactly (the halo comes from
    # the wrapper's zero-padded input, so it is finite).
    a0 = jnp.dot(w0_ref[...], p0_ref[...], preferred_element_type=jnp.float32)
    a0 = jnp.maximum(a0 + b0_ref[...], 0.0) * mask_ref[...]
    a0 = a0.reshape(C0, HP, WP)

    # ---- conv1: stack 9 shifted slices along K -> single K=9*C0 matmul -------
    taps = [a0[:, kh:kh + H, kw:kw + W].reshape(C0, H * W)
            for kh in range(3) for kw in range(3)]
    p1 = jnp.concatenate(taps, axis=0)                      # (9*C0, H*W)
    a1 = jnp.dot(w1_ref[...], p1, preferred_element_type=jnp.float32)
    a1 = jnp.maximum(a1 + b1_ref[...], 0.0)                 # (C1, H*W) lane-dense

    # ---- flatten: row-major (c, h*W+w) == PyTorch NCHW flatten per image -----
    # (The module's post-flatten ReLU is a no-op on already-ReLU'd data.)
    a1_flat = a1.reshape(1, C1 * H * W)

    # ---- fc0: ONE matmul, bf16 operands, f32 accumulate ----------------------
    fw0_cp.wait()
    h0 = jnp.dot(a1_flat.astype(jnp.bfloat16), fw0_vmem[...],
                 preferred_element_type=jnp.float32)
    h0 = jnp.maximum(h0 + fb0_ref[...], 0.0)

    # ---- fc1 ------------------------------------------------------------------
    y = jnp.dot(h0, fw1_ref[...], preferred_element_type=jnp.float32)
    y = jnp.maximum(y + fb1_ref[...], 0.0)
    o_ref[...] = y.astype(o_ref.dtype)


# ------------------------------ JAX wrapper -------------------------------------

def _im2col_conv0(x_nchw, H, W):
    """(N, Cin, H, W) -> (N, 9*Cin, (H+2)*(W+2)) patches on the padded-output grid."""
    N, Cin = x_nchw.shape[0], x_nchw.shape[1]
    HP, WP = H + 2, W + 2
    xp = jnp.pad(x_nchw, ((0, 0), (0, 0), (2, 2), (2, 2)))     # 2-wide halo
    taps = [xp[:, :, kh:kh + HP, kw:kw + WP].reshape(N, Cin, HP * WP)
            for kh in range(3) for kw in range(3)]
    return jnp.stack(taps, axis=1).reshape(N, 9 * Cin, HP * WP)


def convnet_forward(packed, x_nchw):
    """Run the fused forward. packed = pack_params(...); x_nchw = (N, Cin, H, W)."""
    N, Cin, H, W = x_nchw.shape
    HP, WP = H + 2, W + 2
    C0 = packed["w0"].shape[0]
    C1 = packed["w1"].shape[0]
    F0 = packed["fw0"].shape[1]
    F1 = packed["fw1"].shape[1]
    assert packed["fw0"].shape[0] == C1 * H * W

    # Only wrapper-side data ops: zero-pad + im2col of the (tiny) input.
    p0 = _im2col_conv0(x_nchw, H, W)

    args = (p0, packed["mask"], packed["w0"], packed["b0"],
            packed["w1"], packed["b1"], packed["fw0"],
            packed["fb0"], packed["fw1"], packed["fb1"])

    in_specs = [
        pl.BlockSpec((None, 9 * Cin, HP * WP), lambda n: (n, 0, 0)),   # per-image patches
        pl.BlockSpec((1, HP * WP), lambda n: (0, 0)),                  # border mask
        pl.BlockSpec((C0, 9 * Cin), lambda n: (0, 0)),                 # w0
        pl.BlockSpec((C0, 1), lambda n: (0, 0)),                       # b0
        pl.BlockSpec((C1, 9 * C0), lambda n: (0, 0)),                  # w1
        pl.BlockSpec((C1, 1), lambda n: (0, 0)),                       # b1
        pl.BlockSpec(memory_space=pl.ANY),                             # fw0 stays in HBM
        pl.BlockSpec((1, F0), lambda n: (0, 0)),                       # fb0
        pl.BlockSpec((F0, F1), lambda n: (0, 0)),                      # fw1
        pl.BlockSpec((1, F1), lambda n: (0, 0)),                       # fb1
    ]

    out = pl.pallas_call(
        partial(convnet_step_kernel, H=H, W=W),
        out_shape=jax.ShapeDtypeStruct((N, 1, F1), x_nchw.dtype),
        grid=(N,),
        in_specs=in_specs,
        out_specs=pl.BlockSpec((None, 1, F1), lambda n: (n, 0, 0)),
        scratch_shapes=[pltpu.VMEM((C1 * H * W, F0), jnp.bfloat16),
                        pltpu.SemaphoreType.DMA],
        compiler_params=pltpu.CompilerParams(
            dimension_semantics=("parallel",)),
    )(*args)
    return out.reshape(N, F1)


# ------------------------------ parameters --------------------------------------

def init_params(key, conv_encodings, fc_encodings):
    """PyTorch-layout params with PyTorch-default-like uniform init."""
    params = {"conv": [], "fc": []}
    for enc in conv_encodings:
        cin, cout, k = enc["in_channels"], enc["num_filters"], enc["kernel_size"]
        key, kw_, kb_ = jax.random.split(key, 3)
        bound = 1.0 / jnp.sqrt(jnp.float32(cin * k * k))
        w = jax.random.uniform(kw_, (cout, cin, k, k), jnp.float32, -bound, bound)
        b = jax.random.uniform(kb_, (cout,), jnp.float32, -bound, bound)
        params["conv"].append((w, b))
    for enc in fc_encodings:
        din, dout = enc["inputs"], enc["outputs"]
        key, kw_, kb_ = jax.random.split(key, 3)
        bound = 1.0 / jnp.sqrt(jnp.float32(din))
        w = jax.random.uniform(kw_, (dout, din), jnp.float32, -bound, bound)
        b = jax.random.uniform(kb_, (dout,), jnp.float32, -bound, bound)
        params["fc"].append((w, b))
    return params


def pack_params(params, H=16, W=16):
    """One-time rearrangement of PyTorch-layout params into kernel layouts."""
    assert len(params["conv"]) == 2 and len(params["fc"]) == 2, (
        "fused kernel is wired for the module's 2-conv / 2-fc configuration")
    # TODO(synk): deeper conv stacks would need cascading halos; only the used
    # 3x3 / stride 1 / pad 1 x2 + 2 fc configuration is implemented.
    (w0, b0), (w1, b1) = params["conv"]
    (fw0, fb0), (fw1, fb1) = params["fc"]
    assert w0.shape[2:] == (3, 3) and w1.shape[2:] == (3, 3)
    C0, Cin = w0.shape[0], w0.shape[1]
    C1 = w1.shape[0]
    assert fw0.shape[1] == C1 * H * W

    # conv weights: (Cout, Cin, 3, 3) -> (Cout, 9*Cin); column order (kh, kw, cin)
    # matches the wrapper im2col / in-kernel patch stacking order.
    w0p = jnp.transpose(w0, (0, 2, 3, 1)).reshape(C0, 9 * Cin)
    w1p = jnp.transpose(w1, (0, 2, 3, 1)).reshape(C1, 9 * C0)

    # fc0: in the per-image transposed conv layout the activation already
    # flattens in NCHW order, so the weight is just W.T; stored bf16 so the
    # only large DMA is halved and the fc0 matmul runs bf16 on the MXU.
    fw0p = fw0.T.astype(jnp.bfloat16)
    fw1p = fw1.T

    # Interior mask of the (H+2)x(W+2) padded-output grid: zeroing the border
    # ring of conv0's padded-grid output realizes conv1's zero padding in-kernel.
    uu, vv = jnp.arange(H + 2), jnp.arange(W + 2)
    interior = ((uu[:, None] >= 1) & (uu[:, None] <= H) &
                (vv[None, :] >= 1) & (vv[None, :] <= W))
    mask = interior.astype(jnp.float32).reshape(1, (H + 2) * (W + 2))

    return {"w0": w0p, "b0": b0.reshape(C0, 1),
            "w1": w1p, "b1": b1.reshape(C1, 1),
            "fw0": fw0p, "fb0": fb0.reshape(1, -1),
            "fw1": fw1p, "fb1": fb1.reshape(1, -1),
            "mask": mask}


# ------------------------------ pure-JAX reference -------------------------------

def convnet_reference(params, x_nchw):
    """Reference for the module's intended forward (all f32)."""
    (w0, b0), (w1, b1) = params["conv"]
    (fw0, fb0), (fw1, fb1) = params["fc"]

    def conv_relu(x, w, b):
        y = jax.lax.conv_general_dilated(
            x, w, window_strides=(1, 1), padding=((1, 1), (1, 1)),
            dimension_numbers=("NCHW", "OIHW", "NCHW"))
        return jax.nn.relu(y + b[None, :, None, None])

    out = conv_relu(x_nchw, w0, b0)
    out = conv_relu(out, w1, b1)
    out = jax.nn.relu(out.reshape(out.shape[0], -1))   # NCHW flatten (+ no-op ReLU)
    out = jax.nn.relu(out @ fw0.T + fb0)
    out = jax.nn.relu(out @ fw1.T + fb1)
    return out


# ---------------------------------- main -----------------------------------------

if __name__ == "__main__":
    in_channels = 3
    conv_encodings = [
        {"in_channels": in_channels, "num_filters": 8, "kernel_size": 3, "padding": 1},
        {"in_channels": 8, "num_filters": 16, "kernel_size": 3, "padding": 1},
    ]
    # 16 filters * 16x16 spatial -> 4096 flattened features.
    fc_encodings = [
        {"inputs": 16 * 16 * 16, "outputs": 32},
        {"inputs": 32, "outputs": 10},
    ]

    key = jax.random.PRNGKey(0)
    key, kx = jax.random.split(key)
    x = jax.random.normal(kx, (2, in_channels, 16, 16), jnp.float32)  # NCHW

    params = init_params(key, conv_encodings, fc_encodings)
    packed = pack_params(params, H=16, W=16)

    fwd = jax.jit(convnet_forward)
    out = jax.block_until_ready(fwd(packed, x))
    assert out.shape == (2, 10), out.shape

    # Correctness vs. pure-JAX reference (fc0 runs bf16 on the MXU -> loose tol).
    ref = convnet_reference(params, x)
    max_err = float(jnp.max(jnp.abs(out - ref)))
    assert jnp.allclose(out, ref, rtol=5e-2, atol=5e-2), max_err

    print("KERNEL_OK")
</pallas_src>

<mosaic_0001>
module attributes {stable_mosaic.version = 11 : i64} {
  func.func @convnet_step_kernel(%arg0: i32, %arg1: memref<1x27x324xf32, #tpu.memory_space<vmem>>, %arg2: memref<1x324xf32, #tpu.memory_space<vmem>>, %arg3: memref<8x27xf32, #tpu.memory_space<vmem>>, %arg4: memref<8x1xf32, #tpu.memory_space<vmem>>, %arg5: memref<16x72xf32, #tpu.memory_space<vmem>>, %arg6: memref<16x1xf32, #tpu.memory_space<vmem>>, %arg7: memref<4096x32xbf16, #tpu.memory_space<any>>, %arg8: memref<1x32xf32, #tpu.memory_space<vmem>>, %arg9: memref<32x10xf32, #tpu.memory_space<vmem>>, %arg10: memref<1x10xf32, #tpu.memory_space<vmem>>, %arg11: memref<1x1x10xf32, #tpu.memory_space<vmem>>, %arg12: memref<4096x32xbf16, #tpu.memory_space<vmem>>, %arg13: memref<!tpu.dma_semaphore, #tpu.memory_space<semaphore_mem>>) attributes {dimension_semantics = [#tpu.dimension_semantics<parallel>], iteration_bounds = array<i64: 2>, scalar_prefetch = 0 : i64, scratch_operands = 2 : i64, tpu.core_type = #tpu.core_type<tc>, window_params = [{transform_indices = @transform_0, window_bounds = array<i64: 1, 27, 324>}, {pipeline_mode = #tpu.pipeline_mode<synchronous>, transform_indices = @transform_1, window_bounds = array<i64: 1, 324>}, {pipeline_mode = #tpu.pipeline_mode<synchronous>, transform_indices = @transform_2, window_bounds = array<i64: 8, 27>}, {pipeline_mode = #tpu.pipeline_mode<synchronous>, transform_indices = @transform_3, window_bounds = array<i64: 8, 1>}, {pipeline_mode = #tpu.pipeline_mode<synchronous>, transform_indices = @transform_4, window_bounds = array<i64: 16, 72>}, {pipeline_mode = #tpu.pipeline_mode<synchronous>, transform_indices = @transform_5, window_bounds = array<i64: 16, 1>}, {}, {pipeline_mode = #tpu.pipeline_mode<synchronous>, transform_indices = @transform_7, window_bounds = array<i64: 1, 32>}, {pipeline_mode = #tpu.pipeline_mode<synchronous>, transform_indices = @transform_8, window_bounds = array<i64: 32, 10>}, {pipeline_mode = #tpu.pipeline_mode<synchronous>, transform_indices = @transform_9, window_bounds = array<i64: 1, 10>}, {transform_indices = @transform_10, window_bounds = array<i64: 1, 1, 10>}]} {
    tpu.enqueue_dma source(%arg7 : memref<4096x32xbf16, #tpu.memory_space<any>>) target(%arg12 : memref<4096x32xbf16, #tpu.memory_space<vmem>>) target_semaphore(%arg13 : memref<!tpu.dma_semaphore, #tpu.memory_space<semaphore_mem>>)
    %c0 = arith.constant 0 : index
    %c0_0 = arith.constant 0 : index
    %0 = vector.load %arg3[%c0, %c0_0] : memref<8x27xf32, #tpu.memory_space<vmem>>, vector<8x27xf32>
    %c0_1 = arith.constant 0 : index
    %c0_2 = arith.constant 0 : index
    %c0_3 = arith.constant 0 : index
    %1 = vector.load %arg1[%c0_1, %c0_2, %c0_3] : memref<1x27x324xf32, #tpu.memory_space<vmem>>, vector<1x27x324xf32>
    %2 = vector.shape_cast %1 : vector<1x27x324xf32> to vector<27x324xf32>
    %cst = arith.constant dense<0.000000e+00> : vector<8x324xf32>
    %3 = tpu.matmul %0, %2, %cst {dimension_numbers = #tpu.dot_dimension_numbers<[1], [0], [0], [1], [0, 0, 1, 1], [], []>} : vector<8x27xf32>, vector<27x324xf32>, vector<8x324xf32> -> vector<8x324xf32>
    %c0_4 = arith.constant 0 : index
    %c0_5 = arith.constant 0 : index
    %4 = vector.load %arg4[%c0_4, %c0_5] : memref<8x1xf32, #tpu.memory_space<vmem>>, vector<8x1xf32>
    %5 = vector.broadcast %4 : vector<8x1xf32> to vector<8x324xf32>
    %6 = arith.addf %3, %5 : vector<8x324xf32>
    %cst_6 = arith.constant 0.000000e+00 : f32
    %7 = vector.broadcast %cst_6 : f32 to vector<8x324xf32>
    %8 = arith.maximumf %6, %7 : vector<8x324xf32>
    %c0_7 = arith.constant 0 : index
    %c0_8 = arith.constant 0 : index
    %9 = vector.load %arg2[%c0_7, %c0_8] : memref<1x324xf32, #tpu.memory_space<vmem>>, vector<1x324xf32>
    %10 = vector.broadcast %9 : vector<1x324xf32> to vector<8x324xf32>
    %11 = arith.mulf %8, %10 : vector<8x324xf32>
    %12 = vector.shape_cast %11 : vector<8x324xf32> to vector<8x18x18xf32>
    %13 = vector.extract_strided_slice %12 {offsets = [0, 0, 0], sizes = [8, 16, 16], strides = [1, 1, 1]} : vector<8x18x18xf32> to vector<8x16x16xf32>
    %14 = vector.shape_cast %13 : vector<8x16x16xf32> to vector<8x256xf32>
    %15 = vector.extract_strided_slice %12 {offsets = [0, 0, 1], sizes = [8, 16, 16], strides = [1, 1, 1]} : vector<8x18x18xf32> to vector<8x16x16xf32>
    %16 = vector.shape_cast %15 : vector<8x16x16xf32> to vector<8x256xf32>
    %17 = vector.extract_strided_slice %12 {offsets = [0, 0, 2], sizes = [8, 16, 16], strides = [1, 1, 1]} : vector<8x18x18xf32> to vector<8x16x16xf32>
    %18 = vector.shape_cast %17 : vector<8x16x16xf32> to vector<8x256xf32>
    %19 = vector.extract_strided_slice %12 {offsets = [0, 1, 0], sizes = [8, 16, 16], strides = [1, 1, 1]} : vector<8x18x18xf32> to vector<8x16x16xf32>
    %20 = vector.shape_cast %19 : vector<8x16x16xf32> to vector<8x256xf32>
    %21 = vector.extract_strided_slice %12 {offsets = [0, 1, 1], sizes = [8, 16, 16], strides = [1, 1, 1]} : vector<8x18x18xf32> to vector<8x16x16xf32>
    %22 = vector.shape_cast %21 : vector<8x16x16xf32> to vector<8x256xf32>
    %23 = vector.extract_strided_slice %12 {offsets = [0, 1, 2], sizes = [8, 16, 16], strides = [1, 1, 1]} : vector<8x18x18xf32> to vector<8x16x16xf32>
    %24 = vector.shape_cast %23 : vector<8x16x16xf32> to vector<8x256xf32>
    %25 = vector.extract_strided_slice %12 {offsets = [0, 2, 0], sizes = [8, 16, 16], strides = [1, 1, 1]} : vector<8x18x18xf32> to vector<8x16x16xf32>
    %26 = vector.shape_cast %25 : vector<8x16x16xf32> to vector<8x256xf32>
    %27 = vector.extract_strided_slice %12 {offsets = [0, 2, 1], sizes = [8, 16, 16], strides = [1, 1, 1]} : vector<8x18x18xf32> to vector<8x16x16xf32>
    %28 = vector.shape_cast %27 : vector<8x16x16xf32> to vector<8x256xf32>
    %29 = vector.extract_strided_slice %12 {offsets = [0, 2, 2], sizes = [8, 16, 16], strides = [1, 1, 1]} : vector<8x18x18xf32> to vector<8x16x16xf32>
    %30 = vector.shape_cast %29 : vector<8x16x16xf32> to vector<8x256xf32>
    %31 = tpu.concatenate %14, %16, %18, %20, %22, %24, %26, %28, %30 in 0 : vector<8x256xf32>, vector<8x256xf32>, vector<8x256xf32>, vector<8x256xf32>, vector<8x256xf32>, vector<8x256xf32>, vector<8x256xf32>, vector<8x256xf32>, vector<8x256xf32> -> vector<72x256xf32>
    %c0_9 = arith.constant 0 : index
    %c0_10 = arith.constant 0 : index
    %32 = vector.load %arg5[%c0_9, %c0_10] : memref<16x72xf32, #tpu.memory_space<vmem>>, vector<16x72xf32>
    %cst_11 = arith.constant dense<0.000000e+00> : vector<16x256xf32>
    %33 = tpu.matmul %32, %31, %cst_11 {dimension_numbers = #tpu.dot_dimension_numbers<[1], [0], [0], [1], [0, 0, 1, 1], [], []>} : vector<16x72xf32>, vector<72x256xf32>, vector<16x256xf32> -> vector<16x256xf32>
    %c0_12 = arith.constant 0 : index
    %c0_13 = arith.constant 0 : index
    %34 = vector.load %arg6[%c0_12, %c0_13] : memref<16x1xf32, #tpu.memory_space<vmem>>, vector<16x1xf32>
    %35 = vector.broadcast %34 : vector<16x1xf32> to vector<16x256xf32>
    %36 = arith.addf %33, %35 : vector<16x256xf32>
    %cst_14 = arith.constant 0.000000e+00 : f32
    %37 = vector.broadcast %cst_14 : f32 to vector<16x256xf32>
    %38 = arith.maximumf %36, %37 : vector<16x256xf32>
    %39 = vector.shape_cast %38 : vector<16x256xf32> to vector<1x4096xf32>
    tpu.wait_dma2 semaphore(%arg13 : memref<!tpu.dma_semaphore, #tpu.memory_space<semaphore_mem>>) src(%arg7 : memref<4096x32xbf16, #tpu.memory_space<any>>) dst(%arg12 : memref<4096x32xbf16, #tpu.memory_space<vmem>>)
    %40 = arith.truncf %39 : vector<1x4096xf32> to vector<1x4096xbf16>
    %c0_15 = arith.constant 0 : index
    %c0_16 = arith.constant 0 : index
    %41 = vector.load %arg12[%c0_15, %c0_16] : memref<4096x32xbf16, #tpu.memory_space<vmem>>, vector<4096x32xbf16>
    %cst_17 = arith.constant dense<0.000000e+00> : vector<1x32xf32>
    %42 = tpu.matmul %40, %41, %cst_17 {dimension_numbers = #tpu.dot_dimension_numbers<[1], [0], [0], [1], [0, 0, 1, 1], [], []>} : vector<1x4096xbf16>, vector<4096x32xbf16>, vector<1x32xf32> -> vector<1x32xf32>
    %c0_18 = arith.constant 0 : index
    %c0_19 = arith.constant 0 : index
    %43 = vector.load %arg8[%c0_18, %c0_19] : memref<1x32xf32, #tpu.memory_space<vmem>>, vector<1x32xf32>
    %44 = arith.addf %42, %43 : vector<1x32xf32>
    %cst_20 = arith.constant 0.000000e+00 : f32
    %45 = vector.broadcast %cst_20 : f32 to vector<1x32xf32>
    %46 = arith.maximumf %44, %45 : vector<1x32xf32>
    %c0_21 = arith.constant 0 : index
    %c0_22 = arith.constant 0 : index
    %47 = vector.load %arg9[%c0_21, %c0_22] : memref<32x10xf32, #tpu.memory_space<vmem>>, vector<32x10xf32>
    %cst_23 = arith.constant dense<0.000000e+00> : vector<1x10xf32>
    %48 = tpu.matmul %46, %47, %cst_23 {dimension_numbers = #tpu.dot_dimension_numbers<[1], [0], [0], [1], [0, 0, 1, 1], [], []>} : vector<1x32xf32>, vector<32x10xf32>, vector<1x10xf32> -> vector<1x10xf32>
    %c0_24 = arith.constant 0 : index
    %c0_25 = arith.constant 0 : index
    %49 = vector.load %arg10[%c0_24, %c0_25] : memref<1x10xf32, #tpu.memory_space<vmem>>, vector<1x10xf32>
    %50 = arith.addf %48, %49 : vector<1x10xf32>
    %cst_26 = arith.constant 0.000000e+00 : f32
    %51 = vector.broadcast %cst_26 : f32 to vector<1x10xf32>
    %52 = arith.maximumf %50, %51 : vector<1x10xf32>
    %c0_27 = arith.constant 0 : index
    %c0_28 = arith.constant 0 : index
    %c0_29 = arith.constant 0 : index
    %53 = vector.load %arg11[%c0_27, %c0_28, %c0_29] : memref<1x1x10xf32, #tpu.memory_space<vmem>>, vector<1x1x10xf32>
    %54 = vector.shape_cast %53 : vector<1x1x10xf32> to vector<1x10xf32>
    %55 = vector.shape_cast %52 : vector<1x10xf32> to vector<1x1x10xf32>
    tpu.vector_store %arg11[%c0_27, %c0_28, %c0_29], %55 {strides = array<i32>} : memref<1x1x10xf32, #tpu.memory_space<vmem>>, vector<1x1x10xf32>,
    return
  }
  func.func @transform_0(%arg0: i32) -> (i32, i32, i32) {
    %c0_i32 = arith.constant 0 : i32
    %c0_i32_0 = arith.constant 0 : i32
    %c0_i32_1 = arith.constant 0 : i32
    return %arg0, %c0_i32, %c0_i32_0 : i32, i32, i32
  }
  func.func @transform_1(%arg0: i32) -> (i32, i32) {
    %c0_i32 = arith.constant 0 : i32
    %c0_i32_0 = arith.constant 0 : i32
    %c0_i32_1 = arith.constant 0 : i32
    return %c0_i32, %c0_i32_0 : i32, i32
  }
  func.func @transform_2(%arg0: i32) -> (i32, i32) {
    %c0_i32 = arith.constant 0 : i32
    %c0_i32_0 = arith.constant 0 : i32
    %c0_i32_1 = arith.constant 0 : i32
    return %c0_i32, %c0_i32_0 : i32, i32
  }
  func.func @transform_3(%arg0: i32) -> (i32, i32) {
    %c0_i32 = arith.constant 0 : i32
    %c0_i32_0 = arith.constant 0 : i32
    %c0_i32_1 = arith.constant 0 : i32
    return %c0_i32, %c0_i32_0 : i32, i32
  }
  func.func @transform_4(%arg0: i32) -> (i32, i32) {
    %c0_i32 = arith.constant 0 : i32
    %c0_i32_0 = arith.constant 0 : i32
    %c0_i32_1 = arith.constant 0 : i32
    return %c0_i32, %c0_i32_0 : i32, i32
  }
  func.func @transform_5(%arg0: i32) -> (i32, i32) {
    %c0_i32 = arith.constant 0 : i32
    %c0_i32_0 = arith.constant 0 : i32
    %c0_i32_1 = arith.constant 0 : i32
    return %c0_i32, %c0_i32_0 : i32, i32
  }
  func.func @transform_7(%arg0: i32) -> (i32, i32) {
    %c0_i32 = arith.constant 0 : i32
    %c0_i32_0 = arith.constant 0 : i32
    %c0_i32_1 = arith.constant 0 : i32
    return %c0_i32, %c0_i32_0 : i32, i32
  }
  func.func @transform_8(%arg0: i32) -> (i32, i32) {
    %c0_i32 = arith.constant 0 : i32
    %c0_i32_0 = arith.constant 0 : i32
    %c0_i32_1 = arith.constant 0 : i32
    return %c0_i32, %c0_i32_0 : i32, i32
  }
  func.func @transform_9(%arg0: i32) -> (i32, i32) {
    %c0_i32 = arith.constant 0 : i32
    %c0_i32_0 = arith.constant 0 : i32
    %c0_i32_1 = arith.constant 0 : i32
    return %c0_i32, %c0_i32_0 : i32, i32
  }
  func.func @transform_10(%arg0: i32) -> (i32, i32, i32) {
    %c0_i32 = arith.constant 0 : i32
    %c0_i32_0 = arith.constant 0 : i32
    %c0_i32_1 = arith.constant 0 : i32
    return %arg0, %c0_i32, %c0_i32_0 : i32, i32, i32
  }
}

</mosaic_0001>

<llo_original>
// kernel: convnet_forward.1
$region0: #{convnet_forward.1}
  #allocation0 [shape = 'u32[]', space=smem, size = 0x4, offset = 0x4, fixed_abs, tag = 'smem constant byte address 0x4 - core index']
  #allocation1 [shape = 'u32[144,128]{1,0:T(1,128)}', space=vmem, size = 0x12000, scoped, tag = 'internal scratch']
  #allocation2 [shape = 'bf16[4096,32]{1,0:T(16,128)(2,1)}', space=vmem, size = 0x100000, scoped, tag = 'scratch operand']
  #allocation3 [shape = 's32[1]{0}', space=sflag, size = 0x4, scoped, tag = 'scratch operand']
  #allocation6 [shape = 's32[]', space=sflag, size = 0x4, offset = 0, fixed_abs, tag = 'sflag constant byte address 0x0 - dummy sync flag']
  %s0 = inlined_call_operand.vmem [shape: f32[2,27,324], index: 0, kind: input, shape index: {}]
  %s1 = inlined_call_operand.vmem [shape: f32[1,324], index: 1, kind: input, shape index: {}]
  %s2 = inlined_call_operand.vmem [shape: f32[8,27], index: 2, kind: input, shape index: {}]
  %s3 = inlined_call_operand.vmem [shape: f32[8,1], index: 3, kind: input, shape index: {}]
  %s4 = inlined_call_operand.vmem [shape: f32[16,72], index: 4, kind: input, shape index: {}]
  %s5 = inlined_call_operand.vmem [shape: f32[16,1], index: 5, kind: input, shape index: {}]
  %s6 = inlined_call_operand.vmem [shape: bf16[4096,32], index: 6, kind: input, shape index: {}]
  %s7 = inlined_call_operand.vmem [shape: f32[1,32], index: 7, kind: input, shape index: {}]
  %s8 = inlined_call_operand.vmem [shape: f32[32,10], index: 8, kind: input, shape index: {}]
  %s9 = inlined_call_operand.vmem [shape: f32[1,10], index: 9, kind: input, shape index: {}]
  %s10 = inlined_call_operand.hbm [shape: f32[2,1,10], index: 10, kind: output, shape index: {}]
  %s11 = sld [smem:[#allocation0]]
  $region103: #{convnet_forward.1} parent=0
    _
  %s13 = ssub.s32 1, %s11
  %s14 = scalar_select 0, %s13, %s11
  $region1: #{convnet_forward.1} parent=0
    #allocation4 [shape = 'u8[1024]{0}', space=vmem, size = 0x400, scoped, tag = 'output window, operand 0']
    #allocation5 [shape = 's32[2]{0}', space=sflag, size = 0x8, scoped, tag = 'scoped memory for convnet_forward.1']
    %15 = vsyncpa [#allocation5], 0
    %s16 = scalar_lea.sflag [#allocation5], 1
    %17 = vsyncpa %s16, 0
    loop: start=0, step=1, limit=4
    $region2: #{convnet_forward.1} parent=1 // loop_pre_header
      _
    $region3: #{convnet_forward.1} parent=1 // loop_header
      %s19 = sphi 0, %s23
      %p20 = scmp.ge.s32.totalorder %s19, 4
      %s29 = sphi 0, %s31
      %s32 = sphi 0, %s29
      %s33 = sphi 0, %s32
      %s49 = sphi 0, %s33
      %s53 = sphi 0, %s53
      %s55 = sphi 0, %s53
      %s56 = sphi 0, %s55
      %s70 = sphi 0, %s56
      %s74 = sphi 0, %s74
      %s76 = sphi 0, %s74
      %s77 = sphi 0, %s76
      %s91 = sphi 0, %s77
      %s95 = sphi 0, %s95
      %s97 = sphi 0, %s95
      %s98 = sphi 0, %s97
      %s112 = sphi 0, %s98
      %s116 = sphi 0, %s116
      %s118 = sphi 0, %s116
      %s119 = sphi 0, %s118
      %s133 = sphi 0, %s119
      %s137 = sphi 0, %s137
      %s139 = sphi 0, %s137
      %s140 = sphi 0, %s139
      %s154 = sphi 0, %s140
      %s158 = sphi 0, %s158
      %s160 = sphi 0, %s158
      %s161 = sphi 0, %s160
      %s175 = sphi 0, %s161
      %s179 = sphi 0, %s179
      %s181 = sphi 0, %s179
      %s182 = sphi 0, %s181
      %s196 = sphi 0, %s182
      %s200 = sphi 0, %s200
      %s202 = sphi 0, %s200
      %s203 = sphi 0, %s202
      %s217 = sphi 0, %s203
      %s223 = sphi 0, %s225
      %s226 = sphi 0, %s223
      %s227 = sphi 0, %s226
      %s243 = sphi 0, %s227
    $region4: #{convnet_forward.1} parent=1 // loop_header_branch
      %22 = sbr.rel (%p20) target = $region8
    $region5: #{convnet_forward.1} parent=1 // loop_body
      %s24 = ssub.s32 %s19, 1
      %s25 = ssub.s32 %s19, 2
      %s26 = sadd.s32 %s19, 1
      %s27 = ssub.s32 %s19, %s26
      %p28 = scmp.eq.s32.totalorder %s27, 0
      %s30 = sadd.s32 %s29, 1
      %s31 = scalar_select %p28, %s29, %s30
      %p34 = pneg %p28
      %p35 = scmp.eq.s32.totalorder %s19, 1
      %p36 = por %p34, %p35
      %p37 = scmp.ne.s32.totalorder %s29, %s32
      %p38 = scmp.eq.s32.totalorder %s19, 0
      %p39 = por %p37, %p38
      %p40 = scmp.ne.s32.totalorder %s29, %s32
      %p41 = scmp.eq.s32.totalorder %s24, 1
      %p42 = por %p40, %p41
      %p43 = scmp.ne.s32.totalorder %s32, %s33
      %p44 = scmp.eq.s32.totalorder %s24, 0
      %p45 = por %p43, %p44
      %p46 = scmp.ne.s32.totalorder %s32, %s33
      %p47 = scmp.eq.s32.totalorder %s25, 1
      %p48 = por %p46, %p47
      %p50 = scmp.ne.s32.totalorder %s33, %s49
      %p51 = scmp.eq.s32.totalorder %s25, 0
      %p52 = por %p50, %p51
      %s54 = sadd.s32 %s53, 1
      %p57 = scmp.eq.s32.totalorder %s19, 1
      %p58 = scmp.ne.s32.totalorder %s53, %s55
      %p59 = scmp.eq.s32.totalorder %s19, 0
      %p60 = por %p58, %p59
      %p61 = scmp.ne.s32.totalorder %s53, %s55
      %p62 = scmp.eq.s32.totalorder %s24, 1
      %p63 = por %p61, %p62
      %p64 = scmp.ne.s32.totalorder %s55, %s56
      %p65 = scmp.eq.s32.totalorder %s24, 0
      %p66 = por %p64, %p65
      %p67 = scmp.ne.s32.totalorder %s55, %s56
      %p68 = scmp.eq.s32.totalorder %s25, 1
      %p69 = por %p67, %p68
      %p71 = scmp.ne.s32.totalorder %s56, %s70
      %p72 = scmp.eq.s32.totalorder %s25, 0
      %p73 = por %p71, %p72
      %s75 = sadd.s32 %s74, 1
      %p78 = scmp.eq.s32.totalorder %s19, 1
      %p79 = scmp.ne.s32.totalorder %s74, %s76
      %p80 = scmp.eq.s32.totalorder %s19, 0
      %p81 = por %p79, %p80
      %p82 = scmp.ne.s32.totalorder %s74, %s76
      %p83 = scmp.eq.s32.totalorder %s24, 1
      %p84 = por %p82, %p83
      %p85 = scmp.ne.s32.totalorder %s76, %s77
      %p86 = scmp.eq.s32.totalorder %s24, 0
      %p87 = por %p85, %p86
      %p88 = scmp.ne.s32.totalorder %s76, %s77
      %p89 = scmp.eq.s32.totalorder %s25, 1
      %p90 = por %p88, %p89
      %p92 = scmp.ne.s32.totalorder %s77, %s91
      %p93 = scmp.eq.s32.totalorder %s25, 0
      %p94 = por %p92, %p93
      %s96 = sadd.s32 %s95, 1
      %p99 = scmp.eq.s32.totalorder %s19, 1
      %p100 = scmp.ne.s32.totalorder %s95, %s97
      %p101 = scmp.eq.s32.totalorder %s19, 0
      %p102 = por %p100, %p101
      %p103 = scmp.ne.s32.totalorder %s95, %s97
      %p104 = scmp.eq.s32.totalorder %s24, 1
      %p105 = por %p103, %p104
      %p106 = scmp.ne.s32.totalorder %s97, %s98
      %p107 = scmp.eq.s32.totalorder %s24, 0
      %p108 = por %p106, %p107
      %p109 = scmp.ne.s32.totalorder %s97, %s98
      %p110 = scmp.eq.s32.totalorder %s25, 1
      %p111 = por %p109, %p110
      %p113 = scmp.ne.s32.totalorder %s98, %s112
      %p114 = scmp.eq.s32.totalorder %s25, 0
      %p115 = por %p113, %p114
      %s117 = sadd.s32 %s116, 1
      %p120 = scmp.eq.s32.totalorder %s19, 1
      %p121 = scmp.ne.s32.totalorder %s116, %s118
      %p122 = scmp.eq.s32.totalorder %s19, 0
      %p123 = por %p121, %p122
      %p124 = scmp.ne.s32.totalorder %s116, %s118
      %p125 = scmp.eq.s32.totalorder %s24, 1
      %p126 = por %p124, %p125
      %p127 = scmp.ne.s32.totalorder %s118, %s119
      %p128 = scmp.eq.s32.totalorder %s24, 0
      %p129 = por %p127, %p128
      %p130 = scmp.ne.s32.totalorder %s118, %s119
      %p131 = scmp.eq.s32.totalorder %s25, 1
      %p132 = por %p130, %p131
      %p134 = scmp.ne.s32.totalorder %s119, %s133
      %p135 = scmp.eq.s32.totalorder %s25, 0
      %p136 = por %p134, %p135
      %s138 = sadd.s32 %s137, 1
      %p141 = scmp.eq.s32.totalorder %s19, 1
      %p142 = scmp.ne.s32.totalorder %s137, %s139
      %p143 = scmp.eq.s32.totalorder %s19, 0
      %p144 = por %p142, %p143
      %p145 = scmp.ne.s32.totalorder %s137, %s139
      %p146 = scmp.eq.s32.totalorder %s24, 1
      %p147 = por %p145, %p146
      %p148 = scmp.ne.s32.totalorder %s139, %s140
      %p149 = scmp.eq.s32.totalorder %s24, 0
      %p150 = por %p148, %p149
      %p151 = scmp.ne.s32.totalorder %s139, %s140
      %p152 = scmp.eq.s32.totalorder %s25, 1
      %p153 = por %p151, %p152
      %p155 = scmp.ne.s32.totalorder %s140, %s154
      %p156 = scmp.eq.s32.totalorder %s25, 0
      %p157 = por %p155, %p156
      %s159 = sadd.s32 %s158, 1
      %p162 = scmp.eq.s32.totalorder %s19, 1
      %p163 = scmp.ne.s32.totalorder %s158, %s160
      %p164 = scmp.eq.s32.totalorder %s19, 0
      %p165 = por %p163, %p164
      %p166 = scmp.ne.s32.totalorder %s158, %s160
      %p167 = scmp.eq.s32.totalorder %s24, 1
      %p168 = por %p166, %p167
      %p169 = scmp.ne.s32.totalorder %s160, %s161
      %p170 = scmp.eq.s32.totalorder %s24, 0
      %p171 = por %p169, %p170
      %p172 = scmp.ne.s32.totalorder %s160, %s161
      %p173 = scmp.eq.s32.totalorder %s25, 1
      %p174 = por %p172, %p173
      %p176 = scmp.ne.s32.totalorder %s161, %s175
      %p177 = scmp.eq.s32.totalorder %s25, 0
      %p178 = por %p176, %p177
      %s180 = sadd.s32 %s179, 1
      %p183 = scmp.eq.s32.totalorder %s19, 1
      %p184 = scmp.ne.s32.totalorder %s179, %s181
      %p185 = scmp.eq.s32.totalorder %s19, 0
      %p186 = por %p184, %p185
      %p187 = scmp.ne.s32.totalorder %s179, %s181
      %p188 = scmp.eq.s32.totalorder %s24, 1
      %p189 = por %p187, %p188
      %p190 = scmp.ne.s32.totalorder %s181, %s182
      %p191 = scmp.eq.s32.totalorder %s24, 0
      %p192 = por %p190, %p191
      %p193 = scmp.ne.s32.totalorder %s181, %s182
      %p194 = scmp.eq.s32.totalorder %s25, 1
      %p195 = por %p193, %p194
      %p197 = scmp.ne.s32.totalorder %s182, %s196
      %p198 = scmp.eq.s32.totalorder %s25, 0
      %p199 = por %p197, %p198
      %s201 = sadd.s32 %s200, 1
      %p204 = scmp.eq.s32.totalorder %s19, 1
      %p205 = scmp.ne.s32.totalorder %s200, %s202
      %p206 = scmp.eq.s32.totalorder %s19, 0
      %p207 = por %p205, %p206
      %p208 = scmp.ne.s32.totalorder %s200, %s202
      %p209 = scmp.eq.s32.totalorder %s24, 1
      %p210 = por %p208, %p209
      %p211 = scmp.ne.s32.totalorder %s202, %s203
      %p212 = scmp.eq.s32.totalorder %s24, 0
      %p213 = por %p211, %p212
      %p214 = scmp.ne.s32.totalorder %s202, %s203
      %p215 = scmp.eq.s32.totalorder %s25, 1
      %p216 = por %p214, %p215
      %p218 = scmp.ne.s32.totalorder %s203, %s217
      %p219 = scmp.eq.s32.totalorder %s25, 0
      %p220 = por %p218, %p219
      %s221 = ssub.s32 %s19, %s26
      %p222 = scmp.eq.s32.totalorder %s221, 0
      %s224 = sadd.s32 %s223, 1
      %s225 = scalar_select %p222, %s223, %s224
      %p228 = pneg %p222
      %p229 = scmp.eq.s32.totalorder %s19, 1
      %p230 = por %p228, %p229
      %p231 = scmp.ne.s32.totalorder %s223, %s226
      %p232 = scmp.eq.s32.totalorder %s19, 0
      %p233 = por %p231, %p232
      %p234 = scmp.ne.s32.totalorder %s223, %s226
      %p235 = scmp.eq.s32.totalorder %s24, 1
      %p236 = por %p234, %p235
      %p237 = scmp.ne.s32.totalorder %s226, %s227
      %p238 = scmp.eq.s32.totalorder %s24, 0
      %p239 = por %p237, %p238
      %p240 = scmp.ne.s32.totalorder %s226, %s227
      %p241 = scmp.eq.s32.totalorder %s25, 1
      %p242 = por %p240, %p241
      %p244 = scmp.ne.s32.totalorder %s227, %s243
      %p245 = scmp.eq.s32.totalorder %s25, 0
      %p246 = por %p244, %p245
      %p247 = scmp.le.s32.totalorder 1, %s19
      %p248 = scmp.lt.s32.totalorder %s19, 3
      %p249 = pnand %p247, %p248
      %p250 = pneg %p249
      // Predicated region
      $region9: #{convnet_forward.1} parent=5 // pred_check
        _
      $region10: #{convnet_forward.1} parent=5 // pred_check_branch
        %252 = sbr.rel (%p249) target = $region12
      $region11: #{convnet_forward.1} parent=5 // pred_region
        %s253 = ssub.s32 %s19, 1
        // Predicated region
        $region13: #{convnet_forward.1} parent=11 // pred_check
          %p254 = pneg %p66
        $region14: #{convnet_forward.1} parent=11 // pred_check_branch
          %256 = sbr.rel (%p254) target = $region16
        $region15: #{convnet_forward.1} parent=11 // pred_region
          _
        $region16: #{convnet_forward.1} parent=11 // pred_fallthru
          _
        // Predicated region
        $region17: #{convnet_forward.1} parent=11 // pred_check
          %p257 = pneg %p87
        $region18: #{convnet_forward.1} parent=11 // pred_check_branch
          %259 = sbr.rel (%p257) target = $region20
        $region19: #{convnet_forward.1} parent=11 // pred_region
          _
        $region20: #{convnet_forward.1} parent=11 // pred_fallthru
          _
        // Predicated region
        $region21: #{convnet_forward.1} parent=11 // pred_check
          %p260 = pneg %p108
        $region22: #{convnet_forward.1} parent=11 // pred_check_branch
          %262 = sbr.rel (%p260) target = $region24
        $region23: #{convnet_forward.1} parent=11 // pred_region
          _
        $region24: #{convnet_forward.1} parent=11 // pred_fallthru
          _
        // Predicated region
        $region25: #{convnet_forward.1} parent=11 // pred_check
          %p263 = pneg %p129
        $region26: #{convnet_forward.1} parent=11 // pred_check_branch
          %265 = sbr.rel (%p263) target = $region28
        $region27: #{convnet_forward.1} parent=11 // pred_region
          _
        $region28: #{convnet_forward.1} parent=11 // pred_fallthru
          _
        // Predicated region
        $region29: #{convnet_forward.1} parent=11 // pred_check
          %p266 = pneg %p150
        $region30: #{convnet_forward.1} parent=11 // pred_check_branch
          %268 = sbr.rel (%p266) target = $region32
        $region31: #{convnet_forward.1} parent=11 // pred_region
          _
        $region32: #{convnet_forward.1} parent=11 // pred_fallthru
          _
        // Predicated region
        $region33: #{convnet_forward.1} parent=11 // pred_check
          %p269 = pneg %p171
        $region34: #{convnet_forward.1} parent=11 // pred_check_branch
          %271 = sbr.rel (%p269) target = $region36
        $region35: #{convnet_forward.1} parent=11 // pred_region
          _
        $region36: #{convnet_forward.1} parent=11 // pred_fallthru
          _
        // Predicated region
        $region37: #{convnet_forward.1} parent=11 // pred_check
          %p272 = pneg %p192
        $region38: #{convnet_forward.1} parent=11 // pred_check_branch
          %274 = sbr.rel (%p272) target = $region40
        $region39: #{convnet_forward.1} parent=11 // pred_region
          _
        $region40: #{convnet_forward.1} parent=11 // pred_fallthru
          _
        // Predicated region
        $region41: #{convnet_forward.1} parent=11 // pred_check
          %p275 = pneg %p213
        $region42: #{convnet_forward.1} parent=11 // pred_check_branch
          %277 = sbr.rel (%p275) target = $region44
        $region43: #{convnet_forward.1} parent=11 // pred_region
          _
        $region44: #{convnet_forward.1} parent=11 // pred_fallthru
          _
      $region12: #{convnet_forward.1} parent=5 // pred_fallthru
        _
      %p278 = scmp.lt.s32.totalorder %s19, 2
      // Predicated region
      $region45: #{convnet_forward.1} parent=5 // pred_check
        %p279 = pneg %p278
      $region46: #{convnet_forward.1} parent=5 // pred_check_branch
        %281 = sbr.rel (%p279) target = $region48
      $region47: #{convnet_forward.1} parent=5 // pred_region
        // Predicated region
        $region49: #{convnet_forward.1} parent=47 // pred_check
          %p282 = pneg %p39
        $region50: #{convnet_forward.1} parent=47 // pred_check_branch
          %284 = sbr.rel (%p282) target = $region52
        $region51: #{convnet_forward.1} parent=47 // pred_region
          %p285 = scmp.lt.s32.totalorder %s19, 1
          %s286 = scalar_select %p285, %s19, 1
          %s287 = smul.addr %s286, 12
          %s288 = smul.addr %s287, 8
          %s289 = scalar_lea.vmem %s0, %s288
        $region52: #{convnet_forward.1} parent=47 // pred_fallthru
          _
      $region48: #{convnet_forward.1} parent=5 // pred_fallthru
        _
      %p290 = scmp.le.s32.totalorder 1, %s19
      %p291 = scmp.lt.s32.totalorder %s19, 3
      %p292 = pnand %p290, %p291
      %p293 = pneg %p292
      // Predicated region
      $region53: #{convnet_forward.1} parent=5 // pred_check
        _
      $region54: #{convnet_forward.1} parent=5 // pred_check_branch
        %295 = sbr.rel (%p292) target = $region56
      $region55: #{convnet_forward.1} parent=5 // pred_region
        %s296 = ssub.s32 %s19, 1
        %p297 = scmp.lt.s32.totalorder %s24, 1
        %s298 = scalar_select %p297, %s24, 1
        %s299 = smul.addr %s298, 12
        %s300 = smul.addr %s299, 8
        %s301 = scalar_lea.vmem %s0, %s300
        %p302 = pneg %p45
        %p303 = pneg %p42
        %p304 = pneg %p66
        %p305 = pneg %p63
        %p306 = pneg %p87
        %p307 = pneg %p84
        %p308 = pneg %p108
        %p309 = pneg %p105
        %p310 = pneg %p129
        %p311 = pneg %p126
        %p312 = pneg %p150
        %p313 = pneg %p147
        %p314 = pneg %p171
        %p315 = pneg %p168
        %p316 = pneg %p192
        %p317 = pneg %p189
        %p318 = pneg %p213
        %p319 = pneg %p210
        %p320 = pneg %p239
        %p321 = pneg %p236
        %s322 = sand.u32 %s226, 1
        %s323 = scalar_lea.sflag [#allocation5], %s322
        %s324 = sand.u32 %s226, 1
        %s325 = scalar_lea.vmem [#allocation4], %s324
        %p326 = scmp.lt.s32.totalorder %s24, 1
        %s327 = scalar_select %p326, %s24, 1
        %s328 = smul.addr %s327, 12
        %s329 = smul.addr %s328, 8
        %s330 = scalar_lea.vmem %s0, %s329
        %p333 = scmp.lt.u32.totalorder 2048, 8
        %p334 = pneg %p333
        // Predicated region
        $region57: #{convnet_forward.1} parent=55 // pred_check
          _
        $region58: #{convnet_forward.1} parent=55 // pred_check_branch
          %336 = sbr.rel (%p333) target = $region60
        $region59: #{convnet_forward.1} parent=55 // pred_region
          %s351 = sand.u32 2048, 7
          %p352 = scmp.eq.s32.totalorder %s351, 0
          // Predicated region
          $region72: #{convnet_forward.1} parent=59 // pred_check
            %p353 = pneg %p352
          $region73: #{convnet_forward.1} parent=59 // pred_check_branch
            %355 = sbr.rel (%p353) target = $region75
          $region74: #{convnet_forward.1} parent=59 // pred_region
            loop: start=0, step=1, limit=1
            $region76: #{convnet_forward.1} parent=74 // loop_pre_header
              _
            $region77: #{convnet_forward.1} parent=74 // loop_header
              %s357 = sphi 0, %s361
              %p358 = scmp.ge.s32.totalorder %s357, 1
              %s362 = sphi %s6, %s6
              %s363 = sphi [#allocation2], [#allocation2]
            $region78: #{convnet_forward.1} parent=74 // loop_header_branch
              %360 = sbr.rel (%p358) target = $region82
            $region79: #{convnet_forward.1} parent=74 // loop_body
              %v364 = vld [vmem:[%s362] sm:$0xff]
              %365 = vst [vmem:[%s363] sm:$0xff] %v364
              %v366 = vld [vmem:[%s362 + $0x8] sm:$0xff]
              %367 = vst [vmem:[%s363 + $0x8] sm:$0xff] %v366
              %v368 = vld [vmem:[%s362 + $0x10] sm:$0xff]
              %369 = vst [vmem:[%s363 + $0x10] sm:$0xff] %v368
              %v370 = vld [vmem:[%s362 + $0x18] sm:$0xff]
              %371 = vst [vmem:[%s363 + $0x18] sm:$0xff] %v370
              %v372 = vld [vmem:[%s362 + $0x20] sm:$0xff]
              %373 = vst [vmem:[%s363 + $0x20] sm:$0xff] %v372
              %v374 = vld [vmem:[%s362 + $0x28] sm:$0xff]
              %375 = vst [vmem:[%s363 + $0x28] sm:$0xff] %v374
              %v376 = vld [vmem:[%s362 + $0x30] sm:$0xff]
              %377 = vst [vmem:[%s363 + $0x30] sm:$0xff] %v376
              %v378 = vld [vmem:[%s362 + $0x38] sm:$0xff]
              %379 = vst [vmem:[%s363 + $0x38] sm:$0xff] %v378
              %v380 = vld [vmem:[%s362 + $0x40] sm:$0xff]
              %381 = vst [vmem:[%s363 + $0x40] sm:$0xff] %v380
              %v382 = vld [vmem:[%s362 + $0x48] sm:$0xff]
              %383 = vst [vmem:[%s363 + $0x48] sm:$0xff] %v382
              %v384 = vld [vmem:[%s362 + $0x50] sm:$0xff]
              %385 = vst [vmem:[%s363 + $0x50] sm:$0xff] %v384
              %v386 = vld [vmem:[%s362 + $0x58] sm:$0xff]
              %387 = vst [vmem:[%s363 + $0x58] sm:$0xff] %v386
              %v388 = vld [vmem:[%s362 + $0x60] sm:$0xff]
              %389 = vst [vmem:[%s363 + $0x60] sm:$0xff] %v388
              %v390 = vld [vmem:[%s362 + $0x68] sm:$0xff]
              %391 = vst [vmem:[%s363 + $0x68] sm:$0xff] %v390
              %v392 = vld [vmem:[%s362 + $0x70] sm:$0xff]
              %393 = vst [vmem:[%s363 + $0x70] sm:$0xff] %v392
              %v394 = vld [vmem:[%s362 + $0x78] sm:$0xff]
              %395 = vst [vmem:[%s363 + $0x78] sm:$0xff] %v394
              %v396 = vld [vmem:[%s362 + $0x80] sm:$0xff]
              %397 = vst [vmem:[%s363 + $0x80] sm:$0xff] %v396
              %v398 = vld [vmem:[%s362 + $0x88] sm:$0xff]
              %399 = vst [vmem:[%s363 + $0x88] sm:$0xff] %v398
              %v400 = vld [vmem:[%s362 + $0x90] sm:$0xff]
              %401 = vst [vmem:[%s363 + $0x90] sm:$0xff] %v400
              %v402 = vld [vmem:[%s362 + $0x98] sm:$0xff]
              %403 = vst [vmem:[%s363 + $0x98] sm:$0xff] %v402
              %v404 = vld [vmem:[%s362 + $0xa0] sm:$0xff]
              %405 = vst [vmem:[%s363 + $0xa0] sm:$0xff] %v404
              %v406 = vld [vmem:[%s362 + $0xa8] sm:$0xff]
              %407 = vst [vmem:[%s363 + $0xa8] sm:$0xff] %v406
              %v408 = vld [vmem:[%s362 + $0xb0] sm:$0xff]
              %409 = vst [vmem:[%s363 + $0xb0] sm:$0xff] %v408
              %v410 = vld [vmem:[%s362 + $0xb8] sm:$0xff]
              %411 = vst [vmem:[%s363 + $0xb8] sm:$0xff] %v410
              %v412 = vld [vmem:[%s362 + $0xc0] sm:$0xff]
              %413 = vst [vmem:[%s363 + $0xc0] sm:$0xff] %v412
              %v414 = vld [vmem:[%s362 + $0xc8] sm:$0xff]
              %415 = vst [vmem:[%s363 + $0xc8] sm:$0xff] %v414
              %v416 = vld [vmem:[%s362 + $0xd0] sm:$0xff]
              %417 = vst [vmem:[%s363 + $0xd0] sm:$0xff] %v416
              %v418 = vld [vmem:[%s362 + $0xd8] sm:$0xff]
              %419 = vst [vmem:[%s363 + $0xd8] sm:$0xff] %v418
              %v420 = vld [vmem:[%s362 + $0xe0] sm:$0xff]
              %421 = vst [vmem:[%s363 + $0xe0] sm:$0xff] %v420
              %v422 = vld [vmem:[%s362 + $0xe8] sm:$0xff]
              %423 = vst [vmem:[%s363 + $0xe8] sm:$0xff] %v422
              %v424 = vld [vmem:[%s362 + $0xf0] sm:$0xff]
              %425 = vst [vmem:[%s363 + $0xf0] sm:$0xff] %v424
              %v426 = vld [vmem:[%s362 + $0xf8] sm:$0xff]
              %427 = vst [vmem:[%s363 + $0xf8] sm:$0xff] %v426
              %v428 = vld [vmem:[%s362 + $0x100] sm:$0xff]
              %429 = vst [vmem:[%s363 + $0x100] sm:$0xff] %v428
              %v430 = vld [vmem:[%s362 + $0x108] sm:$0xff]
              %431 = vst [vmem:[%s363 + $0x108] sm:$0xff] %v430
              %v432 = vld [vmem:[%s362 + $0x110] sm:$0xff]
              %433 = vst [vmem:[%s363 + $0x110] sm:$0xff] %v432
              %v434 = vld [vmem:[%s362 + $0x118] sm:$0xff]
              %435 = vst [vmem:[%s363 + $0x118] sm:$0xff] %v434
              %v436 = vld [vmem:[%s362 + $0x120] sm:$0xff]
              %437 = vst [vmem:[%s363 + $0x120] sm:$0xff] %v436
              %v438 = vld [vmem:[%s362 + $0x128] sm:$0xff]
              %439 = vst [vmem:[%s363 + $0x128] sm:$0xff] %v438
              %v440 = vld [vmem:[%s362 + $0x130] sm:$0xff]
              %441 = vst [vmem:[%s363 + $0x130] sm:$0xff] %v440
              %v442 = vld [vmem:[%s362 + $0x138] sm:$0xff]
              %443 = vst [vmem:[%s363 + $0x138] sm:$0xff] %v442
              %v444 = vld [vmem:[%s362 + $0x140] sm:$0xff]
              %445 = vst [vmem:[%s363 + $0x140] sm:$0xff] %v444
              %v446 = vld [vmem:[%s362 + $0x148] sm:$0xff]
              %447 = vst [vmem:[%s363 + $0x148] sm:$0xff] %v446
              %v448 = vld [vmem:[%s362 + $0x150] sm:$0xff]
              %449 = vst [vmem:[%s363 + $0x150] sm:$0xff] %v448
              %v450 = vld [vmem:[%s362 + $0x158] sm:$0xff]
              %451 = vst [vmem:[%s363 + $0x158] sm:$0xff] %v450
              %v452 = vld [vmem:[%s362 + $0x160] sm:$0xff]
              %453 = vst [vmem:[%s363 + $0x160] sm:$0xff] %v452
              %v454 = vld [vmem:[%s362 + $0x168] sm:$0xff]
              %455 = vst [vmem:[%s363 + $0x168] sm:$0xff] %v454
              %v456 = vld [vmem:[%s362 + $0x170] sm:$0xff]
              %457 = vst [vmem:[%s363 + $0x170] sm:$0xff] %v456
              %v458 = vld [vmem:[%s362 + $0x178] sm:$0xff]
              %459 = vst [vmem:[%s363 + $0x178] sm:$0xff] %v458
              %v460 = vld [vmem:[%s362 + $0x180] sm:$0xff]
              %461 = vst [vmem:[%s363 + $0x180] sm:$0xff] %v460
              %v462 = vld [vmem:[%s362 + $0x188] sm:$0xff]
              %463 = vst [vmem:[%s363 + $0x188] sm:$0xff] %v462
              %v464 = vld [vmem:[%s362 + $0x190] sm:$0xff]
              %465 = vst [vmem:[%s363 + $0x190] sm:$0xff] %v464
              %v466 = vld [vmem:[%s362 + $0x198] sm:$0xff]
              %467 = vst [vmem:[%s363 + $0x198] sm:$0xff] %v466
              %v468 = vld [vmem:[%s362 + $0x1a0] sm:$0xff]
              %469 = vst [vmem:[%s363 + $0x1a0] sm:$0xff] %v468
              %v470 = vld [vmem:[%s362 + $0x1a8] sm:$0xff]
              %471 = vst [vmem:[%s363 + $0x1a8] sm:$0xff] %v470
              %v472 = vld [vmem:[%s362 + $0x1b0] sm:$0xff]
              %473 = vst [vmem:[%s363 + $0x1b0] sm:$0xff] %v472
              %v474 = vld [vmem:[%s362 + $0x1b8] sm:$0xff]
              %475 = vst [vmem:[%s363 + $0x1b8] sm:$0xff] %v474
              %v476 = vld [vmem:[%s362 + $0x1c0] sm:$0xff]
              %477 = vst [vmem:[%s363 + $0x1c0] sm:$0xff] %v476
              %v478 = vld [vmem:[%s362 + $0x1c8] sm:$0xff]
              %479 = vst [vmem:[%s363 + $0x1c8] sm:$0xff] %v478
              %v480 = vld [vmem:[%s362 + $0x1d0] sm:$0xff]
              %481 = vst [vmem:[%s363 + $0x1d0] sm:$0xff] %v480
              %v482 = vld [vmem:[%s362 + $0x1d8] sm:$0xff]
              %483 = vst [vmem:[%s363 + $0x1d8] sm:$0xff] %v482
              %v484 = vld [vmem:[%s362 + $0x1e0] sm:$0xff]
              %485 = vst [vmem:[%s363 + $0x1e0] sm:$0xff] %v484
              %v486 = vld [vmem:[%s362 + $0x1e8] sm:$0xff]
              %487 = vst [vmem:[%s363 + $0x1e8] sm:$0xff] %v486
              %v488 = vld [vmem:[%s362 + $0x1f0] sm:$0xff]
              %489 = vst [vmem:[%s363 + $0x1f0] sm:$0xff] %v488
              %v490 = vld [vmem:[%s362 + $0x1f8] sm:$0xff]
              %491 = vst [vmem:[%s363 + $0x1f8] sm:$0xff] %v490
              %v492 = vld [vmem:[%s362 + $0x200] sm:$0xff]
              %493 = vst [vmem:[%s363 + $0x200] sm:$0xff] %v492
              %v494 = vld [vmem:[%s362 + $0x208] sm:$0xff]
              %495 = vst [vmem:[%s363 + $0x208] sm:$0xff] %v494
              %v496 = vld [vmem:[%s362 + $0x210] sm:$0xff]
              %497 = vst [vmem:[%s363 + $0x210] sm:$0xff] %v496
              %v498 = vld [vmem:[%s362 + $0x218] sm:$0xff]
              %499 = vst [vmem:[%s363 + $0x218] sm:$0xff] %v498
              %v500 = vld [vmem:[%s362 + $0x220] sm:$0xff]
              %501 = vst [vmem:[%s363 + $0x220] sm:$0xff] %v500
              %v502 = vld [vmem:[%s362 + $0x228] sm:$0xff]
              %503 = vst [vmem:[%s363 + $0x228] sm:$0xff] %v502
              %v504 = vld [vmem:[%s362 + $0x230] sm:$0xff]
              %505 = vst [vmem:[%s363 + $0x230] sm:$0xff] %v504
              %v506 = vld [vmem:[%s362 + $0x238] sm:$0xff]
              %507 = vst [vmem:[%s363 + $0x238] sm:$0xff] %v506
              %v508 = vld [vmem:[%s362 + $0x240] sm:$0xff]
              %509 = vst [vmem:[%s363 + $0x240] sm:$0xff] %v508
              %v510 = vld [vmem:[%s362 + $0x248] sm:$0xff]
              %511 = vst [vmem:[%s363 + $0x248] sm:$0xff] %v510
              %v512 = vld [vmem:[%s362 + $0x250] sm:$0xff]
              %513 = vst [vmem:[%s363 + $0x250] sm:$0xff] %v512
              %v514 = vld [vmem:[%s362 + $0x258] sm:$0xff]
              %515 = vst [vmem:[%s363 + $0x258] sm:$0xff] %v514
              %v516 = vld [vmem:[%s362 + $0x260] sm:$0xff]
              %517 = vst [vmem:[%s363 + $0x260] sm:$0xff] %v516
              %v518 = vld [vmem:[%s362 + $0x268] sm:$0xff]
              %519 = vst [vmem:[%s363 + $0x268] sm:$0xff] %v518
              %v520 = vld [vmem:[%s362 + $0x270] sm:$0xff]
              %521 = vst [vmem:[%s363 + $0x270] sm:$0xff] %v520
              %v522 = vld [vmem:[%s362 + $0x278] sm:$0xff]
              %523 = vst [vmem:[%s363 + $0x278] sm:$0xff] %v522
              %v524 = vld [vmem:[%s362 + $0x280] sm:$0xff]
              %525 = vst [vmem:[%s363 + $0x280] sm:$0xff] %v524
              %v526 = vld [vmem:[%s362 + $0x288] sm:$0xff]
              %527 = vst [vmem:[%s363 + $0x288] sm:$0xff] %v526
              %v528 = vld [vmem:[%s362 + $0x290] sm:$0xff]
              %529 = vst [vmem:[%s363 + $0x290] sm:$0xff] %v528
              %v530 = vld [vmem:[%s362 + $0x298] sm:$0xff]
              %531 = vst [vmem:[%s363 + $0x298] sm:$0xff] %v530
              %v532 = vld [vmem:[%s362 + $0x2a0] sm:$0xff]
              %533 = vst [vmem:[%s363 + $0x2a0] sm:$0xff] %v532
              %v534 = vld [vmem:[%s362 + $0x2a8] sm:$0xff]
              %535 = vst [vmem:[%s363 + $0x2a8] sm:$0xff] %v534
              %v536 = vld [vmem:[%s362 + $0x2b0] sm:$0xff]
              %537 = vst [vmem:[%s363 + $0x2b0] sm:$0xff] %v536
              %v538 = vld [vmem:[%s362 + $0x2b8] sm:$0xff]
              %539 = vst [vmem:[%s363 + $0x2b8] sm:$0xff] %v538
              %v540 = vld [vmem:[%s362 + $0x2c0] sm:$0xff]
              %541 = vst [vmem:[%s363 + $0x2c0] sm:$0xff] %v540
              %v542 = vld [vmem:[%s362 + $0x2c8] sm:$0xff]
              %543 = vst [vmem:[%s363 + $0x2c8] sm:$0xff] %v542
              %v544 = vld [vmem:[%s362 + $0x2d0] sm:$0xff]
              %545 = vst [vmem:[%s363 + $0x2d0] sm:$0xff] %v544
              %v546 = vld [vmem:[%s362 + $0x2d8] sm:$0xff]
              %547 = vst [vmem:[%s363 + $0x2d8] sm:$0xff] %v546
              %v548 = vld [vmem:[%s362 + $0x2e0] sm:$0xff]
              %549 = vst [vmem:[%s363 + $0x2e0] sm:$0xff] %v548
              %v550 = vld [vmem:[%s362 + $0x2e8] sm:$0xff]
              %551 = vst [vmem:[%s363 + $0x2e8] sm:$0xff] %v550
              %v552 = vld [vmem:[%s362 + $0x2f0] sm:$0xff]
              %553 = vst [vmem:[%s363 + $0x2f0] sm:$0xff] %v552
              %v554 = vld [vmem:[%s362 + $0x2f8] sm:$0xff]
              %555 = vst [vmem:[%s363 + $0x2f8] sm:$0xff] %v554
              %v556 = vld [vmem:[%s362 + $0x300] sm:$0xff]
              %557 = vst [vmem:[%s363 + $0x300] sm:$0xff] %v556
              %v558 = vld [vmem:[%s362 + $0x308] sm:$0xff]
              %559 = vst [vmem:[%s363 + $0x308] sm:$0xff] %v558
              %v560 = vld [vmem:[%s362 + $0x310] sm:$0xff]
              %561 = vst [vmem:[%s363 + $0x310] sm:$0xff] %v560
              %v562 = vld [vmem:[%s362 + $0x318] sm:$0xff]
              %563 = vst [vmem:[%s363 + $0x318] sm:$0xff] %v562
              %v564 = vld [vmem:[%s362 + $0x320] sm:$0xff]
              %565 = vst [vmem:[%s363 + $0x320] sm:$0xff] %v564
              %v566 = vld [vmem:[%s362 + $0x328] sm:$0xff]
              %567 = vst [vmem:[%s363 + $0x328] sm:$0xff] %v566
              %v568 = vld [vmem:[%s362 + $0x330] sm:$0xff]
              %569 = vst [vmem:[%s363 + $0x330] sm:$0xff] %v568
              %v570 = vld [vmem:[%s362 + $0x338] sm:$0xff]
              %571 = vst [vmem:[%s363 + $0x338] sm:$0xff] %v570
              %v572 = vld [vmem:[%s362 + $0x340] sm:$0xff]
              %573 = vst [vmem:[%s363 + $0x340] sm:$0xff] %v572
              %v574 = vld [vmem:[%s362 + $0x348] sm:$0xff]
              %575 = vst [vmem:[%s363 + $0x348] sm:$0xff] %v574
              %v576 = vld [vmem:[%s362 + $0x350] sm:$0xff]
              %577 = vst [vmem:[%s363 + $0x350] sm:$0xff] %v576
              %v578 = vld [vmem:[%s362 + $0x358] sm:$0xff]
              %579 = vst [vmem:[%s363 + $0x358] sm:$0xff] %v578
              %v580 = vld [vmem:[%s362 + $0x360] sm:$0xff]
              %581 = vst [vmem:[%s363 + $0x360] sm:$0xff] %v580
              %v582 = vld [vmem:[%s362 + $0x368] sm:$0xff]
              %583 = vst [vmem:[%s363 + $0x368] sm:$0xff] %v582
              %v584 = vld [vmem:[%s362 + $0x370] sm:$0xff]
              %585 = vst [vmem:[%s363 + $0x370] sm:$0xff] %v584
              %v586 = vld [vmem:[%s362 + $0x378] sm:$0xff]
              %587 = vst [vmem:[%s363 + $0x378] sm:$0xff] %v586
              %v588 = vld [vmem:[%s362 + $0x380] sm:$0xff]
              %589 = vst [vmem:[%s363 + $0x380] sm:$0xff] %v588
              %v590 = vld [vmem:[%s362 + $0x388] sm:$0xff]
              %591 = vst [vmem:[%s363 + $0x388] sm:$0xff] %v590
              %v592 = vld [vmem:[%s362 + $0x390] sm:$0xff]
              %593 = vst [vmem:[%s363 + $0x390] sm:$0xff] %v592
              %v594 = vld [vmem:[%s362 + $0x398] sm:$0xff]
              %595 = vst [vmem:[%s363 + $0x398] sm:$0xff] %v594
              %v596 = vld [vmem:[%s362 + $0x3a0] sm:$0xff]
              %597 = vst [vmem:[%s363 + $0x3a0] sm:$0xff] %v596
              %v598 = vld [vmem:[%s362 + $0x3a8] sm:$0xff]
              %599 = vst [vmem:[%s363 + $0x3a8] sm:$0xff] %v598
              %v600 = vld [vmem:[%s362 + $0x3b0] sm:$0xff]
              %601 = vst [vmem:[%s363 + $0x3b0] sm:$0xff] %v600
              %v602 = vld [vmem:[%s362 + $0x3b8] sm:$0xff]
              %603 = vst [vmem:[%s363 + $0x3b8] sm:$0xff] %v602
              %v604 = vld [vmem:[%s362 + $0x3c0] sm:$0xff]
              %605 = vst [vmem:[%s363 + $0x3c0] sm:$0xff] %v604
              %v606 = vld [vmem:[%s362 + $0x3c8] sm:$0xff]
              %607 = vst [vmem:[%s363 + $0x3c8] sm:$0xff] %v606
              %v608 = vld [vmem:[%s362 + $0x3d0] sm:$0xff]
              %609 = vst [vmem:[%s363 + $0x3d0] sm:$0xff] %v608
              %v610 = vld [vmem:[%s362 + $0x3d8] sm:$0xff]
              %611 = vst [vmem:[%s363 + $0x3d8] sm:$0xff] %v610
              %v612 = vld [vmem:[%s362 + $0x3e0] sm:$0xff]
              %613 = vst [vmem:[%s363 + $0x3e0] sm:$0xff] %v612
              %v614 = vld [vmem:[%s362 + $0x3e8] sm:$0xff]
              %615 = vst [vmem:[%s363 + $0x3e8] sm:$0xff] %v614
              %v616 = vld [vmem:[%s362 + $0x3f0] sm:$0xff]
              %617 = vst [vmem:[%s363 + $0x3f0] sm:$0xff] %v616
              %v618 = vld [vmem:[%s362 + $0x3f8] sm:$0xff]
              %619 = vst [vmem:[%s363 + $0x3f8] sm:$0xff] %v618
              %v620 = vld [vmem:[%s362 + $0x400] sm:$0xff]
              %621 = vst [vmem:[%s363 + $0x400] sm:$0xff] %v620
              %v622 = vld [vmem:[%s362 + $0x408] sm:$0xff]
              %623 = vst [vmem:[%s363 + $0x408] sm:$0xff] %v622
              %v624 = vld [vmem:[%s362 + $0x410] sm:$0xff]
              %625 = vst [vmem:[%s363 + $0x410] sm:$0xff] %v624
              %v626 = vld [vmem:[%s362 + $0x418] sm:$0xff]
              %627 = vst [vmem:[%s363 + $0x418] sm:$0xff] %v626
              %v628 = vld [vmem:[%s362 + $0x420] sm:$0xff]
              %629 = vst [vmem:[%s363 + $0x420] sm:$0xff] %v628
              %v630 = vld [vmem:[%s362 + $0x428] sm:$0xff]
              %631 = vst [vmem:[%s363 + $0x428] sm:$0xff] %v630
              %v632 = vld [vmem:[%s362 + $0x430] sm:$0xff]
              %633 = vst [vmem:[%s363 + $0x430] sm:$0xff] %v632
              %v634 = vld [vmem:[%s362 + $0x438] sm:$0xff]
              %635 = vst [vmem:[%s363 + $0x438] sm:$0xff] %v634
              %v636 = vld [vmem:[%s362 + $0x440] sm:$0xff]
              %637 = vst [vmem:[%s363 + $0x440] sm:$0xff] %v636
              %v638 = vld [vmem:[%s362 + $0x448] sm:$0xff]
              %639 = vst [vmem:[%s363 + $0x448] sm:$0xff] %v638
              %v640 = vld [vmem:[%s362 + $0x450] sm:$0xff]
              %641 = vst [vmem:[%s363 + $0x450] sm:$0xff] %v640
              %v642 = vld [vmem:[%s362 + $0x458] sm:$0xff]
              %643 = vst [vmem:[%s363 + $0x458] sm:$0xff] %v642
              %v644 = vld [vmem:[%s362 + $0x460] sm:$0xff]
              %645 = vst [vmem:[%s363 + $0x460] sm:$0xff] %v644
              %v646 = vld [vmem:[%s362 + $0x468] sm:$0xff]
              %647 = vst [vmem:[%s363 + $0x468] sm:$0xff] %v646
              %v648 = vld [vmem:[%s362 + $0x470] sm:$0xff]
              %649 = vst [vmem:[%s363 + $0x470] sm:$0xff] %v648
              %v650 = vld [vmem:[%s362 + $0x478] sm:$0xff]
              %651 = vst [vmem:[%s363 + $0x478] sm:$0xff] %v650
              %v652 = vld [vmem:[%s362 + $0x480] sm:$0xff]
              %653 = vst [vmem:[%s363 + $0x480] sm:$0xff] %v652
              %v654 = vld [vmem:[%s362 + $0x488] sm:$0xff]
              %655 = vst [vmem:[%s363 + $0x488] sm:$0xff] %v654
              %v656 = vld [vmem:[%s362 + $0x490] sm:$0xff]
              %657 = vst [vmem:[%s363 + $0x490] sm:$0xff] %v656
              %v658 = vld [vmem:[%s362 + $0x498] sm:$0xff]
              %659 = vst [vmem:[%s363 + $0x498] sm:$0xff] %v658
              %v660 = vld [vmem:[%s362 + $0x4a0] sm:$0xff]
              %661 = vst [vmem:[%s363 + $0x4a0] sm:$0xff] %v660
              %v662 = vld [vmem:[%s362 + $0x4a8] sm:$0xff]
              %663 = vst [vmem:[%s363 + $0x4a8] sm:$0xff] %v662
              %v664 = vld [vmem:[%s362 + $0x4b0] sm:$0xff]
              %665 = vst [vmem:[%s363 + $0x4b0] sm:$0xff] %v664
              %v666 = vld [vmem:[%s362 + $0x4b8] sm:$0xff]
              %667 = vst [vmem:[%s363 + $0x4b8] sm:$0xff] %v666
              %v668 = vld [vmem:[%s362 + $0x4c0] sm:$0xff]
              %669 = vst [vmem:[%s363 + $0x4c0] sm:$0xff] %v668
              %v670 = vld [vmem:[%s362 + $0x4c8] sm:$0xff]
              %671 = vst [vmem:[%s363 + $0x4c8] sm:$0xff] %v670
              %v672 = vld [vmem:[%s362 + $0x4d0] sm:$0xff]
              %673 = vst [vmem:[%s363 + $0x4d0] sm:$0xff] %v672
              %v674 = vld [vmem:[%s362 + $0x4d8] sm:$0xff]
              %675 = vst [vmem:[%s363 + $0x4d8] sm:$0xff] %v674
              %v676 = vld [vmem:[%s362 + $0x4e0] sm:$0xff]
              %677 = vst [vmem:[%s363 + $0x4e0] sm:$0xff] %v676
              %v678 = vld [vmem:[%s362 + $0x4e8] sm:$0xff]
              %679 = vst [vmem:[%s363 + $0x4e8] sm:$0xff] %v678
              %v680 = vld [vmem:[%s362 + $0x4f0] sm:$0xff]
              %681 = vst [vmem:[%s363 + $0x4f0] sm:$0xff] %v680
              %v682 = vld [vmem:[%s362 + $0x4f8] sm:$0xff]
              %683 = vst [vmem:[%s363 + $0x4f8] sm:$0xff] %v682
              %v684 = vld [vmem:[%s362 + $0x500] sm:$0xff]
              %685 = vst [vmem:[%s363 + $0x500] sm:$0xff] %v684
              %v686 = vld [vmem:[%s362 + $0x508] sm:$0xff]
              %687 = vst [vmem:[%s363 + $0x508] sm:$0xff] %v686
              %v688 = vld [vmem:[%s362 + $0x510] sm:$0xff]
              %689 = vst [vmem:[%s363 + $0x510] sm:$0xff] %v688
              %v690 = vld [vmem:[%s362 + $0x518] sm:$0xff]
              %691 = vst [vmem:[%s363 + $0x518] sm:$0xff] %v690
              %v692 = vld [vmem:[%s362 + $0x520] sm:$0xff]
              %693 = vst [vmem:[%s363 + $0x520] sm:$0xff] %v692
              %v694 = vld [vmem:[%s362 + $0x528] sm:$0xff]
              %695 = vst [vmem:[%s363 + $0x528] sm:$0xff] %v694
              %v696 = vld [vmem:[%s362 + $0x530] sm:$0xff]
              %697 = vst [vmem:[%s363 + $0x530] sm:$0xff] %v696
              %v698 = vld [vmem:[%s362 + $0x538] sm:$0xff]
              %699 = vst [vmem:[%s363 + $0x538] sm:$0xff] %v698
              %v700 = vld [vmem:[%s362 + $0x540] sm:$0xff]
              %701 = vst [vmem:[%s363 + $0x540] sm:$0xff] %v700
              %v702 = vld [vmem:[%s362 + $0x548] sm:$0xff]
              %703 = vst [vmem:[%s363 + $0x548] sm:$0xff] %v702
              %v704 = vld [vmem:[%s362 + $0x550] sm:$0xff]
              %705 = vst [vmem:[%s363 + $0x550] sm:$0xff] %v704
              %v706 = vld [vmem:[%s362 + $0x558] sm:$0xff]
              %707 = vst [vmem:[%s363 + $0x558] sm:$0xff] %v706
              %v708 = vld [vmem:[%s362 + $0x560] sm:$0xff]
              %709 = vst [vmem:[%s363 + $0x560] sm:$0xff] %v708
              %v710 = vld [vmem:[%s362 + $0x568] sm:$0xff]
              %711 = vst [vmem:[%s363 + $0x568] sm:$0xff] %v710
              %v712 = vld [vmem:[%s362 + $0x570] sm:$0xff]
              %713 = vst [vmem:[%s363 + $0x570] sm:$0xff] %v712
              %v714 = vld [vmem:[%s362 + $0x578] sm:$0xff]
              %715 = vst [vmem:[%s363 + $0x578] sm:$0xff] %v714
              %v716 = vld [vmem:[%s362 + $0x580] sm:$0xff]
              %717 = vst [vmem:[%s363 + $0x580] sm:$0xff] %v716
              %v718 = vld [vmem:[%s362 + $0x588] sm:$0xff]
              %719 = vst [vmem:[%s363 + $0x588] sm:$0xff] %v718
              %v720 = vld [vmem:[%s362 + $0x590] sm:$0xff]
              %721 = vst [vmem:[%s363 + $0x590] sm:$0xff] %v720
              %v722 = vld [vmem:[%s362 + $0x598] sm:$0xff]
              %723 = vst [vmem:[%s363 + $0x598] sm:$0xff] %v722
              %v724 = vld [vmem:[%s362 + $0x5a0] sm:$0xff]
              %725 = vst [vmem:[%s363 + $0x5a0] sm:$0xff] %v724
              %v726 = vld [vmem:[%s362 + $0x5a8] sm:$0xff]
              %727 = vst [vmem:[%s363 + $0x5a8] sm:$0xff] %v726
              %v728 = vld [vmem:[%s362 + $0x5b0] sm:$0xff]
              %729 = vst [vmem:[%s363 + $0x5b0] sm:$0xff] %v728
              %v730 = vld [vmem:[%s362 + $0x5b8] sm:$0xff]
              %731 = vst [vmem:[%s363 + $0x5b8] sm:$0xff] %v730
              %v732 = vld [vmem:[%s362 + $0x5c0] sm:$0xff]
              %733 = vst [vmem:[%s363 + $0x5c0] sm:$0xff] %v732
              %v734 = vld [vmem:[%s362 + $0x5c8] sm:$0xff]
              %735 = vst [vmem:[%s363 + $0x5c8] sm:$0xff] %v734
              %v736 = vld [vmem:[%s362 + $0x5d0] sm:$0xff]
              %737 = vst [vmem:[%s363 + $0x5d0] sm:$0xff] %v736
              %v738 = vld [vmem:[%s362 + $0x5d8] sm:$0xff]
              %739 = vst [vmem:[%s363 + $0x5d8] sm:$0xff] %v738
              %v740 = vld [vmem:[%s362 + $0x5e0] sm:$0xff]
              %741 = vst [vmem:[%s363 + $0x5e0] sm:$0xff] %v740
              %v742 = vld [vmem:[%s362 + $0x5e8] sm:$0xff]
              %743 = vst [vmem:[%s363 + $0x5e8] sm:$0xff] %v742
              %v744 = vld [vmem:[%s362 + $0x5f0] sm:$0xff]
              %745 = vst [vmem:[%s363 + $0x5f0] sm:$0xff] %v744
              %v746 = vld [vmem:[%s362 + $0x5f8] sm:$0xff]
              %747 = vst [vmem:[%s363 + $0x5f8] sm:$0xff] %v746
              %v748 = vld [vmem:[%s362 + $0x600] sm:$0xff]
              %749 = vst [vmem:[%s363 + $0x600] sm:$0xff] %v748
              %v750 = vld [vmem:[%s362 + $0x608] sm:$0xff]
              %751 = vst [vmem:[%s363 + $0x608] sm:$0xff] %v750
              %v752 = vld [vmem:[%s362 + $0x610] sm:$0xff]
              %753 = vst [vmem:[%s363 + $0x610] sm:$0xff] %v752
              %v754 = vld [vmem:[%s362 + $0x618] sm:$0xff]
              %755 = vst [vmem:[%s363 + $0x618] sm:$0xff] %v754
              %v756 = vld [vmem:[%s362 + $0x620] sm:$0xff]
              %757 = vst [vmem:[%s363 + $0x620] sm:$0xff] %v756
              %v758 = vld [vmem:[%s362 + $0x628] sm:$0xff]
              %759 = vst [vmem:[%s363 + $0x628] sm:$0xff] %v758
              %v760 = vld [vmem:[%s362 + $0x630] sm:$0xff]
              %761 = vst [vmem:[%s363 + $0x630] sm:$0xff] %v760
              %v762 = vld [vmem:[%s362 + $0x638] sm:$0xff]
              %763 = vst [vmem:[%s363 + $0x638] sm:$0xff] %v762
              %v764 = vld [vmem:[%s362 + $0x640] sm:$0xff]
              %765 = vst [vmem:[%s363 + $0x640] sm:$0xff] %v764
              %v766 = vld [vmem:[%s362 + $0x648] sm:$0xff]
              %767 = vst [vmem:[%s363 + $0x648] sm:$0xff] %v766
              %v768 = vld [vmem:[%s362 + $0x650] sm:$0xff]
              %769 = vst [vmem:[%s363 + $0x650] sm:$0xff] %v768
              %v770 = vld [vmem:[%s362 + $0x658] sm:$0xff]
              %771 = vst [vmem:[%s363 + $0x658] sm:$0xff] %v770
              %v772 = vld [vmem:[%s362 + $0x660] sm:$0xff]
              %773 = vst [vmem:[%s363 + $0x660] sm:$0xff] %v772
              %v774 = vld [vmem:[%s362 + $0x668] sm:$0xff]
              %775 = vst [vmem:[%s363 + $0x668] sm:$0xff] %v774
              %v776 = vld [vmem:[%s362 + $0x670] sm:$0xff]
              %777 = vst [vmem:[%s363 + $0x670] sm:$0xff] %v776
              %v778 = vld [vmem:[%s362 + $0x678] sm:$0xff]
              %779 = vst [vmem:[%s363 + $0x678] sm:$0xff] %v778
              %v780 = vld [vmem:[%s362 + $0x680] sm:$0xff]
              %781 = vst [vmem:[%s363 + $0x680] sm:$0xff] %v780
              %v782 = vld [vmem:[%s362 + $0x688] sm:$0xff]
              %783 = vst [vmem:[%s363 + $0x688] sm:$0xff] %v782
              %v784 = vld [vmem:[%s362 + $0x690] sm:$0xff]
              %785 = vst [vmem:[%s363 + $0x690] sm:$0xff] %v784
              %v786 = vld [vmem:[%s362 + $0x698] sm:$0xff]
              %787 = vst [vmem:[%s363 + $0x698] sm:$0xff] %v786
              %v788 = vld [vmem:[%s362 + $0x6a0] sm:$0xff]
              %789 = vst [vmem:[%s363 + $0x6a0] sm:$0xff] %v788
              %v790 = vld [vmem:[%s362 + $0x6a8] sm:$0xff]
              %791 = vst [vmem:[%s363 + $0x6a8] sm:$0xff] %v790
              %v792 = vld [vmem:[%s362 + $0x6b0] sm:$0xff]
              %793 = vst [vmem:[%s363 + $0x6b0] sm:$0xff] %v792
              %v794 = vld [vmem:[%s362 + $0x6b8] sm:$0xff]
              %795 = vst [vmem:[%s363 + $0x6b8] sm:$0xff] %v794
              %v796 = vld [vmem:[%s362 + $0x6c0] sm:$0xff]
              %797 = vst [vmem:[%s363 + $0x6c0] sm:$0xff] %v796
              %v798 = vld [vmem:[%s362 + $0x6c8] sm:$0xff]
              %799 = vst [vmem:[%s363 + $0x6c8] sm:$0xff] %v798
              %v800 = vld [vmem:[%s362 + $0x6d0] sm:$0xff]
              %801 = vst [vmem:[%s363 + $0x6d0] sm:$0xff] %v800
              %v802 = vld [vmem:[%s362 + $0x6d8] sm:$0xff]
              %803 = vst [vmem:[%s363 + $0x6d8] sm:$0xff] %v802
              %v804 = vld [vmem:[%s362 + $0x6e0] sm:$0xff]
              %805 = vst [vmem:[%s363 + $0x6e0] sm:$0xff] %v804
              %v806 = vld [vmem:[%s362 + $0x6e8] sm:$0xff]
              %807 = vst [vmem:[%s363 + $0x6e8] sm:$0xff] %v806
              %v808 = vld [vmem:[%s362 + $0x6f0] sm:$0xff]
              %809 = vst [vmem:[%s363 + $0x6f0] sm:$0xff] %v808
              %v810 = vld [vmem:[%s362 + $0x6f8] sm:$0xff]
              %811 = vst [vmem:[%s363 + $0x6f8] sm:$0xff] %v810
              %v812 = vld [vmem:[%s362 + $0x700] sm:$0xff]
              %813 = vst [vmem:[%s363 + $0x700] sm:$0xff] %v812
              %v814 = vld [vmem:[%s362 + $0x708] sm:$0xff]
              %815 = vst [vmem:[%s363 + $0x708] sm:$0xff] %v814
              %v816 = vld [vmem:[%s362 + $0x710] sm:$0xff]
              %817 = vst [vmem:[%s363 + $0x710] sm:$0xff] %v816
              %v818 = vld [vmem:[%s362 + $0x718] sm:$0xff]
              %819 = vst [vmem:[%s363 + $0x718] sm:$0xff] %v818
              %v820 = vld [vmem:[%s362 + $0x720] sm:$0xff]
              %821 = vst [vmem:[%s363 + $0x720] sm:$0xff] %v820
              %v822 = vld [vmem:[%s362 + $0x728] sm:$0xff]
              %823 = vst [vmem:[%s363 + $0x728] sm:$0xff] %v822
              %v824 = vld [vmem:[%s362 + $0x730] sm:$0xff]
              %825 = vst [vmem:[%s363 + $0x730] sm:$0xff] %v824
              %v826 = vld [vmem:[%s362 + $0x738] sm:$0xff]
              %827 = vst [vmem:[%s363 + $0x738] sm:$0xff] %v826
              %v828 = vld [vmem:[%s362 + $0x740] sm:$0xff]
              %829 = vst [vmem:[%s363 + $0x740] sm:$0xff] %v828
              %v830 = vld [vmem:[%s362 + $0x748] sm:$0xff]
              %831 = vst [vmem:[%s363 + $0x748] sm:$0xff] %v830
              %v832 = vld [vmem:[%s362 + $0x750] sm:$0xff]
              %833 = vst [vmem:[%s363 + $0x750] sm:$0xff] %v832
              %v834 = vld [vmem:[%s362 + $0x758] sm:$0xff]
              %835 = vst [vmem:[%s363 + $0x758] sm:$0xff] %v834
              %v836 = vld [vmem:[%s362 + $0x760] sm:$0xff]
              %837 = vst [vmem:[%s363 + $0x760] sm:$0xff] %v836
              %v838 = vld [vmem:[%s362 + $0x768] sm:$0xff]
              %839 = vst [vmem:[%s363 + $0x768] sm:$0xff] %v838
              %v840 = vld [vmem:[%s362 + $0x770] sm:$0xff]
              %841 = vst [vmem:[%s363 + $0x770] sm:$0xff] %v840
              %v842 = vld [vmem:[%s362 + $0x778] sm:$0xff]
              %843 = vst [vmem:[%s363 + $0x778] sm:$0xff] %v842
              %v844 = vld [vmem:[%s362 + $0x780] sm:$0xff]
              %845 = vst [vmem:[%s363 + $0x780] sm:$0xff] %v844
              %v846 = vld [vmem:[%s362 + $0x788] sm:$0xff]
              %847 = vst [vmem:[%s363 + $0x788] sm:$0xff] %v846
              %v848 = vld [vmem:[%s362 + $0x790] sm:$0xff]
              %849 = vst [vmem:[%s363 + $0x790] sm:$0xff] %v848
              %v850 = vld [vmem:[%s362 + $0x798] sm:$0xff]
              %851 = vst [vmem:[%s363 + $0x798] sm:$0xff] %v850
              %v852 = vld [vmem:[%s362 + $0x7a0] sm:$0xff]
              %853 = vst [vmem:[%s363 + $0x7a0] sm:$0xff] %v852
              %v854 = vld [vmem:[%s362 + $0x7a8] sm:$0xff]
              %855 = vst [vmem:[%s363 + $0x7a8] sm:$0xff] %v854
              %v856 = vld [vmem:[%s362 + $0x7b0] sm:$0xff]
              %857 = vst [vmem:[%s363 + $0x7b0] sm:$0xff] %v856
              %v858 = vld [vmem:[%s362 + $0x7b8] sm:$0xff]
              %859 = vst [vmem:[%s363 + $0x7b8] sm:$0xff] %v858
              %v860 = vld [vmem:[%s362 + $0x7c0] sm:$0xff]
              %861 = vst [vmem:[%s363 + $0x7c0] sm:$0xff] %v860
              %v862 = vld [vmem:[%s362 + $0x7c8] sm:$0xff]
              %863 = vst [vmem:[%s363 + $0x7c8] sm:$0xff] %v862
              %v864 = vld [vmem:[%s362 + $0x7d0] sm:$0xff]
              %865 = vst [vmem:[%s363 + $0x7d0] sm:$0xff] %v864
              %v866 = vld [vmem:[%s362 + $0x7d8] sm:$0xff]
              %867 = vst [vmem:[%s363 + $0x7d8] sm:$0xff] %v866
              %v868 = vld [vmem:[%s362 + $0x7e0] sm:$0xff]
              %869 = vst [vmem:[%s363 + $0x7e0] sm:$0xff] %v868
              %v870 = vld [vmem:[%s362 + $0x7e8] sm:$0xff]
              %871 = vst [vmem:[%s363 + $0x7e8] sm:$0xff] %v870
              %v872 = vld [vmem:[%s362 + $0x7f0] sm:$0xff]
              %873 = vst [vmem:[%s363 + $0x7f0] sm:$0xff] %v872
              %v874 = vld [vmem:[%s362 + $0x7f8] sm:$0xff]
              %875 = vst [vmem:[%s363 + $0x7f8] sm:$0xff] %v874
            $region80: #{convnet_forward.1} parent=74 // loop_footer
              %s361 = sadd.s32 1, %s357
            $region81: #{convnet_forward.1} parent=74 // loop_footer_branch
              %356 = sbr.rel target = $region77
            $region82: #{convnet_forward.1} parent=74 // loop_exit
              _
          $region75: #{convnet_forward.1} parent=59 // pred_fallthru
            _
          %p876 = pneg %p352
          // Predicated region
          $region83: #{convnet_forward.1} parent=59 // pred_check
            _
          $region84: #{convnet_forward.1} parent=59 // pred_check_branch
            %878 = sbr.rel (%p352) target = $region86
          $region85: #{convnet_forward.1} parent=59 // pred_region
            %s879 = sand.u32 2048, 7
          $region86: #{convnet_forward.1} parent=59 // pred_fallthru
            _
        $region60: #{convnet_forward.1} parent=55 // pred_fallthru
          _
        // Predicated region
        $region61: #{convnet_forward.1} parent=55 // pred_check
          %p337 = pneg %p333
        $region62: #{convnet_forward.1} parent=55 // pred_check_branch
          %339 = sbr.rel (%p337) target = $region64
        $region63: #{convnet_forward.1} parent=55 // pred_region
          %s340 = sshllo.u32 0, 2048
          loop: start=0, step=1, limit=1
          $region65: #{convnet_forward.1} parent=63 // loop_pre_header
            _
          $region66: #{convnet_forward.1} parent=63 // loop_header
            %s342 = sphi 0, %s346
            %p343 = scmp.ge.s32.totalorder %s342, 1
            %s347 = sphi %s6, %s6
            %s348 = sphi [#allocation2], [#allocation2]
          $region67: #{convnet_forward.1} parent=63 // loop_header_branch
            %345 = sbr.rel (%p343) target = $region71
          $region68: #{convnet_forward.1} parent=63 // loop_body
            %v349 = vld [vmem:[%s347] sm:%s340]
            %350 = vst [vmem:[%s348] sm:%s340] %v349
          $region69: #{convnet_forward.1} parent=63 // loop_footer
            %s346 = sadd.s32 1, %s342
          $region70: #{convnet_forward.1} parent=63 // loop_footer_branch
            %341 = sbr.rel target = $region66
          $region71: #{convnet_forward.1} parent=63 // loop_exit
            _
        $region64: #{convnet_forward.1} parent=55 // pred_fallthru
          _
        // Predicated region
        $region87: #{convnet_forward.1} parent=55 // pred_check
          _
        $region88: #{convnet_forward.1} parent=55 // pred_check_branch
          %882 = sbr.rel (0) target = $region90
        $region89: #{convnet_forward.1} parent=55 // pred_region
          %883 = vsyncadd [#allocation3], 32768
        $region90: #{convnet_forward.1} parent=55 // pred_fallthru
          _
        %v884 = vld [vmem:[%s2] sm:$0xff]
        %v885 = vld [vmem:[%s330] sm:$0xff]
        %v886 = vld [vmem:[%s330 + $0x8] sm:$0xff]
        %v887 = vld [vmem:[%s330 + $0x10] sm:$0xff]
        %v888 = vld [vmem:[%s330 + $0x18] sm:$0xff]
        %v889 = vld [vmem:[%s330 + $0x20] sm:$0xff]
        %v890 = vld [vmem:[%s330 + $0x28] sm:$0xff]
        %v891 = vld [vmem:[%s330 + $0x30] sm:$0xff]
        %v892 = vld [vmem:[%s330 + $0x38] sm:$0xff]
        %v893 = vld [vmem:[%s330 + $0x40] sm:$0xff]
        %v894 = vld [vmem:[%s330 + $0x48] sm:$0x7]
        %v895 = vld [vmem:[%s330 + $0x50] sm:$0x7]
        %v896 = vld [vmem:[%s330 + $0x58] sm:$0x7]
        %v897 = vld [vmem:[%s3] sm:$0xff]
        %899 = vset.pattern.permute.xlu0 0
        %900 = vperm.xlu0 %899, %v897
        %v901 = vpop.permute.xlu0 %900
        %vm903 = vcmask 220160
        %v905 = vsel %vm903, %v884, 0
        %vm907 = vcmask 1042432
        %v909 = vsel %vm907, %v894, 0
        %v912 = vsel %vm907, %v895, 0
        %v915 = vsel %vm907, %v896, 0
        %917 = vmatprep.subr.mxu0 %v886
        %918 = vmatpush1.msra.mxu0 %v885
        %919 = vmatprep.subr.mxu0 %v889
        %920 = vmatpush1.msra.mxu0 %v888
        %921 = vmatprep.subr.mxu0 %v892
        %922 = vmatpush1.msra.mxu0 %v891
        %923 = vmatprep.subr.mxu0 %v912
        %924 = vmatpush1.msra.mxu0 %v909
        %925 = vmatprep.subr.mxu0 0.0
        %926 = vmatpush1.msra.mxu0 0.0
        %927 = vmatprep.subr.mxu0 0.0
        %928 = vmatpush1.msra.mxu0 0.0
        %929 = vmatprep.subr.mxu0 0.0
        %930 = vmatpush1.msra.mxu0 0.0
        %931 = vmatprep.subr.mxu0 0.0
        %932 = vmatpush1.msra.mxu0 0.0
        %933 = vmatprep.subr.mxu0 0.0
        %934 = vmatpush1.msra.mxu0 0.0
        %935 = vmatprep.subr.mxu0 0.0
        %936 = vmatpush1.msra.mxu0 0.0
        %937 = vmatprep.subr.mxu0 0.0
        %938 = vmatpush1.msra.mxu0 0.0
        %939 = vmatprep.subr.mxu0 0.0
        %940 = vmatpush1.msra.mxu0 0.0
        %941 = vmatprep.subr.mxu0 0.0
        %942 = vmatpush1.msra.mxu0 0.0
        %943 = vmatprep.subr.mxu0 0.0
        %944 = vmatpush1.msra.mxu0 0.0
        %945 = vmatprep.subr.mxu0 0.0
        %946 = vmatpush1.msra.mxu0 0.0
        %947 = vmatprep.subr.mxu0 0.0
        %948 = vmatpush1.msra.mxu0 0.0
        %949 = vmatprep.subr.mxu0 0.0
        %950 = vmatpush1.msra.mxu0 0.0
        %951 = vmatprep.subr.mxu0 0.0
        %952 = vmatpush1.msra.mxu0 0.0
        %953 = vmatprep.subr.mxu0 0.0
        %954 = vmatpush1.msra.mxu0 0.0
        %955 = vmatprep.subr.mxu0 0.0
        %956 = vmatpush1.msra.mxu0 0.0
        %957 = vmatprep.subr.mxu0 0.0
        %958 = vmatpush1.msra.mxu0 0.0
        %959 = vmatprep.subr.mxu0 0.0
        %960 = vmatpush1.msra.mxu0 0.0
        %961 = vmatprep.subr.mxu0 0.0
        %962 = vmatpush1.msra.mxu0 0.0
        %963 = vmatprep.subr.mxu0 0.0
        %964 = vmatpush1.msra.mxu0 0.0
        %965 = vmatprep.subr.mxu0 0.0
        %966 = vmatpush1.msra.mxu0 0.0
        %967 = vmatprep.subr.mxu0 0.0
        %968 = vmatpush1.msra.mxu0 0.0
        %969 = vmatprep.subr.mxu0 0.0
        %970 = vmatpush1.msra.mxu0 0.0
        %971 = vmatprep.subr.mxu0 0.0
        %972 = vmatpush1.msra.mxu0 0.0
        %973 = vmatprep.subr.mxu0 0.0
        %974 = vmatpush1.msra.mxu0 0.0
        %975 = vmatprep.subr.mxu0 0.0
        %976 = vmatpush1.msra.mxu0 0.0
        %977 = vmatprep.subr.mxu0 0.0
        %978 = vmatpush1.msra.mxu0 0.0
        %979 = vmatprep.subr.mxu0 0.0
        %980 = vmatpush1.msra.mxu0 0.0
        %981 = vmatprep.mubr.f32.mxu0 0.0
        %982 = vmatmul.mubr.f32.gmra.mrb[0].mxu0 %v905
        %v983 = vpop.f32.mrb[0].mxu0
        %v984 = vadd.f32 %v901, %v983
        %v985 = vpop.f32.mrb[0].mxu0
        %v986 = vadd.f32 %v901, %v985
        %987 = vdwg.mxu0
        %988 = vmatprep.subr.mxu0 0.0
        %989 = vmatpush1.msra.mxu0 %v887
        %990 = vmatprep.subr.mxu0 0.0
        %991 = vmatpush1.msra.mxu0 %v890
        %992 = vmatprep.subr.mxu0 0.0
        %993 = vmatpush1.msra.mxu0 %v893
        %994 = vmatprep.subr.mxu0 0.0
        %995 = vmatpush1.msra.mxu0 %v915
        %996 = vmatprep.subr.mxu0 0.0
        %997 = vmatpush1.msra.mxu0 0.0
        %998 = vmatprep.subr.mxu0 0.0
        %999 = vmatpush1.msra.mxu0 0.0
        %1000 = vmatprep.subr.mxu0 0.0
        %1001 = vmatpush1.msra.mxu0 0.0
        %1002 = vmatprep.subr.mxu0 0.0
        %1003 = vmatpush1.msra.mxu0 0.0
        %1004 = vmatprep.subr.mxu0 0.0
        %1005 = vmatpush1.msra.mxu0 0.0
        %1006 = vmatprep.subr.mxu0 0.0
        %1007 = vmatpush1.msra.mxu0 0.0
        %1008 = vmatprep.subr.mxu0 0.0
        %1009 = vmatpush1.msra.mxu0 0.0
        %1010 = vmatprep.subr.mxu0 0.0
        %1011 = vmatpush1.msra.mxu0 0.0
        %1012 = vmatprep.subr.mxu0 0.0
        %1013 = vmatpush1.msra.mxu0 0.0
        %1014 = vmatprep.subr.mxu0 0.0
        %1015 = vmatpush1.msra.mxu0 0.0
        %1016 = vmatprep.subr.mxu0 0.0
        %1017 = vmatpush1.msra.mxu0 0.0
        %1018 = vmatprep.subr.mxu0 0.0
        %1019 = vmatpush1.msra.mxu0 0.0
        %1020 = vmatprep.subr.mxu0 0.0
        %1021 = vmatpush1.msra.mxu0 0.0
        %1022 = vmatprep.subr.mxu0 0.0
        %1023 = vmatpush1.msra.mxu0 0.0
        %1024 = vmatprep.subr.mxu0 0.0
        %1025 = vmatpush1.msra.mxu0 0.0
        %1026 = vmatprep.subr.mxu0 0.0
        %1027 = vmatpush1.msra.mxu0 0.0
        %1028 = vmatprep.subr.mxu0 0.0
        %1029 = vmatpush1.msra.mxu0 0.0
        %1030 = vmatprep.subr.mxu0 0.0
        %1031 = vmatpush1.msra.mxu0 0.0
        %1032 = vmatprep.subr.mxu0 0.0
        %1033 = vmatpush1.msra.mxu0 0.0
        %1034 = vmatprep.subr.mxu0 0.0
        %1035 = vmatpush1.msra.mxu0 0.0
        %1036 = vmatprep.subr.mxu0 0.0
        %1037 = vmatpush1.msra.mxu0 0.0
        %1038 = vmatprep.subr.mxu0 0.0
        %1039 = vmatpush1.msra.mxu0 0.0
        %1040 = vmatprep.subr.mxu0 0.0
        %1041 = vmatpush1.msra.mxu0 0.0
        %1042 = vmatprep.subr.mxu0 0.0
        %1043 = vmatpush1.msra.mxu0 0.0
        %1044 = vmatprep.subr.mxu0 0.0
        %1045 = vmatpush1.msra.mxu0 0.0
        %1046 = vmatprep.subr.mxu0 0.0
        %1047 = vmatpush1.msra.mxu0 0.0
        %1048 = vmatprep.subr.mxu0 0.0
        %1049 = vmatpush1.msra.mxu0 0.0
        %1050 = vmatprep.subr.mxu0 0.0
        %1051 = vmatpush1.msra.mxu0 0.0
        %1052 = vmatprep.mubr.f32.mxu0 0.0
        %1053 = vmatmul.mubr.f32.gmra.mrb[0].mxu0 %v905
        %v1054 = vpop.f32.mrb[0].mxu0
        %v1055 = vadd.f32 %v901, %v1054
        %v1056 = vpop.f32.mrb[0].mxu0
        %1057 = vdwg.mxu0
        %v1058 = vmax.f32 %v984, 0.0
        %v1059 = vmax.f32 %v986, 0.0
        %v1060 = vmax.f32 %v1055, 0.0
        %v1061 = vld [vmem:[%s1] sm:$0x7]
        %v1063 = vlaneseq
        %v1064 = vshrl.u32 %v1063, 7
        %v1065 = vsub.s32 0, %v1064
        %v1066 = vrot.slane %v1061, %v1065
        %v1067 = vlaneseq
        %v1068 = vshrl.u32 %v1067, 7
        %v1069 = vsub.s32 1, %v1068
        %v1070 = vrot.slane %v1061, %v1069
        %v1071 = vlaneseq
        %v1072 = vshrl.u32 %v1071, 7
        %v1073 = vsub.s32 2, %v1072
        %v1074 = vrot.slane %v1061, %v1073
        %v1078 = vmul.f32 %v1058, %v1066
        %v1079 = vmul.f32 %v1059, %v1070
        %v1080 = vmul.f32 %v1060, %v1074
        %1082 = vrot.lane.b32.xlu0 %v1078, 110
        %v1083 = vpop.permute.xlu0 %1082
        %1085 = vrot.lane.b32.xlu0 %v1078, 92
        %v1086 = vpop.permute.xlu0 %1085
        %1088 = vrot.lane.b32.xlu0 %v1078, 74
        %v1089 = vpop.permute.xlu0 %1088
        %1091 = vrot.lane.b32.xlu0 %v1078, 56
        %v1092 = vpop.permute.xlu0 %1091
        %1094 = vrot.lane.b32.xlu0 %v1078, 38
        %v1095 = vpop.permute.xlu0 %1094
        %1097 = vrot.lane.b32.xlu0 %v1078, 20
        %v1098 = vpop.permute.xlu0 %1097
        %1101 = vrot.lane.b32.xlu0 %v1078, 2
        %v1102 = vpop.permute.xlu0 %1101
        %1103 = vrot.lane.b32.xlu0 %v1079, 2
        %v1104 = vpop.permute.xlu0 %1103
        %vm1105 = vcmask 15360
        %v1106 = vsel %vm1105, %v1102, %v1104
        %1108 = vrot.lane.b32.xlu0 %v1079, 112
        %v1109 = vpop.permute.xlu0 %1108
        %1111 = vrot.lane.b32.xlu0 %v1079, 94
        %v1112 = vpop.permute.xlu0 %1111
        %1114 = vrot.lane.b32.xlu0 %v1079, 76
        %v1115 = vpop.permute.xlu0 %1114
        %1117 = vrot.lane.b32.xlu0 %v1079, 58
        %v1118 = vpop.permute.xlu0 %1117
        %1120 = vrot.lane.b32.xlu0 %v1079, 40
        %v1121 = vpop.permute.xlu0 %1120
        %1123 = vrot.lane.b32.xlu0 %v1079, 22
        %v1124 = vpop.permute.xlu0 %1123
        %1127 = vrot.lane.b32.xlu0 %v1079, 4
        %v1128 = vpop.permute.xlu0 %1127
        %1129 = vrot.lane.b32.xlu0 %v1080, 4
        %v1130 = vpop.permute.xlu0 %1129
        %vm1131 = vcmask 31744
        %v1132 = vsel %vm1131, %v1128, %v1130
        %1134 = vrot.lane.b32.xlu0 %v1080, 114
        %v1135 = vpop.permute.xlu0 %1134
        %1137 = vrot.lane.b32.xlu0 %v1080, 96
        %v1138 = vpop.permute.xlu0 %1137
        %1140 = vrot.lane.b32.xlu0 %v1080, 78
        %v1141 = vpop.permute.xlu0 %1140
        %v1143 = vcombine.low %v1078, %v1086
        %v1144 = vcombine.high %v1078, %v1086
        %v1146 = vunpack.c.l.s4 1983009808
        %v1147 = vunpack.c.0.s8 %v1146
        %v1148 = vlaneseq
        %v1149 = vshrl.u32 %v1148, 7
        %v1150 = vsub.s32 %v1147, %v1149
        %v1151 = vrot.slane %v1143, %v1150
        %v1153 = vunpack.c.l.s4 1983009808
        %v1154 = vunpack.c.0.s8 %v1153
        %v1155 = vlaneseq
        %v1156 = vshrl.u32 %v1155, 7
        %v1157 = vsub.s32 %v1154, %v1156
        %v1158 = vrot.slane %v1144, %v1157
        %v1159 = vcombine.low %v1083, %v1089
        %v1160 = vcombine.high %v1083, %v1089
        %v1162 = vunpack.c.l.s4 1983009808
        %v1163 = vunpack.c.0.s8 %v1162
        %v1164 = vlaneseq
        %v1165 = vshrl.u32 %v1164, 7
        %v1166 = vsub.s32 %v1163, %v1165
        %v1167 = vrot.slane %v1159, %v1166
        %v1169 = vunpack.c.l.s4 1983009808
        %v1170 = vunpack.c.0.s8 %v1169
        %v1171 = vlaneseq
        %v1172 = vshrl.u32 %v1171, 7
        %v1173 = vsub.s32 %v1170, %v1172
        %v1174 = vrot.slane %v1160, %v1173
        %v1175 = vcombine.low %v1092, %v1098
        %v1176 = vcombine.high %v1092, %v1098
        %v1178 = vunpack.c.l.s4 1983009808
        %v1179 = vunpack.c.0.s8 %v1178
        %v1180 = vlaneseq
        %v1181 = vshrl.u32 %v1180, 7
        %v1182 = vsub.s32 %v1179, %v1181
        %v1183 = vrot.slane %v1175, %v1182
        %v1185 = vunpack.c.l.s4 1983009808
        %v1186 = vunpack.c.0.s8 %v1185
        %v1187 = vlaneseq
        %v1188 = vshrl.u32 %v1187, 7
        %v1189 = vsub.s32 %v1186, %v1188
        %v1190 = vrot.slane %v1176, %v1189
        %v1191 = vcombine.low %v1095, %v1106
        %v1192 = vcombine.high %v1095, %v1106
        %v1194 = vunpack.c.l.s4 1983009808
        %v1195 = vunpack.c.0.s8 %v1194
        %v1196 = vlaneseq
        %v1197 = vshrl.u32 %v1196, 7
        %v1198 = vsub.s32 %v1195, %v1197
        %v1199 = vrot.slane %v1191, %v1198
        %v1201 = vunpack.c.l.s4 1983009808
        %v1202 = vunpack.c.0.s8 %v1201
        %v1203 = vlaneseq
        %v1204 = vshrl.u32 %v1203, 7
        %v1205 = vsub.s32 %v1202, %v1204
        %v1206 = vrot.slane %v1192, %v1205
        %v1207 = vcombine.low %v1151, %v1167
        %v1208 = vcombine.high %v1151, %v1167
        %v1210 = vunpack.c.l.s4 1934713408
        %v1211 = vunpack.c.0.s8 %v1210
        %v1212 = vlaneseq
        %v1213 = vshrl.u32 %v1212, 7
        %v1214 = vsub.s32 %v1211, %v1213
        %v1215 = vrot.slane %v1207, %v1214
        %v1217 = vunpack.c.l.s4 1934713408
        %v1218 = vunpack.c.0.s8 %v1217
        %v1219 = vlaneseq
        %v1220 = vshrl.u32 %v1219, 7
        %v1221 = vsub.s32 %v1218, %v1220
        %v1222 = vrot.slane %v1208, %v1221
        %v1223 = vcombine.low %v1158, %v1174
        %v1224 = vcombine.high %v1158, %v1174
        %v1226 = vunpack.c.l.s4 1934713408
        %v1227 = vunpack.c.0.s8 %v1226
        %v1228 = vlaneseq
        %v1229 = vshrl.u32 %v1228, 7
        %v1230 = vsub.s32 %v1227, %v1229
        %v1231 = vrot.slane %v1223, %v1230
        %v1233 = vunpack.c.l.s4 1934713408
        %v1234 = vunpack.c.0.s8 %v1233
        %v1235 = vlaneseq
        %v1236 = vshrl.u32 %v1235, 7
        %v1237 = vsub.s32 %v1234, %v1236
        %v1238 = vrot.slane %v1224, %v1237
        %v1239 = vcombine.low %v1183, %v1199
        %v1240 = vcombine.high %v1183, %v1199
        %v1242 = vunpack.c.l.s4 1934713408
        %v1243 = vunpack.c.0.s8 %v1242
        %v1244 = vlaneseq
        %v1245 = vshrl.u32 %v1244, 7
        %v1246 = vsub.s32 %v1243, %v1245
        %v1247 = vrot.slane %v1239, %v1246
        %v1249 = vunpack.c.l.s4 1934713408
        %v1250 = vunpack.c.0.s8 %v1249
        %v1251 = vlaneseq
        %v1252 = vshrl.u32 %v1251, 7
        %v1253 = vsub.s32 %v1250, %v1252
        %v1254 = vrot.slane %v1240, %v1253
        %v1255 = vcombine.low %v1190, %v1206
        %v1256 = vcombine.high %v1190, %v1206
        %v1258 = vunpack.c.l.s4 1934713408
        %v1259 = vunpack.c.0.s8 %v1258
        %v1260 = vlaneseq
        %v1261 = vshrl.u32 %v1260, 7
        %v1262 = vsub.s32 %v1259, %v1261
        %v1263 = vrot.slane %v1255, %v1262
        %v1265 = vunpack.c.l.s4 1934713408
        %v1266 = vunpack.c.0.s8 %v1265
        %v1267 = vlaneseq
        %v1268 = vshrl.u32 %v1267, 7
        %v1269 = vsub.s32 %v1266, %v1268
        %v1270 = vrot.slane %v1256, %v1269
        %v1271 = vcombine.low %v1215, %v1247
        %v1272 = vcombine.high %v1215, %v1247
        %v1273 = vcombine.low %v1222, %v1254
        %v1274 = vcombine.high %v1222, %v1254
        %v1275 = vcombine.low %v1231, %v1263
        %v1276 = vcombine.high %v1231, %v1263
        %v1277 = vcombine.low %v1238, %v1270
        %v1278 = vcombine.high %v1238, %v1270
        %v1279 = vcombine.low %v1109, %v1115
        %v1280 = vcombine.high %v1109, %v1115
        %v1282 = vunpack.c.l.s4 1983009808
        %v1283 = vunpack.c.0.s8 %v1282
        %v1284 = vlaneseq
        %v1285 = vshrl.u32 %v1284, 7
        %v1286 = vsub.s32 %v1283, %v1285
        %v1287 = vrot.slane %v1279, %v1286
        %v1289 = vunpack.c.l.s4 1983009808
        %v1290 = vunpack.c.0.s8 %v1289
        %v1291 = vlaneseq
        %v1292 = vshrl.u32 %v1291, 7
        %v1293 = vsub.s32 %v1290, %v1292
        %v1294 = vrot.slane %v1280, %v1293
        %v1295 = vcombine.low %v1112, %v1118
        %v1296 = vcombine.high %v1112, %v1118
        %v1298 = vunpack.c.l.s4 1983009808
        %v1299 = vunpack.c.0.s8 %v1298
        %v1300 = vlaneseq
        %v1301 = vshrl.u32 %v1300, 7
        %v1302 = vsub.s32 %v1299, %v1301
        %v1303 = vrot.slane %v1295, %v1302
        %v1305 = vunpack.c.l.s4 1983009808
        %v1306 = vunpack.c.0.s8 %v1305
        %v1307 = vlaneseq
        %v1308 = vshrl.u32 %v1307, 7
        %v1309 = vsub.s32 %v1306, %v1308
        %v1310 = vrot.slane %v1296, %v1309
        %v1311 = vcombine.low %v1121, %v1132
        %v1312 = vcombine.high %v1121, %v1132
        %v1314 = vunpack.c.l.s4 1983009808
        %v1315 = vunpack.c.0.s8 %v1314
        %v1316 = vlaneseq
        %v1317 = vshrl.u32 %v1316, 7
        %v1318 = vsub.s32 %v1315, %v1317
        %v1319 = vrot.slane %v1311, %v1318
        %v1321 = vunpack.c.l.s4 1983009808
        %v1322 = vunpack.c.0.s8 %v1321
        %v1323 = vlaneseq
        %v1324 = vshrl.u32 %v1323, 7
        %v1325 = vsub.s32 %v1322, %v1324
        %v1326 = vrot.slane %v1312, %v1325
        %v1327 = vcombine.low %v1124, %v1135
        %v1328 = vcombine.high %v1124, %v1135
        %v1330 = vunpack.c.l.s4 1983009808
        %v1331 = vunpack.c.0.s8 %v1330
        %v1332 = vlaneseq
        %v1333 = vshrl.u32 %v1332, 7
        %v1334 = vsub.s32 %v1331, %v1333
        %v1335 = vrot.slane %v1327, %v1334
        %v1337 = vunpack.c.l.s4 1983009808
        %v1338 = vunpack.c.0.s8 %v1337
        %v1339 = vlaneseq
        %v1340 = vshrl.u32 %v1339, 7
        %v1341 = vsub.s32 %v1338, %v1340
        %v1342 = vrot.slane %v1328, %v1341
        %v1343 = vcombine.low %v1287, %v1303
        %v1344 = vcombine.high %v1287, %v1303
        %v1346 = vunpack.c.l.s4 1934713408
        %v1347 = vunpack.c.0.s8 %v1346
        %v1348 = vlaneseq
        %v1349 = vshrl.u32 %v1348, 7
        %v1350 = vsub.s32 %v1347, %v1349
        %v1351 = vrot.slane %v1343, %v1350
        %v1353 = vunpack.c.l.s4 1934713408
        %v1354 = vunpack.c.0.s8 %v1353
        %v1355 = vlaneseq
        %v1356 = vshrl.u32 %v1355, 7
        %v1357 = vsub.s32 %v1354, %v1356
        %v1358 = vrot.slane %v1344, %v1357
        %v1359 = vcombine.low %v1294, %v1310
        %v1360 = vcombine.high %v1294, %v1310
        %v1362 = vunpack.c.l.s4 1934713408
        %v1363 = vunpack.c.0.s8 %v1362
        %v1364 = vlaneseq
        %v1365 = vshrl.u32 %v1364, 7
        %v1366 = vsub.s32 %v1363, %v1365
        %v1367 = vrot.slane %v1359, %v1366
        %v1369 = vunpack.c.l.s4 1934713408
        %v1370 = vunpack.c.0.s8 %v1369
        %v1371 = vlaneseq
        %v1372 = vshrl.u32 %v1371, 7
        %v1373 = vsub.s32 %v1370, %v1372
        %v1374 = vrot.slane %v1360, %v1373
        %v1375 = vcombine.low %v1319, %v1335
        %v1376 = vcombine.high %v1319, %v1335
        %v1378 = vunpack.c.l.s4 1934713408
        %v1379 = vunpack.c.0.s8 %v1378
        %v1380 = vlaneseq
        %v1381 = vshrl.u32 %v1380, 7
        %v1382 = vsub.s32 %v1379, %v1381
        %v1383 = vrot.slane %v1375, %v1382
        %v1385 = vunpack.c.l.s4 1934713408
        %v1386 = vunpack.c.0.s8 %v1385
        %v1387 = vlaneseq
        %v1388 = vshrl.u32 %v1387, 7
        %v1389 = vsub.s32 %v1386, %v1388
        %v1390 = vrot.slane %v1376, %v1389
        %v1391 = vcombine.low %v1326, %v1342
        %v1392 = vcombine.high %v1326, %v1342
        %v1394 = vunpack.c.l.s4 1934713408
        %v1395 = vunpack.c.0.s8 %v1394
        %v1396 = vlaneseq
        %v1397 = vshrl.u32 %v1396, 7
        %v1398 = vsub.s32 %v1395, %v1397
        %v1399 = vrot.slane %v1391, %v1398
        %v1401 = vunpack.c.l.s4 1934713408
        %v1402 = vunpack.c.0.s8 %v1401
        %v1403 = vlaneseq
        %v1404 = vshrl.u32 %v1403, 7
        %v1405 = vsub.s32 %v1402, %v1404
        %v1406 = vrot.slane %v1392, %v1405
        %v1407 = vcombine.low %v1351, %v1383
        %v1408 = vcombine.high %v1351, %v1383
        %v1409 = vcombine.low %v1358, %v1390
        %v1410 = vcombine.high %v1358, %v1390
        %v1411 = vcombine.low %v1367, %v1399
        %v1412 = vcombine.high %v1367, %v1399
        %v1413 = vcombine.low %v1374, %v1406
        %v1414 = vcombine.high %v1374, %v1406
        %v1415 = vcombine.high %v1138, 0.0
        %v1417 = vunpack.c.l.s4 1983009808
        %v1418 = vunpack.c.0.s8 %v1417
        %v1419 = vlaneseq
        %v1420 = vshrl.u32 %v1419, 7
        %v1421 = vsub.s32 %v1418, %v1420
        %v1422 = vrot.slane %v1138, %v1421
        %v1424 = vunpack.c.l.s4 1983009808
        %v1425 = vunpack.c.0.s8 %v1424
        %v1426 = vlaneseq
        %v1427 = vshrl.u32 %v1426, 7
        %v1428 = vsub.s32 %v1425, %v1427
        %v1429 = vrot.slane %v1415, %v1428
        %v1430 = vcombine.high %v1141, 0.0
        %v1432 = vunpack.c.l.s4 1983009808
        %v1433 = vunpack.c.0.s8 %v1432
        %v1434 = vlaneseq
        %v1435 = vshrl.u32 %v1434, 7
        %v1436 = vsub.s32 %v1433, %v1435
        %v1437 = vrot.slane %v1141, %v1436
        %v1439 = vunpack.c.l.s4 1983009808
        %v1440 = vunpack.c.0.s8 %v1439
        %v1441 = vlaneseq
        %v1442 = vshrl.u32 %v1441, 7
        %v1443 = vsub.s32 %v1440, %v1442
        %v1444 = vrot.slane %v1430, %v1443
        %v1445 = vcombine.low %v1422, %v1437
        %v1446 = vcombine.high %v1422, %v1437
        %v1448 = vunpack.c.l.s4 1934713408
        %v1449 = vunpack.c.0.s8 %v1448
        %v1450 = vlaneseq
        %v1451 = vshrl.u32 %v1450, 7
        %v1452 = vsub.s32 %v1449, %v1451
        %v1453 = vrot.slane %v1445, %v1452
        %v1455 = vunpack.c.l.s4 1934713408
        %v1456 = vunpack.c.0.s8 %v1455
        %v1457 = vlaneseq
        %v1458 = vshrl.u32 %v1457, 7
        %v1459 = vsub.s32 %v1456, %v1458
        %v1460 = vrot.slane %v1446, %v1459
        %v1461 = vcombine.low %v1429, %v1444
        %v1462 = vcombine.high %v1429, %v1444
        %v1464 = vunpack.c.l.s4 1934713408
        %v1465 = vunpack.c.0.s8 %v1464
        %v1466 = vlaneseq
        %v1467 = vshrl.u32 %v1466, 7
        %v1468 = vsub.s32 %v1465, %v1467
        %v1469 = vrot.slane %v1461, %v1468
        %v1471 = vunpack.c.l.s4 1934713408
        %v1472 = vunpack.c.0.s8 %v1471
        %v1473 = vlaneseq
        %v1474 = vshrl.u32 %v1473, 7
        %v1475 = vsub.s32 %v1472, %v1474
        %v1476 = vrot.slane %v1462, %v1475
        %v1477 = vcombine.high %v1453, 0.0
        %v1478 = vcombine.high %v1460, 0.0
        %v1479 = vcombine.high %v1469, 0.0
        %v1480 = vcombine.high %v1476, 0.0
        %v1481 = vcombine.low %v1271, %v1273
        %v1482 = vcombine.high %v1271, %v1273
        %v1484 = vunpack.c.l.s4 1983009808
        %v1485 = vunpack.c.0.s8 %v1484
        %v1486 = vlaneseq
        %v1487 = vshrl.u32 %v1486, 7
        %v1488 = vsub.s32 %v1485, %v1487
        %v1489 = vrot.slane %v1481, %v1488
        %v1491 = vunpack.c.l.s4 1983009808
        %v1492 = vunpack.c.0.s8 %v1491
        %v1493 = vlaneseq
        %v1494 = vshrl.u32 %v1493, 7
        %v1495 = vsub.s32 %v1492, %v1494
        %v1496 = vrot.slane %v1482, %v1495
        %v1497 = vcombine.low %v1272, %v1274
        %v1498 = vcombine.high %v1272, %v1274
        %v1500 = vunpack.c.l.s4 1983009808
        %v1501 = vunpack.c.0.s8 %v1500
        %v1502 = vlaneseq
        %v1503 = vshrl.u32 %v1502, 7
        %v1504 = vsub.s32 %v1501, %v1503
        %v1505 = vrot.slane %v1497, %v1504
        %v1507 = vunpack.c.l.s4 1983009808
        %v1508 = vunpack.c.0.s8 %v1507
        %v1509 = vlaneseq
        %v1510 = vshrl.u32 %v1509, 7
        %v1511 = vsub.s32 %v1508, %v1510
        %v1512 = vrot.slane %v1498, %v1511
        %v1513 = vcombine.low %v1275, %v1277
        %v1514 = vcombine.high %v1275, %v1277
        %v1516 = vunpack.c.l.s4 1983009808
        %v1517 = vunpack.c.0.s8 %v1516
        %v1518 = vlaneseq
        %v1519 = vshrl.u32 %v1518, 7
        %v1520 = vsub.s32 %v1517, %v1519
        %v1521 = vrot.slane %v1513, %v1520
        %v1523 = vunpack.c.l.s4 1983009808
        %v1524 = vunpack.c.0.s8 %v1523
        %v1525 = vlaneseq
        %v1526 = vshrl.u32 %v1525, 7
        %v1527 = vsub.s32 %v1524, %v1526
        %v1528 = vrot.slane %v1514, %v1527
        %v1529 = vcombine.low %v1276, %v1278
        %v1530 = vcombine.high %v1276, %v1278
        %v1532 = vunpack.c.l.s4 1983009808
        %v1533 = vunpack.c.0.s8 %v1532
        %v1534 = vlaneseq
        %v1535 = vshrl.u32 %v1534, 7
        %v1536 = vsub.s32 %v1533, %v1535
        %v1537 = vrot.slane %v1529, %v1536
        %v1539 = vunpack.c.l.s4 1983009808
        %v1540 = vunpack.c.0.s8 %v1539
        %v1541 = vlaneseq
        %v1542 = vshrl.u32 %v1541, 7
        %v1543 = vsub.s32 %v1540, %v1542
        %v1544 = vrot.slane %v1530, %v1543
        %v1545 = vcombine.low %v1489, %v1505
        %v1546 = vcombine.high %v1489, %v1505
        %v1548 = vunpack.c.l.s4 1934713408
        %v1549 = vunpack.c.0.s8 %v1548
        %v1550 = vlaneseq
        %v1551 = vshrl.u32 %v1550, 7
        %v1552 = vsub.s32 %v1549, %v1551
        %v1553 = vrot.slane %v1545, %v1552
        %v1555 = vunpack.c.l.s4 1934713408
        %v1556 = vunpack.c.0.s8 %v1555
        %v1557 = vlaneseq
        %v1558 = vshrl.u32 %v1557, 7
        %v1559 = vsub.s32 %v1556, %v1558
        %v1560 = vrot.slane %v1546, %v1559
        %v1561 = vcombine.low %v1496, %v1512
        %v1562 = vcombine.high %v1496, %v1512
        %v1564 = vunpack.c.l.s4 1934713408
        %v1565 = vunpack.c.0.s8 %v1564
        %v1566 = vlaneseq
        %v1567 = vshrl.u32 %v1566, 7
        %v1568 = vsub.s32 %v1565, %v1567
        %v1569 = vrot.slane %v1561, %v1568
        %v1571 = vunpack.c.l.s4 1934713408
        %v1572 = vunpack.c.0.s8 %v1571
        %v1573 = vlaneseq
        %v1574 = vshrl.u32 %v1573, 7
        %v1575 = vsub.s32 %v1572, %v1574
        %v1576 = vrot.slane %v1562, %v1575
        %v1577 = vcombine.low %v1521, %v1537
        %v1578 = vcombine.high %v1521, %v1537
        %v1580 = vunpack.c.l.s4 1934713408
        %v1581 = vunpack.c.0.s8 %v1580
        %v1582 = vlaneseq
        %v1583 = vshrl.u32 %v1582, 7
        %v1584 = vsub.s32 %v1581, %v1583
        %v1585 = vrot.slane %v1577, %v1584
        %v1587 = vunpack.c.l.s4 1934713408
        %v1588 = vunpack.c.0.s8 %v1587
        %v1589 = vlaneseq
        %v1590 = vshrl.u32 %v1589, 7
        %v1591 = vsub.s32 %v1588, %v1590
        %v1592 = vrot.slane %v1578, %v1591
        %v1593 = vcombine.low %v1528, %v1544
        %v1594 = vcombine.high %v1528, %v1544
        %v1596 = vunpack.c.l.s4 1934713408
        %v1597 = vunpack.c.0.s8 %v1596
        %v1598 = vlaneseq
        %v1599 = vshrl.u32 %v1598, 7
        %v1600 = vsub.s32 %v1597, %v1599
        %v1601 = vrot.slane %v1593, %v1600
        %v1603 = vunpack.c.l.s4 1934713408
        %v1604 = vunpack.c.0.s8 %v1603
        %v1605 = vlaneseq
        %v1606 = vshrl.u32 %v1605, 7
        %v1607 = vsub.s32 %v1604, %v1606
        %v1608 = vrot.slane %v1594, %v1607
        %v1609 = vcombine.low %v1553, %v1585
        %v1610 = vcombine.high %v1553, %v1585
        %v1611 = vcombine.low %v1560, %v1592
        %v1612 = vcombine.high %v1560, %v1592
        %v1613 = vcombine.low %v1569, %v1601
        %v1614 = vcombine.high %v1569, %v1601
        %v1615 = vcombine.low %v1576, %v1608
        %v1616 = vcombine.high %v1576, %v1608
        %v1617 = vcombine.low %v1407, %v1409
        %v1618 = vcombine.high %v1407, %v1409
        %v1620 = vunpack.c.l.s4 1983009808
        %v1621 = vunpack.c.0.s8 %v1620
        %v1622 = vlaneseq
        %v1623 = vshrl.u32 %v1622, 7
        %v1624 = vsub.s32 %v1621, %v1623
        %v1625 = vrot.slane %v1617, %v1624
        %v1627 = vunpack.c.l.s4 1983009808
        %v1628 = vunpack.c.0.s8 %v1627
        %v1629 = vlaneseq
        %v1630 = vshrl.u32 %v1629, 7
        %v1631 = vsub.s32 %v1628, %v1630
        %v1632 = vrot.slane %v1618, %v1631
        %v1633 = vcombine.low %v1408, %v1410
        %v1634 = vcombine.high %v1408, %v1410
        %v1636 = vunpack.c.l.s4 1983009808
        %v1637 = vunpack.c.0.s8 %v1636
        %v1638 = vlaneseq
        %v1639 = vshrl.u32 %v1638, 7
        %v1640 = vsub.s32 %v1637, %v1639
        %v1641 = vrot.slane %v1633, %v1640
        %v1643 = vunpack.c.l.s4 1983009808
        %v1644 = vunpack.c.0.s8 %v1643
        %v1645 = vlaneseq
        %v1646 = vshrl.u32 %v1645, 7
        %v1647 = vsub.s32 %v1644, %v1646
        %v1648 = vrot.slane %v1634, %v1647
        %v1649 = vcombine.low %v1411, %v1413
        %v1650 = vcombine.high %v1411, %v1413
        %v1652 = vunpack.c.l.s4 1983009808
        %v1653 = vunpack.c.0.s8 %v1652
        %v1654 = vlaneseq
        %v1655 = vshrl.u32 %v1654, 7
        %v1656 = vsub.s32 %v1653, %v1655
        %v1657 = vrot.slane %v1649, %v1656
        %v1659 = vunpack.c.l.s4 1983009808
        %v1660 = vunpack.c.0.s8 %v1659
        %v1661 = vlaneseq
        %v1662 = vshrl.u32 %v1661, 7
        %v1663 = vsub.s32 %v1660, %v1662
        %v1664 = vrot.slane %v1650, %v1663
        %v1665 = vcombine.low %v1412, %v1414
        %v1666 = vcombine.high %v1412, %v1414
        %v1668 = vunpack.c.l.s4 1983009808
        %v1669 = vunpack.c.0.s8 %v1668
        %v1670 = vlaneseq
        %v1671 = vshrl.u32 %v1670, 7
        %v1672 = vsub.s32 %v1669, %v1671
        %v1673 = vrot.slane %v1665, %v1672
        %v1675 = vunpack.c.l.s4 1983009808
        %v1676 = vunpack.c.0.s8 %v1675
        %v1677 = vlaneseq
        %v1678 = vshrl.u32 %v1677, 7
        %v1679 = vsub.s32 %v1676, %v1678
        %v1680 = vrot.slane %v1666, %v1679
        %v1681 = vcombine.low %v1625, %v1641
        %v1682 = vcombine.high %v1625, %v1641
        %v1684 = vunpack.c.l.s4 1934713408
        %v1685 = vunpack.c.0.s8 %v1684
        %v1686 = vlaneseq
        %v1687 = vshrl.u32 %v1686, 7
        %v1688 = vsub.s32 %v1685, %v1687
        %v1689 = vrot.slane %v1681, %v1688
        %v1691 = vunpack.c.l.s4 1934713408
        %v1692 = vunpack.c.0.s8 %v1691
        %v1693 = vlaneseq
        %v1694 = vshrl.u32 %v1693, 7
        %v1695 = vsub.s32 %v1692, %v1694
        %v1696 = vrot.slane %v1682, %v1695
        %v1697 = vcombine.low %v1632, %v1648
        %v1698 = vcombine.high %v1632, %v1648
        %v1700 = vunpack.c.l.s4 1934713408
        %v1701 = vunpack.c.0.s8 %v1700
        %v1702 = vlaneseq
        %v1703 = vshrl.u32 %v1702, 7
        %v1704 = vsub.s32 %v1701, %v1703
        %v1705 = vrot.slane %v1697, %v1704
        %v1707 = vunpack.c.l.s4 1934713408
        %v1708 = vunpack.c.0.s8 %v1707
        %v1709 = vlaneseq
        %v1710 = vshrl.u32 %v1709, 7
        %v1711 = vsub.s32 %v1708, %v1710
        %v1712 = vrot.slane %v1698, %v1711
        %v1713 = vcombine.low %v1657, %v1673
        %v1714 = vcombine.high %v1657, %v1673
        %v1716 = vunpack.c.l.s4 1934713408
        %v1717 = vunpack.c.0.s8 %v1716
        %v1718 = vlaneseq
        %v1719 = vshrl.u32 %v1718, 7
        %v1720 = vsub.s32 %v1717, %v1719
        %v1721 = vrot.slane %v1713, %v1720
        %v1723 = vunpack.c.l.s4 1934713408
        %v1724 = vunpack.c.0.s8 %v1723
        %v1725 = vlaneseq
        %v1726 = vshrl.u32 %v1725, 7
        %v1727 = vsub.s32 %v1724, %v1726
        %v1728 = vrot.slane %v1714, %v1727
        %v1729 = vcombine.low %v1664, %v1680
        %v1730 = vcombine.high %v1664, %v1680
        %v1732 = vunpack.c.l.s4 1934713408
        %v1733 = vunpack.c.0.s8 %v1732
        %v1734 = vlaneseq
        %v1735 = vshrl.u32 %v1734, 7
        %v1736 = vsub.s32 %v1733, %v1735
        %v1737 = vrot.slane %v1729, %v1736
        %v1739 = vunpack.c.l.s4 1934713408
        %v1740 = vunpack.c.0.s8 %v1739
        %v1741 = vlaneseq
        %v1742 = vshrl.u32 %v1741, 7
        %v1743 = vsub.s32 %v1740, %v1742
        %v1744 = vrot.slane %v1730, %v1743
        %v1745 = vcombine.low %v1689, %v1721
        %v1746 = vcombine.high %v1689, %v1721
        %v1747 = vcombine.low %v1696, %v1728
        %v1748 = vcombine.high %v1696, %v1728
        %v1749 = vcombine.low %v1705, %v1737
        %v1750 = vcombine.high %v1705, %v1737
        %v1751 = vcombine.low %v1712, %v1744
        %v1752 = vcombine.high %v1712, %v1744
        %1754 = vrot.lane.b32.xlu0 %v1610, 16
        %v1755 = vpop.permute.xlu0 %1754
        %1758 = vrot.lane.b32.xlu0 %v1611, 32
        %v1759 = vpop.permute.xlu0 %1758
        %1762 = vrot.lane.b32.xlu0 %v1612, 48
        %v1763 = vpop.permute.xlu0 %1762
        %1766 = vrot.lane.b32.xlu0 %v1613, 64
        %v1767 = vpop.permute.xlu0 %1766
        %1770 = vrot.lane.b32.xlu0 %v1614, 80
        %v1771 = vpop.permute.xlu0 %1770
        %1774 = vrot.lane.b32.xlu0 %v1615, 96
        %v1775 = vpop.permute.xlu0 %1774
        %1778 = vrot.lane.b32.xlu0 %v1616, 112
        %v1779 = vpop.permute.xlu0 %1778
        %1782 = vrot.lane.b32.xlu0 %v1746, 16
        %v1783 = vpop.permute.xlu0 %1782
        %1786 = vrot.lane.b32.xlu0 %v1747, 32
        %v1787 = vpop.permute.xlu0 %1786
        %1790 = vrot.lane.b32.xlu0 %v1748, 48
        %v1791 = vpop.permute.xlu0 %1790
        %1794 = vrot.lane.b32.xlu0 %v1749, 64
        %v1795 = vpop.permute.xlu0 %1794
        %1798 = vrot.lane.b32.xlu0 %v1750, 80
        %v1799 = vpop.permute.xlu0 %1798
        %1802 = vrot.lane.b32.xlu0 %v1751, 96
        %v1803 = vpop.permute.xlu0 %1802
        %1806 = vrot.lane.b32.xlu0 %v1752, 112
        %v1807 = vpop.permute.xlu0 %1806
        %vm1809 = vcmask 130048
        %v1810 = vsel %vm1809, %v1609, %v1755
        %vm1811 = vcmask 261120
        %v1812 = vsel %vm1811, %v1810, %v1759
        %vm1813 = vcmask 392192
        %v1814 = vsel %vm1813, %v1812, %v1763
        %vm1815 = vcmask 523264
        %v1816 = vsel %vm1815, %v1814, %v1767
        %vm1817 = vcmask 654336
        %v1818 = vsel %vm1817, %v1816, %v1771
        %vm1819 = vcmask 785408
        %v1820 = vsel %vm1819, %v1818, %v1775
        %vm1821 = vcmask 916480
        %v1822 = vsel %vm1821, %v1820, %v1779
        %v1823 = vsel %vm1809, %v1745, %v1783
        %v1824 = vsel %vm1811, %v1823, %v1787
        %v1825 = vsel %vm1813, %v1824, %v1791
        %v1826 = vsel %vm1815, %v1825, %v1795
        %v1827 = vsel %vm1817, %v1826, %v1799
        %v1828 = vsel %vm1819, %v1827, %v1803
        %v1829 = vsel %vm1821, %v1828, %v1807
        %1846 = vrot.lane.b32.xlu0 %v1271, 127
        %v1847 = vpop.permute.xlu0 %1846
        %1848 = vrot.lane.b32.xlu0 %v1407, 127
        %v1849 = vpop.permute.xlu0 %1848
        %1850 = vrot.lane.b32.xlu0 %v1272, 127
        %v1851 = vpop.permute.xlu0 %1850
        %1852 = vrot.lane.b32.xlu0 %v1408, 127
        %v1853 = vpop.permute.xlu0 %1852
        %1854 = vrot.lane.b32.xlu0 %v1273, 127
        %v1855 = vpop.permute.xlu0 %1854
        %1856 = vrot.lane.b32.xlu0 %v1409, 127
        %v1857 = vpop.permute.xlu0 %1856
        %1858 = vrot.lane.b32.xlu0 %v1274, 127
        %v1859 = vpop.permute.xlu0 %1858
        %1860 = vrot.lane.b32.xlu0 %v1410, 127
        %v1861 = vpop.permute.xlu0 %1860
        %1862 = vrot.lane.b32.xlu0 %v1275, 127
        %v1863 = vpop.permute.xlu0 %1862
        %1864 = vrot.lane.b32.xlu0 %v1411, 127
        %v1865 = vpop.permute.xlu0 %1864
        %1866 = vrot.lane.b32.xlu0 %v1276, 127
        %v1867 = vpop.permute.xlu0 %1866
        %1868 = vrot.lane.b32.xlu0 %v1412, 127
        %v1869 = vpop.permute.xlu0 %1868
        %1870 = vrot.lane.b32.xlu0 %v1277, 127
        %v1871 = vpop.permute.xlu0 %1870
        %1872 = vrot.lane.b32.xlu0 %v1413, 127
        %v1873 = vpop.permute.xlu0 %1872
        %1874 = vrot.lane.b32.xlu0 %v1278, 127
        %v1875 = vpop.permute.xlu0 %1874
        %1876 = vrot.lane.b32.xlu0 %v1414, 127
        %v1877 = vpop.permute.xlu0 %1876
        %v1894 = vcombine.low %v1847, %v1855
        %v1895 = vcombine.high %v1847, %v1855
        %v1897 = vunpack.c.l.s4 1983009808
        %v1898 = vunpack.c.0.s8 %v1897
        %v1899 = vlaneseq
        %v1900 = vshrl.u32 %v1899, 7
        %v1901 = vsub.s32 %v1898, %v1900
        %v1902 = vrot.slane %v1894, %v1901
        %v1904 = vunpack.c.l.s4 1983009808
        %v1905 = vunpack.c.0.s8 %v1904
        %v1906 = vlaneseq
        %v1907 = vshrl.u32 %v1906, 7
        %v1908 = vsub.s32 %v1905, %v1907
        %v1909 = vrot.slane %v1895, %v1908
        %v1910 = vcombine.low %v1851, %v1859
        %v1911 = vcombine.high %v1851, %v1859
        %v1913 = vunpack.c.l.s4 1983009808
        %v1914 = vunpack.c.0.s8 %v1913
        %v1915 = vlaneseq
        %v1916 = vshrl.u32 %v1915, 7
        %v1917 = vsub.s32 %v1914, %v1916
        %v1918 = vrot.slane %v1910, %v1917
        %v1920 = vunpack.c.l.s4 1983009808
        %v1921 = vunpack.c.0.s8 %v1920
        %v1922 = vlaneseq
        %v1923 = vshrl.u32 %v1922, 7
        %v1924 = vsub.s32 %v1921, %v1923
        %v1925 = vrot.slane %v1911, %v1924
        %v1926 = vcombine.low %v1863, %v1871
        %v1927 = vcombine.high %v1863, %v1871
        %v1929 = vunpack.c.l.s4 1983009808
        %v1930 = vunpack.c.0.s8 %v1929
        %v1931 = vlaneseq
        %v1932 = vshrl.u32 %v1931, 7
        %v1933 = vsub.s32 %v1930, %v1932
        %v1934 = vrot.slane %v1926, %v1933
        %v1936 = vunpack.c.l.s4 1983009808
        %v1937 = vunpack.c.0.s8 %v1936
        %v1938 = vlaneseq
        %v1939 = vshrl.u32 %v1938, 7
        %v1940 = vsub.s32 %v1937, %v1939
        %v1941 = vrot.slane %v1927, %v1940
        %v1942 = vcombine.low %v1867, %v1875
        %v1943 = vcombine.high %v1867, %v1875
        %v1945 = vunpack.c.l.s4 1983009808
        %v1946 = vunpack.c.0.s8 %v1945
        %v1947 = vlaneseq
        %v1948 = vshrl.u32 %v1947, 7
        %v1949 = vsub.s32 %v1946, %v1948
        %v1950 = vrot.slane %v1942, %v1949
        %v1952 = vunpack.c.l.s4 1983009808
        %v1953 = vunpack.c.0.s8 %v1952
        %v1954 = vlaneseq
        %v1955 = vshrl.u32 %v1954, 7
        %v1956 = vsub.s32 %v1953, %v1955
        %v1957 = vrot.slane %v1943, %v1956
        %v1958 = vcombine.low %v1902, %v1918
        %v1959 = vcombine.high %v1902, %v1918
        %v1961 = vunpack.c.l.s4 1934713408
        %v1962 = vunpack.c.0.s8 %v1961
        %v1963 = vlaneseq
        %v1964 = vshrl.u32 %v1963, 7
        %v1965 = vsub.s32 %v1962, %v1964
        %v1966 = vrot.slane %v1958, %v1965
        %v1968 = vunpack.c.l.s4 1934713408
        %v1969 = vunpack.c.0.s8 %v1968
        %v1970 = vlaneseq
        %v1971 = vshrl.u32 %v1970, 7
        %v1972 = vsub.s32 %v1969, %v1971
        %v1973 = vrot.slane %v1959, %v1972
        %v1974 = vcombine.low %v1909, %v1925
        %v1975 = vcombine.high %v1909, %v1925
        %v1977 = vunpack.c.l.s4 1934713408
        %v1978 = vunpack.c.0.s8 %v1977
        %v1979 = vlaneseq
        %v1980 = vshrl.u32 %v1979, 7
        %v1981 = vsub.s32 %v1978, %v1980
        %v1982 = vrot.slane %v1974, %v1981
        %v1984 = vunpack.c.l.s4 1934713408
        %v1985 = vunpack.c.0.s8 %v1984
        %v1986 = vlaneseq
        %v1987 = vshrl.u32 %v1986, 7
        %v1988 = vsub.s32 %v1985, %v1987
        %v1989 = vrot.slane %v1975, %v1988
        %v1990 = vcombine.low %v1934, %v1950
        %v1991 = vcombine.high %v1934, %v1950
        %v1993 = vunpack.c.l.s4 1934713408
        %v1994 = vunpack.c.0.s8 %v1993
        %v1995 = vlaneseq
        %v1996 = vshrl.u32 %v1995, 7
        %v1997 = vsub.s32 %v1994, %v1996
        %v1998 = vrot.slane %v1990, %v1997
        %v2000 = vunpack.c.l.s4 1934713408
        %v2001 = vunpack.c.0.s8 %v2000
        %v2002 = vlaneseq
        %v2003 = vshrl.u32 %v2002, 7
        %v2004 = vsub.s32 %v2001, %v2003
        %v2005 = vrot.slane %v1991, %v2004
        %v2006 = vcombine.low %v1941, %v1957
        %v2007 = vcombine.high %v1941, %v1957
        %v2009 = vunpack.c.l.s4 1934713408
        %v2010 = vunpack.c.0.s8 %v2009
        %v2011 = vlaneseq
        %v2012 = vshrl.u32 %v2011, 7
        %v2013 = vsub.s32 %v2010, %v2012
        %v2014 = vrot.slane %v2006, %v2013
        %v2016 = vunpack.c.l.s4 1934713408
        %v2017 = vunpack.c.0.s8 %v2016
        %v2018 = vlaneseq
        %v2019 = vshrl.u32 %v2018, 7
        %v2020 = vsub.s32 %v2017, %v2019
        %v2021 = vrot.slane %v2007, %v2020
        %v2022 = vcombine.low %v1966, %v1998
        %v2023 = vcombine.high %v1966, %v1998
        %v2024 = vcombine.low %v1973, %v2005
        %v2025 = vcombine.high %v1973, %v2005
        %v2026 = vcombine.low %v1982, %v2014
        %v2027 = vcombine.high %v1982, %v2014
        %v2028 = vcombine.low %v1989, %v2021
        %v2029 = vcombine.high %v1989, %v2021
        %v2030 = vcombine.low %v1849, %v1857
        %v2031 = vcombine.high %v1849, %v1857
        %v2033 = vunpack.c.l.s4 1983009808
        %v2034 = vunpack.c.0.s8 %v2033
        %v2035 = vlaneseq
        %v2036 = vshrl.u32 %v2035, 7
        %v2037 = vsub.s32 %v2034, %v2036
        %v2038 = vrot.slane %v2030, %v2037
        %v2040 = vunpack.c.l.s4 1983009808
        %v2041 = vunpack.c.0.s8 %v2040
        %v2042 = vlaneseq
        %v2043 = vshrl.u32 %v2042, 7
        %v2044 = vsub.s32 %v2041, %v2043
        %v2045 = vrot.slane %v2031, %v2044
        %v2046 = vcombine.low %v1853, %v1861
        %v2047 = vcombine.high %v1853, %v1861
        %v2049 = vunpack.c.l.s4 1983009808
        %v2050 = vunpack.c.0.s8 %v2049
        %v2051 = vlaneseq
        %v2052 = vshrl.u32 %v2051, 7
        %v2053 = vsub.s32 %v2050, %v2052
        %v2054 = vrot.slane %v2046, %v2053
        %v2056 = vunpack.c.l.s4 1983009808
        %v2057 = vunpack.c.0.s8 %v2056
        %v2058 = vlaneseq
        %v2059 = vshrl.u32 %v2058, 7
        %v2060 = vsub.s32 %v2057, %v2059
        %v2061 = vrot.slane %v2047, %v2060
        %v2062 = vcombine.low %v1865, %v1873
        %v2063 = vcombine.high %v1865, %v1873
        %v2065 = vunpack.c.l.s4 1983009808
        %v2066 = vunpack.c.0.s8 %v2065
        %v2067 = vlaneseq
        %v2068 = vshrl.u32 %v2067, 7
        %v2069 = vsub.s32 %v2066, %v2068
        %v2070 = vrot.slane %v2062, %v2069
        %v2072 = vunpack.c.l.s4 1983009808
        %v2073 = vunpack.c.0.s8 %v2072
        %v2074 = vlaneseq
        %v2075 = vshrl.u32 %v2074, 7
        %v2076 = vsub.s32 %v2073, %v2075
        %v2077 = vrot.slane %v2063, %v2076
        %v2078 = vcombine.low %v1869, %v1877
        %v2079 = vcombine.high %v1869, %v1877
        %v2081 = vunpack.c.l.s4 1983009808
        %v2082 = vunpack.c.0.s8 %v2081
        %v2083 = vlaneseq
        %v2084 = vshrl.u32 %v2083, 7
        %v2085 = vsub.s32 %v2082, %v2084
        %v2086 = vrot.slane %v2078, %v2085
        %v2088 = vunpack.c.l.s4 1983009808
        %v2089 = vunpack.c.0.s8 %v2088
        %v2090 = vlaneseq
        %v2091 = vshrl.u32 %v2090, 7
        %v2092 = vsub.s32 %v2089, %v2091
        %v2093 = vrot.slane %v2079, %v2092
        %v2094 = vcombine.low %v2038, %v2054
        %v2095 = vcombine.high %v2038, %v2054
        %v2097 = vunpack.c.l.s4 1934713408
        %v2098 = vunpack.c.0.s8 %v2097
        %v2099 = vlaneseq
        %v2100 = vshrl.u32 %v2099, 7
        %v2101 = vsub.s32 %v2098, %v2100
        %v2102 = vrot.slane %v2094, %v2101
        %v2104 = vunpack.c.l.s4 1934713408
        %v2105 = vunpack.c.0.s8 %v2104
        %v2106 = vlaneseq
        %v2107 = vshrl.u32 %v2106, 7
        %v2108 = vsub.s32 %v2105, %v2107
        %v2109 = vrot.slane %v2095, %v2108
        %v2110 = vcombine.low %v2045, %v2061
        %v2111 = vcombine.high %v2045, %v2061
        %v2113 = vunpack.c.l.s4 1934713408
        %v2114 = vunpack.c.0.s8 %v2113
        %v2115 = vlaneseq
        %v2116 = vshrl.u32 %v2115, 7
        %v2117 = vsub.s32 %v2114, %v2116
        %v2118 = vrot.slane %v2110, %v2117
        %v2120 = vunpack.c.l.s4 1934713408
        %v2121 = vunpack.c.0.s8 %v2120
        %v2122 = vlaneseq
        %v2123 = vshrl.u32 %v2122, 7
        %v2124 = vsub.s32 %v2121, %v2123
        %v2125 = vrot.slane %v2111, %v2124
        %v2126 = vcombine.low %v2070, %v2086
        %v2127 = vcombine.high %v2070, %v2086
        %v2129 = vunpack.c.l.s4 1934713408
        %v2130 = vunpack.c.0.s8 %v2129
        %v2131 = vlaneseq
        %v2132 = vshrl.u32 %v2131, 7
        %v2133 = vsub.s32 %v2130, %v2132
        %v2134 = vrot.slane %v2126, %v2133
        %v2136 = vunpack.c.l.s4 1934713408
        %v2137 = vunpack.c.0.s8 %v2136
        %v2138 = vlaneseq
        %v2139 = vshrl.u32 %v2138, 7
        %v2140 = vsub.s32 %v2137, %v2139
        %v2141 = vrot.slane %v2127, %v2140
        %v2142 = vcombine.low %v2077, %v2093
        %v2143 = vcombine.high %v2077, %v2093
        %v2145 = vunpack.c.l.s4 1934713408
        %v2146 = vunpack.c.0.s8 %v2145
        %v2147 = vlaneseq
        %v2148 = vshrl.u32 %v2147, 7
        %v2149 = vsub.s32 %v2146, %v2148
        %v2150 = vrot.slane %v2142, %v2149
        %v2152 = vunpack.c.l.s4 1934713408
        %v2153 = vunpack.c.0.s8 %v2152
        %v2154 = vlaneseq
        %v2155 = vshrl.u32 %v2154, 7
        %v2156 = vsub.s32 %v2153, %v2155
        %v2157 = vrot.slane %v2143, %v2156
        %v2158 = vcombine.low %v2102, %v2134
        %v2159 = vcombine.high %v2102, %v2134
        %v2160 = vcombine.low %v2109, %v2141
        %v2161 = vcombine.high %v2109, %v2141
        %v2162 = vcombine.low %v2118, %v2150
        %v2163 = vcombine.high %v2118, %v2150
        %v2164 = vcombine.low %v2125, %v2157
        %v2165 = vcombine.high %v2125, %v2157
        %2167 = vrot.lane.b32.xlu0 %v2023, 16
        %v2168 = vpop.permute.xlu0 %2167
        %2171 = vrot.lane.b32.xlu0 %v2024, 32
        %v2172 = vpop.permute.xlu0 %2171
        %2175 = vrot.lane.b32.xlu0 %v2025, 48
        %v2176 = vpop.permute.xlu0 %2175
        %2179 = vrot.lane.b32.xlu0 %v2026, 64
        %v2180 = vpop.permute.xlu0 %2179
        %2183 = vrot.lane.b32.xlu0 %v2027, 80
        %v2184 = vpop.permute.xlu0 %2183
        %2187 = vrot.lane.b32.xlu0 %v2028, 96
        %v2188 = vpop.permute.xlu0 %2187
        %2191 = vrot.lane.b32.xlu0 %v2029, 112
        %v2192 = vpop.permute.xlu0 %2191
        %2195 = vrot.lane.b32.xlu0 %v2159, 16
        %v2196 = vpop.permute.xlu0 %2195
        %2199 = vrot.lane.b32.xlu0 %v2160, 32
        %v2200 = vpop.permute.xlu0 %2199
        %2203 = vrot.lane.b32.xlu0 %v2161, 48
        %v2204 = vpop.permute.xlu0 %2203
        %2207 = vrot.lane.b32.xlu0 %v2162, 64
        %v2208 = vpop.permute.xlu0 %2207
        %2211 = vrot.lane.b32.xlu0 %v2163, 80
        %v2212 = vpop.permute.xlu0 %2211
        %2215 = vrot.lane.b32.xlu0 %v2164, 96
        %v2216 = vpop.permute.xlu0 %2215
        %2219 = vrot.lane.b32.xlu0 %v2165, 112
        %v2220 = vpop.permute.xlu0 %2219
        %v2222 = vsel %vm1809, %v2022, %v2168
        %v2223 = vsel %vm1811, %v2222, %v2172
        %v2224 = vsel %vm1813, %v2223, %v2176
        %v2225 = vsel %vm1815, %v2224, %v2180
        %v2226 = vsel %vm1817, %v2225, %v2184
        %v2227 = vsel %vm1819, %v2226, %v2188
        %v2228 = vsel %vm1821, %v2227, %v2192
        %v2229 = vsel %vm1809, %v2158, %v2196
        %v2230 = vsel %vm1811, %v2229, %v2200
        %v2231 = vsel %vm1813, %v2230, %v2204
        %v2232 = vsel %vm1815, %v2231, %v2208
        %v2233 = vsel %vm1817, %v2232, %v2212
        %v2234 = vsel %vm1819, %v2233, %v2216
        %v2235 = vsel %vm1821, %v2234, %v2220
        %2236 = vrot.lane.b32.xlu0 %v1271, 126
        %v2237 = vpop.permute.xlu0 %2236
        %2238 = vrot.lane.b32.xlu0 %v1407, 126
        %v2239 = vpop.permute.xlu0 %2238
        %2240 = vrot.lane.b32.xlu0 %v1272, 126
        %v2241 = vpop.permute.xlu0 %2240
        %2242 = vrot.lane.b32.xlu0 %v1408, 126
        %v2243 = vpop.permute.xlu0 %2242
        %2244 = vrot.lane.b32.xlu0 %v1273, 126
        %v2245 = vpop.permute.xlu0 %2244
        %2246 = vrot.lane.b32.xlu0 %v1409, 126
        %v2247 = vpop.permute.xlu0 %2246
        %2248 = vrot.lane.b32.xlu0 %v1274, 126
        %v2249 = vpop.permute.xlu0 %2248
        %2250 = vrot.lane.b32.xlu0 %v1410, 126
        %v2251 = vpop.permute.xlu0 %2250
        %2252 = vrot.lane.b32.xlu0 %v1275, 126
        %v2253 = vpop.permute.xlu0 %2252
        %2254 = vrot.lane.b32.xlu0 %v1411, 126
        %v2255 = vpop.permute.xlu0 %2254
        %2256 = vrot.lane.b32.xlu0 %v1276, 126
        %v2257 = vpop.permute.xlu0 %2256
        %2258 = vrot.lane.b32.xlu0 %v1412, 126
        %v2259 = vpop.permute.xlu0 %2258
        %2260 = vrot.lane.b32.xlu0 %v1277, 126
        %v2261 = vpop.permute.xlu0 %2260
        %2262 = vrot.lane.b32.xlu0 %v1413, 126
        %v2263 = vpop.permute.xlu0 %2262
        %2264 = vrot.lane.b32.xlu0 %v1278, 126
        %v2265 = vpop.permute.xlu0 %2264
        %2266 = vrot.lane.b32.xlu0 %v1414, 126
        %v2267 = vpop.permute.xlu0 %2266
        %v2284 = vcombine.low %v2237, %v2245
        %v2285 = vcombine.high %v2237, %v2245
        %v2287 = vunpack.c.l.s4 1983009808
        %v2288 = vunpack.c.0.s8 %v2287
        %v2289 = vlaneseq
        %v2290 = vshrl.u32 %v2289, 7
        %v2291 = vsub.s32 %v2288, %v2290
        %v2292 = vrot.slane %v2284, %v2291
        %v2294 = vunpack.c.l.s4 1983009808
        %v2295 = vunpack.c.0.s8 %v2294
        %v2296 = vlaneseq
        %v2297 = vshrl.u32 %v2296, 7
        %v2298 = vsub.s32 %v2295, %v2297
        %v2299 = vrot.slane %v2285, %v2298
        %v2300 = vcombine.low %v2241, %v2249
        %v2301 = vcombine.high %v2241, %v2249
        %v2303 = vunpack.c.l.s4 1983009808
        %v2304 = vunpack.c.0.s8 %v2303
        %v2305 = vlaneseq
        %v2306 = vshrl.u32 %v2305, 7
        %v2307 = vsub.s32 %v2304, %v2306
        %v2308 = vrot.slane %v2300, %v2307
        %v2310 = vunpack.c.l.s4 1983009808
        %v2311 = vunpack.c.0.s8 %v2310
        %v2312 = vlaneseq
        %v2313 = vshrl.u32 %v2312, 7
        %v2314 = vsub.s32 %v2311, %v2313
        %v2315 = vrot.slane %v2301, %v2314
        %v2316 = vcombine.low %v2253, %v2261
        %v2317 = vcombine.high %v2253, %v2261
        %v2319 = vunpack.c.l.s4 1983009808
        %v2320 = vunpack.c.0.s8 %v2319
        %v2321 = vlaneseq
        %v2322 = vshrl.u32 %v2321, 7
        %v2323 = vsub.s32 %v2320, %v2322
        %v2324 = vrot.slane %v2316, %v2323
        %v2326 = vunpack.c.l.s4 1983009808
        %v2327 = vunpack.c.0.s8 %v2326
        %v2328 = vlaneseq
        %v2329 = vshrl.u32 %v2328, 7
        %v2330 = vsub.s32 %v2327, %v2329
        %v2331 = vrot.slane %v2317, %v2330
        %v2332 = vcombine.low %v2257, %v2265
        %v2333 = vcombine.high %v2257, %v2265
        %v2335 = vunpack.c.l.s4 1983009808
        %v2336 = vunpack.c.0.s8 %v2335
        %v2337 = vlaneseq
        %v2338 = vshrl.u32 %v2337, 7
        %v2339 = vsub.s32 %v2336, %v2338
        %v2340 = vrot.slane %v2332, %v2339
        %v2342 = vunpack.c.l.s4 1983009808
        %v2343 = vunpack.c.0.s8 %v2342
        %v2344 = vlaneseq
        %v2345 = vshrl.u32 %v2344, 7
        %v2346 = vsub.s32 %v2343, %v2345
        %v2347 = vrot.slane %v2333, %v2346
        %v2348 = vcombine.low %v2292, %v2308
        %v2349 = vcombine.high %v2292, %v2308
        %v2351 = vunpack.c.l.s4 1934713408
        %v2352 = vunpack.c.0.s8 %v2351
        %v2353 = vlaneseq
        %v2354 = vshrl.u32 %v2353, 7
        %v2355 = vsub.s32 %v2352, %v2354
        %v2356 = vrot.slane %v2348, %v2355
        %v2358 = vunpack.c.l.s4 1934713408
        %v2359 = vunpack.c.0.s8 %v2358
        %v2360 = vlaneseq
        %v2361 = vshrl.u32 %v2360, 7
        %v2362 = vsub.s32 %v2359, %v2361
        %v2363 = vrot.slane %v2349, %v2362
        %v2364 = vcombine.low %v2299, %v2315
        %v2365 = vcombine.high %v2299, %v2315
        %v2367 = vunpack.c.l.s4 1934713408
        %v2368 = vunpack.c.0.s8 %v2367
        %v2369 = vlaneseq
        %v2370 = vshrl.u32 %v2369, 7
        %v2371 = vsub.s32 %v2368, %v2370
        %v2372 = vrot.slane %v2364, %v2371
        %v2374 = vunpack.c.l.s4 1934713408
        %v2375 = vunpack.c.0.s8 %v2374
        %v2376 = vlaneseq
        %v2377 = vshrl.u32 %v2376, 7
        %v2378 = vsub.s32 %v2375, %v2377
        %v2379 = vrot.slane %v2365, %v2378
        %v2380 = vcombine.low %v2324, %v2340
        %v2381 = vcombine.high %v2324, %v2340
        %v2383 = vunpack.c.l.s4 1934713408
        %v2384 = vunpack.c.0.s8 %v2383
        %v2385 = vlaneseq
        %v2386 = vshrl.u32 %v2385, 7
        %v2387 = vsub.s32 %v2384, %v2386
        %v2388 = vrot.slane %v2380, %v2387
        %v2390 = vunpack.c.l.s4 1934713408
        %v2391 = vunpack.c.0.s8 %v2390
        %v2392 = vlaneseq
        %v2393 = vshrl.u32 %v2392, 7
        %v2394 = vsub.s32 %v2391, %v2393
        %v2395 = vrot.slane %v2381, %v2394
        %v2396 = vcombine.low %v2331, %v2347
        %v2397 = vcombine.high %v2331, %v2347
        %v2399 = vunpack.c.l.s4 1934713408
        %v2400 = vunpack.c.0.s8 %v2399
        %v2401 = vlaneseq
        %v2402 = vshrl.u32 %v2401, 7
        %v2403 = vsub.s32 %v2400, %v2402
        %v2404 = vrot.slane %v2396, %v2403
        %v2406 = vunpack.c.l.s4 1934713408
        %v2407 = vunpack.c.0.s8 %v2406
        %v2408 = vlaneseq
        %v2409 = vshrl.u32 %v2408, 7
        %v2410 = vsub.s32 %v2407, %v2409
        %v2411 = vrot.slane %v2397, %v2410
        %v2412 = vcombine.low %v2356, %v2388
        %v2413 = vcombine.high %v2356, %v2388
        %v2414 = vcombine.low %v2363, %v2395
        %v2415 = vcombine.high %v2363, %v2395
        %v2416 = vcombine.low %v2372, %v2404
        %v2417 = vcombine.high %v2372, %v2404
        %v2418 = vcombine.low %v2379, %v2411
        %v2419 = vcombine.high %v2379, %v2411
        %v2420 = vcombine.low %v2239, %v2247
        %v2421 = vcombine.high %v2239, %v2247
        %v2423 = vunpack.c.l.s4 1983009808
        %v2424 = vunpack.c.0.s8 %v2423
        %v2425 = vlaneseq
        %v2426 = vshrl.u32 %v2425, 7
        %v2427 = vsub.s32 %v2424, %v2426
        %v2428 = vrot.slane %v2420, %v2427
        %v2430 = vunpack.c.l.s4 1983009808
        %v2431 = vunpack.c.0.s8 %v2430
        %v2432 = vlaneseq
        %v2433 = vshrl.u32 %v2432, 7
        %v2434 = vsub.s32 %v2431, %v2433
        %v2435 = vrot.slane %v2421, %v2434
        %v2436 = vcombine.low %v2243, %v2251
        %v2437 = vcombine.high %v2243, %v2251
        %v2439 = vunpack.c.l.s4 1983009808
        %v2440 = vunpack.c.0.s8 %v2439
        %v2441 = vlaneseq
        %v2442 = vshrl.u32 %v2441, 7
        %v2443 = vsub.s32 %v2440, %v2442
        %v2444 = vrot.slane %v2436, %v2443
        %v2446 = vunpack.c.l.s4 1983009808
        %v2447 = vunpack.c.0.s8 %v2446
        %v2448 = vlaneseq
        %v2449 = vshrl.u32 %v2448, 7
        %v2450 = vsub.s32 %v2447, %v2449
        %v2451 = vrot.slane %v2437, %v2450
        %v2452 = vcombine.low %v2255, %v2263
        %v2453 = vcombine.high %v2255, %v2263
        %v2455 = vunpack.c.l.s4 1983009808
        %v2456 = vunpack.c.0.s8 %v2455
        %v2457 = vlaneseq
        %v2458 = vshrl.u32 %v2457, 7
        %v2459 = vsub.s32 %v2456, %v2458
        %v2460 = vrot.slane %v2452, %v2459
        %v2462 = vunpack.c.l.s4 1983009808
        %v2463 = vunpack.c.0.s8 %v2462
        %v2464 = vlaneseq
        %v2465 = vshrl.u32 %v2464, 7
        %v2466 = vsub.s32 %v2463, %v2465
        %v2467 = vrot.slane %v2453, %v2466
        %v2468 = vcombine.low %v2259, %v2267
        %v2469 = vcombine.high %v2259, %v2267
        %v2471 = vunpack.c.l.s4 1983009808
        %v2472 = vunpack.c.0.s8 %v2471
        %v2473 = vlaneseq
        %v2474 = vshrl.u32 %v2473, 7
        %v2475 = vsub.s32 %v2472, %v2474
        %v2476 = vrot.slane %v2468, %v2475
        %v2478 = vunpack.c.l.s4 1983009808
        %v2479 = vunpack.c.0.s8 %v2478
        %v2480 = vlaneseq
        %v2481 = vshrl.u32 %v2480, 7
        %v2482 = vsub.s32 %v2479, %v2481
        %v2483 = vrot.slane %v2469, %v2482
        %v2484 = vcombine.low %v2428, %v2444
        %v2485 = vcombine.high %v2428, %v2444
        %v2487 = vunpack.c.l.s4 1934713408
        %v2488 = vunpack.c.0.s8 %v2487
        %v2489 = vlaneseq
        %v2490 = vshrl.u32 %v2489, 7
        %v2491 = vsub.s32 %v2488, %v2490
        %v2492 = vrot.slane %v2484, %v2491
        %v2494 = vunpack.c.l.s4 1934713408
        %v2495 = vunpack.c.0.s8 %v2494
        %v2496 = vlaneseq
        %v2497 = vshrl.u32 %v2496, 7
        %v2498 = vsub.s32 %v2495, %v2497
        %v2499 = vrot.slane %v2485, %v2498
        %v2500 = vcombine.low %v2435, %v2451
        %v2501 = vcombine.high %v2435, %v2451
        %v2503 = vunpack.c.l.s4 1934713408
        %v2504 = vunpack.c.0.s8 %v2503
        %v2505 = vlaneseq
        %v2506 = vshrl.u32 %v2505, 7
        %v2507 = vsub.s32 %v2504, %v2506
        %v2508 = vrot.slane %v2500, %v2507
        %v2510 = vunpack.c.l.s4 1934713408
        %v2511 = vunpack.c.0.s8 %v2510
        %v2512 = vlaneseq
        %v2513 = vshrl.u32 %v2512, 7
        %v2514 = vsub.s32 %v2511, %v2513
        %v2515 = vrot.slane %v2501, %v2514
        %v2516 = vcombine.low %v2460, %v2476
        %v2517 = vcombine.high %v2460, %v2476
        %v2519 = vunpack.c.l.s4 1934713408
        %v2520 = vunpack.c.0.s8 %v2519
        %v2521 = vlaneseq
        %v2522 = vshrl.u32 %v2521, 7
        %v2523 = vsub.s32 %v2520, %v2522
        %v2524 = vrot.slane %v2516, %v2523
        %v2526 = vunpack.c.l.s4 1934713408
        %v2527 = vunpack.c.0.s8 %v2526
        %v2528 = vlaneseq
        %v2529 = vshrl.u32 %v2528, 7
        %v2530 = vsub.s32 %v2527, %v2529
        %v2531 = vrot.slane %v2517, %v2530
        %v2532 = vcombine.low %v2467, %v2483
        %v2533 = vcombine.high %v2467, %v2483
        %v2535 = vunpack.c.l.s4 1934713408
        %v2536 = vunpack.c.0.s8 %v2535
        %v2537 = vlaneseq
        %v2538 = vshrl.u32 %v2537, 7
        %v2539 = vsub.s32 %v2536, %v2538
        %v2540 = vrot.slane %v2532, %v2539
        %v2542 = vunpack.c.l.s4 1934713408
        %v2543 = vunpack.c.0.s8 %v2542
        %v2544 = vlaneseq
        %v2545 = vshrl.u32 %v2544, 7
        %v2546 = vsub.s32 %v2543, %v2545
        %v2547 = vrot.slane %v2533, %v2546
        %v2548 = vcombine.low %v2492, %v2524
        %v2549 = vcombine.high %v2492, %v2524
        %v2550 = vcombine.low %v2499, %v2531
        %v2551 = vcombine.high %v2499, %v2531
        %v2552 = vcombine.low %v2508, %v2540
        %v2553 = vcombine.high %v2508, %v2540
        %v2554 = vcombine.low %v2515, %v2547
        %v2555 = vcombine.high %v2515, %v2547
        %2557 = vrot.lane.b32.xlu0 %v2413, 16
        %v2558 = vpop.permute.xlu0 %2557
        %2561 = vrot.lane.b32.xlu0 %v2414, 32
        %v2562 = vpop.permute.xlu0 %2561
        %2565 = vrot.lane.b32.xlu0 %v2415, 48
        %v2566 = vpop.permute.xlu0 %2565
        %2569 = vrot.lane.b32.xlu0 %v2416, 64
        %v2570 = vpop.permute.xlu0 %2569
        %2573 = vrot.lane.b32.xlu0 %v2417, 80
        %v2574 = vpop.permute.xlu0 %2573
        %2577 = vrot.lane.b32.xlu0 %v2418, 96
        %v2578 = vpop.permute.xlu0 %2577
        %2581 = vrot.lane.b32.xlu0 %v2419, 112
        %v2582 = vpop.permute.xlu0 %2581
        %2585 = vrot.lane.b32.xlu0 %v2549, 16
        %v2586 = vpop.permute.xlu0 %2585
        %2589 = vrot.lane.b32.xlu0 %v2550, 32
        %v2590 = vpop.permute.xlu0 %2589
        %2593 = vrot.lane.b32.xlu0 %v2551, 48
        %v2594 = vpop.permute.xlu0 %2593
        %2597 = vrot.lane.b32.xlu0 %v2552, 64
        %v2598 = vpop.permute.xlu0 %2597
        %2601 = vrot.lane.b32.xlu0 %v2553, 80
        %v2602 = vpop.permute.xlu0 %2601
        %2605 = vrot.lane.b32.xlu0 %v2554, 96
        %v2606 = vpop.permute.xlu0 %2605
        %2609 = vrot.lane.b32.xlu0 %v2555, 112
        %v2610 = vpop.permute.xlu0 %2609
        %v2612 = vsel %vm1809, %v2412, %v2558
        %v2613 = vsel %vm1811, %v2612, %v2562
        %v2614 = vsel %vm1813, %v2613, %v2566
        %v2615 = vsel %vm1815, %v2614, %v2570
        %v2616 = vsel %vm1817, %v2615, %v2574
        %v2617 = vsel %vm1819, %v2616, %v2578
        %v2618 = vsel %vm1821, %v2617, %v2582
        %v2619 = vsel %vm1809, %v2548, %v2586
        %v2620 = vsel %vm1811, %v2619, %v2590
        %v2621 = vsel %vm1813, %v2620, %v2594
        %v2622 = vsel %vm1815, %v2621, %v2598
        %v2623 = vsel %vm1817, %v2622, %v2602
        %v2624 = vsel %vm1819, %v2623, %v2606
        %v2625 = vsel %vm1821, %v2624, %v2610
        %vm2634 = vcmask 1046528
        %v2635 = vrot.slane %v1271, 1
        %v2636 = vrot.slane %v1407, 1
        %v2637 = vsel %vm2634, %v2635, %v2636
        %v2638 = vrot.slane %v1453, 1
        %v2639 = vsel %vm2634, %v2636, %v2638
        %v2640 = vrot.slane %v1272, 1
        %v2641 = vrot.slane %v1408, 1
        %v2642 = vsel %vm2634, %v2640, %v2641
        %v2643 = vrot.slane %v1477, 1
        %v2644 = vsel %vm2634, %v2641, %v2643
        %v2645 = vrot.slane %v1273, 1
        %v2646 = vrot.slane %v1409, 1
        %v2647 = vsel %vm2634, %v2645, %v2646
        %v2648 = vrot.slane %v1460, 1
        %v2649 = vsel %vm2634, %v2646, %v2648
        %v2650 = vrot.slane %v1274, 1
        %v2651 = vrot.slane %v1410, 1
        %v2652 = vsel %vm2634, %v2650, %v2651
        %v2653 = vrot.slane %v1478, 1
        %v2654 = vsel %vm2634, %v2651, %v2653
        %v2655 = vrot.slane %v1275, 1
        %v2656 = vrot.slane %v1411, 1
        %v2657 = vsel %vm2634, %v2655, %v2656
        %v2658 = vrot.slane %v1469, 1
        %v2659 = vsel %vm2634, %v2656, %v2658
        %v2660 = vrot.slane %v1276, 1
        %v2661 = vrot.slane %v1412, 1
        %v2662 = vsel %vm2634, %v2660, %v2661
        %v2663 = vrot.slane %v1479, 1
        %v2664 = vsel %vm2634, %v2661, %v2663
        %v2665 = vrot.slane %v1277, 1
        %v2666 = vrot.slane %v1413, 1
        %v2667 = vsel %vm2634, %v2665, %v2666
        %v2668 = vrot.slane %v1476, 1
        %v2669 = vsel %vm2634, %v2666, %v2668
        %v2670 = vrot.slane %v1278, 1
        %v2671 = vrot.slane %v1414, 1
        %v2672 = vsel %vm2634, %v2670, %v2671
        %v2673 = vrot.slane %v1480, 1
        %v2674 = vsel %vm2634, %v2671, %v2673
        %v2691 = vcombine.low %v2637, %v2647
        %v2692 = vcombine.high %v2637, %v2647
        %v2694 = vunpack.c.l.s4 1983009808
        %v2695 = vunpack.c.0.s8 %v2694
        %v2696 = vlaneseq
        %v2697 = vshrl.u32 %v2696, 7
        %v2698 = vsub.s32 %v2695, %v2697
        %v2699 = vrot.slane %v2691, %v2698
        %v2701 = vunpack.c.l.s4 1983009808
        %v2702 = vunpack.c.0.s8 %v2701
        %v2703 = vlaneseq
        %v2704 = vshrl.u32 %v2703, 7
        %v2705 = vsub.s32 %v2702, %v2704
        %v2706 = vrot.slane %v2692, %v2705
        %v2707 = vcombine.low %v2642, %v2652
        %v2708 = vcombine.high %v2642, %v2652
        %v2710 = vunpack.c.l.s4 1983009808
        %v2711 = vunpack.c.0.s8 %v2710
        %v2712 = vlaneseq
        %v2713 = vshrl.u32 %v2712, 7
        %v2714 = vsub.s32 %v2711, %v2713
        %v2715 = vrot.slane %v2707, %v2714
        %v2717 = vunpack.c.l.s4 1983009808
        %v2718 = vunpack.c.0.s8 %v2717
        %v2719 = vlaneseq
        %v2720 = vshrl.u32 %v2719, 7
        %v2721 = vsub.s32 %v2718, %v2720
        %v2722 = vrot.slane %v2708, %v2721
        %v2723 = vcombine.low %v2657, %v2667
        %v2724 = vcombine.high %v2657, %v2667
        %v2726 = vunpack.c.l.s4 1983009808
        %v2727 = vunpack.c.0.s8 %v2726
        %v2728 = vlaneseq
        %v2729 = vshrl.u32 %v2728, 7
        %v2730 = vsub.s32 %v2727, %v2729
        %v2731 = vrot.slane %v2723, %v2730
        %v2733 = vunpack.c.l.s4 1983009808
        %v2734 = vunpack.c.0.s8 %v2733
        %v2735 = vlaneseq
        %v2736 = vshrl.u32 %v2735, 7
        %v2737 = vsub.s32 %v2734, %v2736
        %v2738 = vrot.slane %v2724, %v2737
        %v2739 = vcombine.low %v2662, %v2672
        %v2740 = vcombine.high %v2662, %v2672
        %v2742 = vunpack.c.l.s4 1983009808
        %v2743 = vunpack.c.0.s8 %v2742
        %v2744 = vlaneseq
        %v2745 = vshrl.u32 %v2744, 7
        %v2746 = vsub.s32 %v2743, %v2745
        %v2747 = vrot.slane %v2739, %v2746
        %v2749 = vunpack.c.l.s4 1983009808
        %v2750 = vunpack.c.0.s8 %v2749
        %v2751 = vlaneseq
        %v2752 = vshrl.u32 %v2751, 7
        %v2753 = vsub.s32 %v2750, %v2752
        %v2754 = vrot.slane %v2740, %v2753
        %v2755 = vcombine.low %v2699, %v2715
        %v2756 = vcombine.high %v2699, %v2715
        %v2758 = vunpack.c.l.s4 1934713408
        %v2759 = vunpack.c.0.s8 %v2758
        %v2760 = vlaneseq
        %v2761 = vshrl.u32 %v2760, 7
        %v2762 = vsub.s32 %v2759, %v2761
        %v2763 = vrot.slane %v2755, %v2762
        %v2765 = vunpack.c.l.s4 1934713408
        %v2766 = vunpack.c.0.s8 %v2765
        %v2767 = vlaneseq
        %v2768 = vshrl.u32 %v2767, 7
        %v2769 = vsub.s32 %v2766, %v2768
        %v2770 = vrot.slane %v2756, %v2769
        %v2771 = vcombine.low %v2706, %v2722
        %v2772 = vcombine.high %v2706, %v2722
        %v2774 = vunpack.c.l.s4 1934713408
        %v2775 = vunpack.c.0.s8 %v2774
        %v2776 = vlaneseq
        %v2777 = vshrl.u32 %v2776, 7
        %v2778 = vsub.s32 %v2775, %v2777
        %v2779 = vrot.slane %v2771, %v2778
        %v2781 = vunpack.c.l.s4 1934713408
        %v2782 = vunpack.c.0.s8 %v2781
        %v2783 = vlaneseq
        %v2784 = vshrl.u32 %v2783, 7
        %v2785 = vsub.s32 %v2782, %v2784
        %v2786 = vrot.slane %v2772, %v2785
        %v2787 = vcombine.low %v2731, %v2747
        %v2788 = vcombine.high %v2731, %v2747
        %v2790 = vunpack.c.l.s4 1934713408
        %v2791 = vunpack.c.0.s8 %v2790
        %v2792 = vlaneseq
        %v2793 = vshrl.u32 %v2792, 7
        %v2794 = vsub.s32 %v2791, %v2793
        %v2795 = vrot.slane %v2787, %v2794
        %v2797 = vunpack.c.l.s4 1934713408
        %v2798 = vunpack.c.0.s8 %v2797
        %v2799 = vlaneseq
        %v2800 = vshrl.u32 %v2799, 7
        %v2801 = vsub.s32 %v2798, %v2800
        %v2802 = vrot.slane %v2788, %v2801
        %v2803 = vcombine.low %v2738, %v2754
        %v2804 = vcombine.high %v2738, %v2754
        %v2806 = vunpack.c.l.s4 1934713408
        %v2807 = vunpack.c.0.s8 %v2806
        %v2808 = vlaneseq
        %v2809 = vshrl.u32 %v2808, 7
        %v2810 = vsub.s32 %v2807, %v2809
        %v2811 = vrot.slane %v2803, %v2810
        %v2813 = vunpack.c.l.s4 1934713408
        %v2814 = vunpack.c.0.s8 %v2813
        %v2815 = vlaneseq
        %v2816 = vshrl.u32 %v2815, 7
        %v2817 = vsub.s32 %v2814, %v2816
        %v2818 = vrot.slane %v2804, %v2817
        %v2819 = vcombine.low %v2763, %v2795
        %v2820 = vcombine.high %v2763, %v2795
        %v2821 = vcombine.low %v2770, %v2802
        %v2822 = vcombine.high %v2770, %v2802
        %v2823 = vcombine.low %v2779, %v2811
        %v2824 = vcombine.high %v2779, %v2811
        %v2825 = vcombine.low %v2786, %v2818
        %v2826 = vcombine.high %v2786, %v2818
        %v2827 = vcombine.low %v2639, %v2649
        %v2828 = vcombine.high %v2639, %v2649
        %v2830 = vunpack.c.l.s4 1983009808
        %v2831 = vunpack.c.0.s8 %v2830
        %v2832 = vlaneseq
        %v2833 = vshrl.u32 %v2832, 7
        %v2834 = vsub.s32 %v2831, %v2833
        %v2835 = vrot.slane %v2827, %v2834
        %v2837 = vunpack.c.l.s4 1983009808
        %v2838 = vunpack.c.0.s8 %v2837
        %v2839 = vlaneseq
        %v2840 = vshrl.u32 %v2839, 7
        %v2841 = vsub.s32 %v2838, %v2840
        %v2842 = vrot.slane %v2828, %v2841
        %v2843 = vcombine.low %v2644, %v2654
        %v2844 = vcombine.high %v2644, %v2654
        %v2846 = vunpack.c.l.s4 1983009808
        %v2847 = vunpack.c.0.s8 %v2846
        %v2848 = vlaneseq
        %v2849 = vshrl.u32 %v2848, 7
        %v2850 = vsub.s32 %v2847, %v2849
        %v2851 = vrot.slane %v2843, %v2850
        %v2853 = vunpack.c.l.s4 1983009808
        %v2854 = vunpack.c.0.s8 %v2853
        %v2855 = vlaneseq
        %v2856 = vshrl.u32 %v2855, 7
        %v2857 = vsub.s32 %v2854, %v2856
        %v2858 = vrot.slane %v2844, %v2857
        %v2859 = vcombine.low %v2659, %v2669
        %v2860 = vcombine.high %v2659, %v2669
        %v2862 = vunpack.c.l.s4 1983009808
        %v2863 = vunpack.c.0.s8 %v2862
        %v2864 = vlaneseq
        %v2865 = vshrl.u32 %v2864, 7
        %v2866 = vsub.s32 %v2863, %v2865
        %v2867 = vrot.slane %v2859, %v2866
        %v2869 = vunpack.c.l.s4 1983009808
        %v2870 = vunpack.c.0.s8 %v2869
        %v2871 = vlaneseq
        %v2872 = vshrl.u32 %v2871, 7
        %v2873 = vsub.s32 %v2870, %v2872
        %v2874 = vrot.slane %v2860, %v2873
        %v2875 = vcombine.low %v2664, %v2674
        %v2876 = vcombine.high %v2664, %v2674
        %v2878 = vunpack.c.l.s4 1983009808
        %v2879 = vunpack.c.0.s8 %v2878
        %v2880 = vlaneseq
        %v2881 = vshrl.u32 %v2880, 7
        %v2882 = vsub.s32 %v2879, %v2881
        %v2883 = vrot.slane %v2875, %v2882
        %v2885 = vunpack.c.l.s4 1983009808
        %v2886 = vunpack.c.0.s8 %v2885
        %v2887 = vlaneseq
        %v2888 = vshrl.u32 %v2887, 7
        %v2889 = vsub.s32 %v2886, %v2888
        %v2890 = vrot.slane %v2876, %v2889
        %v2891 = vcombine.low %v2835, %v2851
        %v2892 = vcombine.high %v2835, %v2851
        %v2894 = vunpack.c.l.s4 1934713408
        %v2895 = vunpack.c.0.s8 %v2894
        %v2896 = vlaneseq
        %v2897 = vshrl.u32 %v2896, 7
        %v2898 = vsub.s32 %v2895, %v2897
        %v2899 = vrot.slane %v2891, %v2898
        %v2901 = vunpack.c.l.s4 1934713408
        %v2902 = vunpack.c.0.s8 %v2901
        %v2903 = vlaneseq
        %v2904 = vshrl.u32 %v2903, 7
        %v2905 = vsub.s32 %v2902, %v2904
        %v2906 = vrot.slane %v2892, %v2905
        %v2907 = vcombine.low %v2842, %v2858
        %v2908 = vcombine.high %v2842, %v2858
        %v2910 = vunpack.c.l.s4 1934713408
        %v2911 = vunpack.c.0.s8 %v2910
        %v2912 = vlaneseq
        %v2913 = vshrl.u32 %v2912, 7
        %v2914 = vsub.s32 %v2911, %v2913
        %v2915 = vrot.slane %v2907, %v2914
        %v2917 = vunpack.c.l.s4 1934713408
        %v2918 = vunpack.c.0.s8 %v2917
        %v2919 = vlaneseq
        %v2920 = vshrl.u32 %v2919, 7
        %v2921 = vsub.s32 %v2918, %v2920
        %v2922 = vrot.slane %v2908, %v2921
        %v2923 = vcombine.low %v2867, %v2883
        %v2924 = vcombine.high %v2867, %v2883
        %v2926 = vunpack.c.l.s4 1934713408
        %v2927 = vunpack.c.0.s8 %v2926
        %v2928 = vlaneseq
        %v2929 = vshrl.u32 %v2928, 7
        %v2930 = vsub.s32 %v2927, %v2929
        %v2931 = vrot.slane %v2923, %v2930
        %v2933 = vunpack.c.l.s4 1934713408
        %v2934 = vunpack.c.0.s8 %v2933
        %v2935 = vlaneseq
        %v2936 = vshrl.u32 %v2935, 7
        %v2937 = vsub.s32 %v2934, %v2936
        %v2938 = vrot.slane %v2924, %v2937
        %v2939 = vcombine.low %v2874, %v2890
        %v2940 = vcombine.high %v2874, %v2890
        %v2942 = vunpack.c.l.s4 1934713408
        %v2943 = vunpack.c.0.s8 %v2942
        %v2944 = vlaneseq
        %v2945 = vshrl.u32 %v2944, 7
        %v2946 = vsub.s32 %v2943, %v2945
        %v2947 = vrot.slane %v2939, %v2946
        %v2949 = vunpack.c.l.s4 1934713408
        %v2950 = vunpack.c.0.s8 %v2949
        %v2951 = vlaneseq
        %v2952 = vshrl.u32 %v2951, 7
        %v2953 = vsub.s32 %v2950, %v2952
        %v2954 = vrot.slane %v2940, %v2953
        %v2955 = vcombine.low %v2899, %v2931
        %v2956 = vcombine.high %v2899, %v2931
        %v2957 = vcombine.low %v2906, %v2938
        %v2958 = vcombine.high %v2906, %v2938
        %v2959 = vcombine.low %v2915, %v2947
        %v2960 = vcombine.high %v2915, %v2947
        %v2961 = vcombine.low %v2922, %v2954
        %v2962 = vcombine.high %v2922, %v2954
        %2964 = vrot.lane.b32.xlu0 %v2820, 16
        %v2965 = vpop.permute.xlu0 %2964
        %2968 = vrot.lane.b32.xlu0 %v2821, 32
        %v2969 = vpop.permute.xlu0 %2968
        %2972 = vrot.lane.b32.xlu0 %v2822, 48
        %v2973 = vpop.permute.xlu0 %2972
        %2976 = vrot.lane.b32.xlu0 %v2823, 64
        %v2977 = vpop.permute.xlu0 %2976
        %2980 = vrot.lane.b32.xlu0 %v2824, 80
        %v2981 = vpop.permute.xlu0 %2980
        %2984 = vrot.lane.b32.xlu0 %v2825, 96
        %v2985 = vpop.permute.xlu0 %2984
        %2988 = vrot.lane.b32.xlu0 %v2826, 112
        %v2989 = vpop.permute.xlu0 %2988
        %2992 = vrot.lane.b32.xlu0 %v2956, 16
        %v2993 = vpop.permute.xlu0 %2992
        %2996 = vrot.lane.b32.xlu0 %v2957, 32
        %v2997 = vpop.permute.xlu0 %2996
        %3000 = vrot.lane.b32.xlu0 %v2958, 48
        %v3001 = vpop.permute.xlu0 %3000
        %3004 = vrot.lane.b32.xlu0 %v2959, 64
        %v3005 = vpop.permute.xlu0 %3004
        %3008 = vrot.lane.b32.xlu0 %v2960, 80
        %v3009 = vpop.permute.xlu0 %3008
        %3012 = vrot.lane.b32.xlu0 %v2961, 96
        %v3013 = vpop.permute.xlu0 %3012
        %3016 = vrot.lane.b32.xlu0 %v2962, 112
        %v3017 = vpop.permute.xlu0 %3016
        %v3019 = vsel %vm1809, %v2819, %v2965
        %v3020 = vsel %vm1811, %v3019, %v2969
        %v3021 = vsel %vm1813, %v3020, %v2973
        %v3022 = vsel %vm1815, %v3021, %v2977
        %v3023 = vsel %vm1817, %v3022, %v2981
        %v3024 = vsel %vm1819, %v3023, %v2985
        %v3025 = vsel %vm1821, %v3024, %v2989
        %v3026 = vsel %vm1809, %v2955, %v2993
        %v3027 = vsel %vm1811, %v3026, %v2997
        %v3028 = vsel %vm1813, %v3027, %v3001
        %v3029 = vsel %vm1815, %v3028, %v3005
        %v3030 = vsel %vm1817, %v3029, %v3009
        %v3031 = vsel %vm1819, %v3030, %v3013
        %v3032 = vsel %vm1821, %v3031, %v3017
        %3033 = vrot.lane.b32.xlu0 %v2637, 127
        %v3034 = vpop.permute.xlu0 %3033
        %3035 = vrot.lane.b32.xlu0 %v2639, 127
        %v3036 = vpop.permute.xlu0 %3035
        %3037 = vrot.lane.b32.xlu0 %v2642, 127
        %v3038 = vpop.permute.xlu0 %3037
        %3039 = vrot.lane.b32.xlu0 %v2644, 127
        %v3040 = vpop.permute.xlu0 %3039
        %3041 = vrot.lane.b32.xlu0 %v2647, 127
        %v3042 = vpop.permute.xlu0 %3041
        %3043 = vrot.lane.b32.xlu0 %v2649, 127
        %v3044 = vpop.permute.xlu0 %3043
        %3045 = vrot.lane.b32.xlu0 %v2652, 127
        %v3046 = vpop.permute.xlu0 %3045
        %3047 = vrot.lane.b32.xlu0 %v2654, 127
        %v3048 = vpop.permute.xlu0 %3047
        %3049 = vrot.lane.b32.xlu0 %v2657, 127
        %v3050 = vpop.permute.xlu0 %3049
        %3051 = vrot.lane.b32.xlu0 %v2659, 127
        %v3052 = vpop.permute.xlu0 %3051
        %3053 = vrot.lane.b32.xlu0 %v2662, 127
        %v3054 = vpop.permute.xlu0 %3053
        %3055 = vrot.lane.b32.xlu0 %v2664, 127
        %v3056 = vpop.permute.xlu0 %3055
        %3057 = vrot.lane.b32.xlu0 %v2667, 127
        %v3058 = vpop.permute.xlu0 %3057
        %3059 = vrot.lane.b32.xlu0 %v2669, 127
        %v3060 = vpop.permute.xlu0 %3059
        %3061 = vrot.lane.b32.xlu0 %v2672, 127
        %v3062 = vpop.permute.xlu0 %3061
        %3063 = vrot.lane.b32.xlu0 %v2674, 127
        %v3064 = vpop.permute.xlu0 %3063
        %v3081 = vcombine.low %v3034, %v3042
        %v3082 = vcombine.high %v3034, %v3042
        %v3084 = vunpack.c.l.s4 1983009808
        %v3085 = vunpack.c.0.s8 %v3084
        %v3086 = vlaneseq
        %v3087 = vshrl.u32 %v3086, 7
        %v3088 = vsub.s32 %v3085, %v3087
        %v3089 = vrot.slane %v3081, %v3088
        %v3091 = vunpack.c.l.s4 1983009808
        %v3092 = vunpack.c.0.s8 %v3091
        %v3093 = vlaneseq
        %v3094 = vshrl.u32 %v3093, 7
        %v3095 = vsub.s32 %v3092, %v3094
        %v3096 = vrot.slane %v3082, %v3095
        %v3097 = vcombine.low %v3038, %v3046
        %v3098 = vcombine.high %v3038, %v3046
        %v3100 = vunpack.c.l.s4 1983009808
        %v3101 = vunpack.c.0.s8 %v3100
        %v3102 = vlaneseq
        %v3103 = vshrl.u32 %v3102, 7
        %v3104 = vsub.s32 %v3101, %v3103
        %v3105 = vrot.slane %v3097, %v3104
        %v3107 = vunpack.c.l.s4 1983009808
        %v3108 = vunpack.c.0.s8 %v3107
        %v3109 = vlaneseq
        %v3110 = vshrl.u32 %v3109, 7
        %v3111 = vsub.s32 %v3108, %v3110
        %v3112 = vrot.slane %v3098, %v3111
        %v3113 = vcombine.low %v3050, %v3058
        %v3114 = vcombine.high %v3050, %v3058
        %v3116 = vunpack.c.l.s4 1983009808
        %v3117 = vunpack.c.0.s8 %v3116
        %v3118 = vlaneseq
        %v3119 = vshrl.u32 %v3118, 7
        %v3120 = vsub.s32 %v3117, %v3119
        %v3121 = vrot.slane %v3113, %v3120
        %v3123 = vunpack.c.l.s4 1983009808
        %v3124 = vunpack.c.0.s8 %v3123
        %v3125 = vlaneseq
        %v3126 = vshrl.u32 %v3125, 7
        %v3127 = vsub.s32 %v3124, %v3126
        %v3128 = vrot.slane %v3114, %v3127
        %v3129 = vcombine.low %v3054, %v3062
        %v3130 = vcombine.high %v3054, %v3062
        %v3132 = vunpack.c.l.s4 1983009808
        %v3133 = vunpack.c.0.s8 %v3132
        %v3134 = vlaneseq
        %v3135 = vshrl.u32 %v3134, 7
        %v3136 = vsub.s32 %v3133, %v3135
        %v3137 = vrot.slane %v3129, %v3136
        %v3139 = vunpack.c.l.s4 1983009808
        %v3140 = vunpack.c.0.s8 %v3139
        %v3141 = vlaneseq
        %v3142 = vshrl.u32 %v3141, 7
        %v3143 = vsub.s32 %v3140, %v3142
        %v3144 = vrot.slane %v3130, %v3143
        %v3145 = vcombine.low %v3089, %v3105
        %v3146 = vcombine.high %v3089, %v3105
        %v3148 = vunpack.c.l.s4 1934713408
        %v3149 = vunpack.c.0.s8 %v3148
        %v3150 = vlaneseq
        %v3151 = vshrl.u32 %v3150, 7
        %v3152 = vsub.s32 %v3149, %v3151
        %v3153 = vrot.slane %v3145, %v3152
        %v3155 = vunpack.c.l.s4 1934713408
        %v3156 = vunpack.c.0.s8 %v3155
        %v3157 = vlaneseq
        %v3158 = vshrl.u32 %v3157, 7
        %v3159 = vsub.s32 %v3156, %v3158
        %v3160 = vrot.slane %v3146, %v3159
        %v3161 = vcombine.low %v3096, %v3112
        %v3162 = vcombine.high %v3096, %v3112
        %v3164 = vunpack.c.l.s4 1934713408
        %v3165 = vunpack.c.0.s8 %v3164
        %v3166 = vlaneseq
        %v3167 = vshrl.u32 %v3166, 7
        %v3168 = vsub.s32 %v3165, %v3167
        %v3169 = vrot.slane %v3161, %v3168
        %v3171 = vunpack.c.l.s4 1934713408
        %v3172 = vunpack.c.0.s8 %v3171
        %v3173 = vlaneseq
        %v3174 = vshrl.u32 %v3173, 7
        %v3175 = vsub.s32 %v3172, %v3174
        %v3176 = vrot.slane %v3162, %v3175
        %v3177 = vcombine.low %v3121, %v3137
        %v3178 = vcombine.high %v3121, %v3137
        %v3180 = vunpack.c.l.s4 1934713408
        %v3181 = vunpack.c.0.s8 %v3180
        %v3182 = vlaneseq
        %v3183 = vshrl.u32 %v3182, 7
        %v3184 = vsub.s32 %v3181, %v3183
        %v3185 = vrot.slane %v3177, %v3184
        %v3187 = vunpack.c.l.s4 1934713408
        %v3188 = vunpack.c.0.s8 %v3187
        %v3189 = vlaneseq
        %v3190 = vshrl.u32 %v3189, 7
        %v3191 = vsub.s32 %v3188, %v3190
        %v3192 = vrot.slane %v3178, %v3191
        %v3193 = vcombine.low %v3128, %v3144
        %v3194 = vcombine.high %v3128, %v3144
        %v3196 = vunpack.c.l.s4 1934713408
        %v3197 = vunpack.c.0.s8 %v3196
        %v3198 = vlaneseq
        %v3199 = vshrl.u32 %v3198, 7
        %v3200 = vsub.s32 %v3197, %v3199
        %v3201 = vrot.slane %v3193, %v3200
        %v3203 = vunpack.c.l.s4 1934713408
        %v3204 = vunpack.c.0.s8 %v3203
        %v3205 = vlaneseq
        %v3206 = vshrl.u32 %v3205, 7
        %v3207 = vsub.s32 %v3204, %v3206
        %v3208 = vrot.slane %v3194, %v3207
        %v3209 = vcombine.low %v3153, %v3185
        %v3210 = vcombine.high %v3153, %v3185
        %v3211 = vcombine.low %v3160, %v3192
        %v3212 = vcombine.high %v3160, %v3192
        %v3213 = vcombine.low %v3169, %v3201
        %v3214 = vcombine.high %v3169, %v3201
        %v3215 = vcombine.low %v3176, %v3208
        %v3216 = vcombine.high %v3176, %v3208
        %v3217 = vcombine.low %v3036, %v3044
        %v3218 = vcombine.high %v3036, %v3044
        %v3220 = vunpack.c.l.s4 1983009808
        %v3221 = vunpack.c.0.s8 %v3220
        %v3222 = vlaneseq
        %v3223 = vshrl.u32 %v3222, 7
        %v3224 = vsub.s32 %v3221, %v3223
        %v3225 = vrot.slane %v3217, %v3224
        %v3227 = vunpack.c.l.s4 1983009808
        %v3228 = vunpack.c.0.s8 %v3227
        %v3229 = vlaneseq
        %v3230 = vshrl.u32 %v3229, 7
        %v3231 = vsub.s32 %v3228, %v3230
        %v3232 = vrot.slane %v3218, %v3231
        %v3233 = vcombine.low %v3040, %v3048
        %v3234 = vcombine.high %v3040, %v3048
        %v3236 = vunpack.c.l.s4 1983009808
        %v3237 = vunpack.c.0.s8 %v3236
        %v3238 = vlaneseq
        %v3239 = vshrl.u32 %v3238, 7
        %v3240 = vsub.s32 %v3237, %v3239
        %v3241 = vrot.slane %v3233, %v3240
        %v3243 = vunpack.c.l.s4 1983009808
        %v3244 = vunpack.c.0.s8 %v3243
        %v3245 = vlaneseq
        %v3246 = vshrl.u32 %v3245, 7
        %v3247 = vsub.s32 %v3244, %v3246
        %v3248 = vrot.slane %v3234, %v3247
        %v3249 = vcombine.low %v3052, %v3060
        %v3250 = vcombine.high %v3052, %v3060
        %v3252 = vunpack.c.l.s4 1983009808
        %v3253 = vunpack.c.0.s8 %v3252
        %v3254 = vlaneseq
        %v3255 = vshrl.u32 %v3254, 7
        %v3256 = vsub.s32 %v3253, %v3255
        %v3257 = vrot.slane %v3249, %v3256
        %v3259 = vunpack.c.l.s4 1983009808
        %v3260 = vunpack.c.0.s8 %v3259
        %v3261 = vlaneseq
        %v3262 = vshrl.u32 %v3261, 7
        %v3263 = vsub.s32 %v3260, %v3262
        %v3264 = vrot.slane %v3250, %v3263
        %v3265 = vcombine.low %v3056, %v3064
        %v3266 = vcombine.high %v3056, %v3064
        %v3268 = vunpack.c.l.s4 1983009808
        %v3269 = vunpack.c.0.s8 %v3268
        %v3270 = vlaneseq
        %v3271 = vshrl.u32 %v3270, 7
        %v3272 = vsub.s32 %v3269, %v3271
        %v3273 = vrot.slane %v3265, %v3272
        %v3275 = vunpack.c.l.s4 1983009808
        %v3276 = vunpack.c.0.s8 %v3275
        %v3277 = vlaneseq
        %v3278 = vshrl.u32 %v3277, 7
        %v3279 = vsub.s32 %v3276, %v3278
        %v3280 = vrot.slane %v3266, %v3279
        %v3281 = vcombine.low %v3225, %v3241
        %v3282 = vcombine.high %v3225, %v3241
        %v3284 = vunpack.c.l.s4 1934713408
        %v3285 = vunpack.c.0.s8 %v3284
        %v3286 = vlaneseq
        %v3287 = vshrl.u32 %v3286, 7
        %v3288 = vsub.s32 %v3285, %v3287
        %v3289 = vrot.slane %v3281, %v3288
        %v3291 = vunpack.c.l.s4 1934713408
        %v3292 = vunpack.c.0.s8 %v3291
        %v3293 = vlaneseq
        %v3294 = vshrl.u32 %v3293, 7
        %v3295 = vsub.s32 %v3292, %v3294
        %v3296 = vrot.slane %v3282, %v3295
        %v3297 = vcombine.low %v3232, %v3248
        %v3298 = vcombine.high %v3232, %v3248
        %v3300 = vunpack.c.l.s4 1934713408
        %v3301 = vunpack.c.0.s8 %v3300
        %v3302 = vlaneseq
        %v3303 = vshrl.u32 %v3302, 7
        %v3304 = vsub.s32 %v3301, %v3303
        %v3305 = vrot.slane %v3297, %v3304
        %v3307 = vunpack.c.l.s4 1934713408
        %v3308 = vunpack.c.0.s8 %v3307
        %v3309 = vlaneseq
        %v3310 = vshrl.u32 %v3309, 7
        %v3311 = vsub.s32 %v3308, %v3310
        %v3312 = vrot.slane %v3298, %v3311
        %v3313 = vcombine.low %v3257, %v3273
        %v3314 = vcombine.high %v3257, %v3273
        %v3316 = vunpack.c.l.s4 1934713408
        %v3317 = vunpack.c.0.s8 %v3316
        %v3318 = vlaneseq
        %v3319 = vshrl.u32 %v3318, 7
        %v3320 = vsub.s32 %v3317, %v3319
        %v3321 = vrot.slane %v3313, %v3320
        %v3323 = vunpack.c.l.s4 1934713408
        %v3324 = vunpack.c.0.s8 %v3323
        %v3325 = vlaneseq
        %v3326 = vshrl.u32 %v3325, 7
        %v3327 = vsub.s32 %v3324, %v3326
        %v3328 = vrot.slane %v3314, %v3327
        %v3329 = vcombine.low %v3264, %v3280
        %v3330 = vcombine.high %v3264, %v3280
        %v3332 = vunpack.c.l.s4 1934713408
        %v3333 = vunpack.c.0.s8 %v3332
        %v3334 = vlaneseq
        %v3335 = vshrl.u32 %v3334, 7
        %v3336 = vsub.s32 %v3333, %v3335
        %v3337 = vrot.slane %v3329, %v3336
        %v3339 = vunpack.c.l.s4 1934713408
        %v3340 = vunpack.c.0.s8 %v3339
        %v3341 = vlaneseq
        %v3342 = vshrl.u32 %v3341, 7
        %v3343 = vsub.s32 %v3340, %v3342
        %v3344 = vrot.slane %v3330, %v3343
        %v3345 = vcombine.low %v3289, %v3321
        %v3346 = vcombine.high %v3289, %v3321
        %v3347 = vcombine.low %v3296, %v3328
        %v3348 = vcombine.high %v3296, %v3328
        %v3349 = vcombine.low %v3305, %v3337
        %v3350 = vcombine.high %v3305, %v3337
        %v3351 = vcombine.low %v3312, %v3344
        %v3352 = vcombine.high %v3312, %v3344
        %3354 = vrot.lane.b32.xlu0 %v3210, 16
        %v3355 = vpop.permute.xlu0 %3354
        %3358 = vrot.lane.b32.xlu0 %v3211, 32
        %v3359 = vpop.permute.xlu0 %3358
        %3362 = vrot.lane.b32.xlu0 %v3212, 48
        %v3363 = vpop.permute.xlu0 %3362
        %3366 = vrot.lane.b32.xlu0 %v3213, 64
        %v3367 = vpop.permute.xlu0 %3366
        %3370 = vrot.lane.b32.xlu0 %v3214, 80
        %v3371 = vpop.permute.xlu0 %3370
        %3374 = vrot.lane.b32.xlu0 %v3215, 96
        %v3375 = vpop.permute.xlu0 %3374
        %3378 = vrot.lane.b32.xlu0 %v3216, 112
        %v3379 = vpop.permute.xlu0 %3378
        %3382 = vrot.lane.b32.xlu0 %v3346, 16
        %v3383 = vpop.permute.xlu0 %3382
        %3386 = vrot.lane.b32.xlu0 %v3347, 32
        %v3387 = vpop.permute.xlu0 %3386
        %3390 = vrot.lane.b32.xlu0 %v3348, 48
        %v3391 = vpop.permute.xlu0 %3390
        %3394 = vrot.lane.b32.xlu0 %v3349, 64
        %v3395 = vpop.permute.xlu0 %3394
        %3398 = vrot.lane.b32.xlu0 %v3350, 80
        %v3399 = vpop.permute.xlu0 %3398
        %3402 = vrot.lane.b32.xlu0 %v3351, 96
        %v3403 = vpop.permute.xlu0 %3402
        %3406 = vrot.lane.b32.xlu0 %v3352, 112
        %v3407 = vpop.permute.xlu0 %3406
        %v3409 = vsel %vm1809, %v3209, %v3355
        %v3410 = vsel %vm1811, %v3409, %v3359
        %v3411 = vsel %vm1813, %v3410, %v3363
        %v3412 = vsel %vm1815, %v3411, %v3367
        %v3413 = vsel %vm1817, %v3412, %v3371
        %v3414 = vsel %vm1819, %v3413, %v3375
        %v3415 = vsel %vm1821, %v3414, %v3379
        %v3416 = vsel %vm1809, %v3345, %v3383
        %v3417 = vsel %vm1811, %v3416, %v3387
        %v3418 = vsel %vm1813, %v3417, %v3391
        %v3419 = vsel %vm1815, %v3418, %v3395
        %v3420 = vsel %vm1817, %v3419, %v3399
        %v3421 = vsel %vm1819, %v3420, %v3403
        %v3422 = vsel %vm1821, %v3421, %v3407
        %3423 = vrot.lane.b32.xlu0 %v2637, 126
        %v3424 = vpop.permute.xlu0 %3423
        %3425 = vrot.lane.b32.xlu0 %v2639, 126
        %v3426 = vpop.permute.xlu0 %3425
        %3427 = vrot.lane.b32.xlu0 %v2642, 126
        %v3428 = vpop.permute.xlu0 %3427
        %3429 = vrot.lane.b32.xlu0 %v2644, 126
        %v3430 = vpop.permute.xlu0 %3429
        %3431 = vrot.lane.b32.xlu0 %v2647, 126
        %v3432 = vpop.permute.xlu0 %3431
        %3433 = vrot.lane.b32.xlu0 %v2649, 126
        %v3434 = vpop.permute.xlu0 %3433
        %3435 = vrot.lane.b32.xlu0 %v2652, 126
        %v3436 = vpop.permute.xlu0 %3435
        %3437 = vrot.lane.b32.xlu0 %v2654, 126
        %v3438 = vpop.permute.xlu0 %3437
        %3439 = vrot.lane.b32.xlu0 %v2657, 126
        %v3440 = vpop.permute.xlu0 %3439
        %3441 = vrot.lane.b32.xlu0 %v2659, 126
        %v3442 = vpop.permute.xlu0 %3441
        %3443 = vrot.lane.b32.xlu0 %v2662, 126
        %v3444 = vpop.permute.xlu0 %3443
        %3445 = vrot.lane.b32.xlu0 %v2664, 126
        %v3446 = vpop.permute.xlu0 %3445
        %3447 = vrot.lane.b32.xlu0 %v2667, 126
        %v3448 = vpop.permute.xlu0 %3447
        %3449 = vrot.lane.b32.xlu0 %v2669, 126
        %v3450 = vpop.permute.xlu0 %3449
        %3451 = vrot.lane.b32.xlu0 %v2672, 126
        %v3452 = vpop.permute.xlu0 %3451
        %3453 = vrot.lane.b32.xlu0 %v2674, 126
        %v3454 = vpop.permute.xlu0 %3453
        %v3471 = vcombine.low %v3424, %v3432
        %v3472 = vcombine.high %v3424, %v3432
        %v3474 = vunpack.c.l.s4 1983009808
        %v3475 = vunpack.c.0.s8 %v3474
        %v3476 = vlaneseq
        %v3477 = vshrl.u32 %v3476, 7
        %v3478 = vsub.s32 %v3475, %v3477
        %v3479 = vrot.slane %v3471, %v3478
        %v3481 = vunpack.c.l.s4 1983009808
        %v3482 = vunpack.c.0.s8 %v3481
        %v3483 = vlaneseq
        %v3484 = vshrl.u32 %v3483, 7
        %v3485 = vsub.s32 %v3482, %v3484
        %v3486 = vrot.slane %v3472, %v3485
        %v3487 = vcombine.low %v3428, %v3436
        %v3488 = vcombine.high %v3428, %v3436
        %v3490 = vunpack.c.l.s4 1983009808
        %v3491 = vunpack.c.0.s8 %v3490
        %v3492 = vlaneseq
        %v3493 = vshrl.u32 %v3492, 7
        %v3494 = vsub.s32 %v3491, %v3493
        %v3495 = vrot.slane %v3487, %v3494
        %v3497 = vunpack.c.l.s4 1983009808
        %v3498 = vunpack.c.0.s8 %v3497
        %v3499 = vlaneseq
        %v3500 = vshrl.u32 %v3499, 7
        %v3501 = vsub.s32 %v3498, %v3500
        %v3502 = vrot.slane %v3488, %v3501
        %v3503 = vcombine.low %v3440, %v3448
        %v3504 = vcombine.high %v3440, %v3448
        %v3506 = vunpack.c.l.s4 1983009808
        %v3507 = vunpack.c.0.s8 %v3506
        %v3508 = vlaneseq
        %v3509 = vshrl.u32 %v3508, 7
        %v3510 = vsub.s32 %v3507, %v3509
        %v3511 = vrot.slane %v3503, %v3510
        %v3513 = vunpack.c.l.s4 1983009808
        %v3514 = vunpack.c.0.s8 %v3513
        %v3515 = vlaneseq
        %v3516 = vshrl.u32 %v3515, 7
        %v3517 = vsub.s32 %v3514, %v3516
        %v3518 = vrot.slane %v3504, %v3517
        %v3519 = vcombine.low %v3444, %v3452
        %v3520 = vcombine.high %v3444, %v3452
        %v3522 = vunpack.c.l.s4 1983009808
        %v3523 = vunpack.c.0.s8 %v3522
        %v3524 = vlaneseq
        %v3525 = vshrl.u32 %v3524, 7
        %v3526 = vsub.s32 %v3523, %v3525
        %v3527 = vrot.slane %v3519, %v3526
        %v3529 = vunpack.c.l.s4 1983009808
        %v3530 = vunpack.c.0.s8 %v3529
        %v3531 = vlaneseq
        %v3532 = vshrl.u32 %v3531, 7
        %v3533 = vsub.s32 %v3530, %v3532
        %v3534 = vrot.slane %v3520, %v3533
        %v3535 = vcombine.low %v3479, %v3495
        %v3536 = vcombine.high %v3479, %v3495
        %v3538 = vunpack.c.l.s4 1934713408
        %v3539 = vunpack.c.0.s8 %v3538
        %v3540 = vlaneseq
        %v3541 = vshrl.u32 %v3540, 7
        %v3542 = vsub.s32 %v3539, %v3541
        %v3543 = vrot.slane %v3535, %v3542
        %v3545 = vunpack.c.l.s4 1934713408
        %v3546 = vunpack.c.0.s8 %v3545
        %v3547 = vlaneseq
        %v3548 = vshrl.u32 %v3547, 7
        %v3549 = vsub.s32 %v3546, %v3548
        %v3550 = vrot.slane %v3536, %v3549
        %v3551 = vcombine.low %v3486, %v3502
        %v3552 = vcombine.high %v3486, %v3502
        %v3554 = vunpack.c.l.s4 1934713408
        %v3555 = vunpack.c.0.s8 %v3554
        %v3556 = vlaneseq
        %v3557 = vshrl.u32 %v3556, 7
        %v3558 = vsub.s32 %v3555, %v3557
        %v3559 = vrot.slane %v3551, %v3558
        %v3561 = vunpack.c.l.s4 1934713408
        %v3562 = vunpack.c.0.s8 %v3561
        %v3563 = vlaneseq
        %v3564 = vshrl.u32 %v3563, 7
        %v3565 = vsub.s32 %v3562, %v3564
        %v3566 = vrot.slane %v3552, %v3565
        %v3567 = vcombine.low %v3511, %v3527
        %v3568 = vcombine.high %v3511, %v3527
        %v3570 = vunpack.c.l.s4 1934713408
        %v3571 = vunpack.c.0.s8 %v3570
        %v3572 = vlaneseq
        %v3573 = vshrl.u32 %v3572, 7
        %v3574 = vsub.s32 %v3571, %v3573
        %v3575 = vrot.slane %v3567, %v3574
        %v3577 = vunpack.c.l.s4 1934713408
        %v3578 = vunpack.c.0.s8 %v3577
        %v3579 = vlaneseq
        %v3580 = vshrl.u32 %v3579, 7
        %v3581 = vsub.s32 %v3578, %v3580
        %v3582 = vrot.slane %v3568, %v3581
        %v3583 = vcombine.low %v3518, %v3534
        %v3584 = vcombine.high %v3518, %v3534
        %v3586 = vunpack.c.l.s4 1934713408
        %v3587 = vunpack.c.0.s8 %v3586
        %v3588 = vlaneseq
        %v3589 = vshrl.u32 %v3588, 7
        %v3590 = vsub.s32 %v3587, %v3589
        %v3591 = vrot.slane %v3583, %v3590
        %v3593 = vunpack.c.l.s4 1934713408
        %v3594 = vunpack.c.0.s8 %v3593
        %v3595 = vlaneseq
        %v3596 = vshrl.u32 %v3595, 7
        %v3597 = vsub.s32 %v3594, %v3596
        %v3598 = vrot.slane %v3584, %v3597
        %v3599 = vcombine.low %v3543, %v3575
        %v3600 = vcombine.high %v3543, %v3575
        %v3601 = vcombine.low %v3550, %v3582
        %v3602 = vcombine.high %v3550, %v3582
        %v3603 = vcombine.low %v3559, %v3591
        %v3604 = vcombine.high %v3559, %v3591
        %v3605 = vcombine.low %v3566, %v3598
        %v3606 = vcombine.high %v3566, %v3598
        %v3607 = vcombine.low %v3426, %v3434
        %v3608 = vcombine.high %v3426, %v3434
        %v3610 = vunpack.c.l.s4 1983009808
        %v3611 = vunpack.c.0.s8 %v3610
        %v3612 = vlaneseq
        %v3613 = vshrl.u32 %v3612, 7
        %v3614 = vsub.s32 %v3611, %v3613
        %v3615 = vrot.slane %v3607, %v3614
        %v3617 = vunpack.c.l.s4 1983009808
        %v3618 = vunpack.c.0.s8 %v3617
        %v3619 = vlaneseq
        %v3620 = vshrl.u32 %v3619, 7
        %v3621 = vsub.s32 %v3618, %v3620
        %v3622 = vrot.slane %v3608, %v3621
        %v3623 = vcombine.low %v3430, %v3438
        %v3624 = vcombine.high %v3430, %v3438
        %v3626 = vunpack.c.l.s4 1983009808
        %v3627 = vunpack.c.0.s8 %v3626
        %v3628 = vlaneseq
        %v3629 = vshrl.u32 %v3628, 7
        %v3630 = vsub.s32 %v3627, %v3629
        %v3631 = vrot.slane %v3623, %v3630
        %v3633 = vunpack.c.l.s4 1983009808
        %v3634 = vunpack.c.0.s8 %v3633
        %v3635 = vlaneseq
        %v3636 = vshrl.u32 %v3635, 7
        %v3637 = vsub.s32 %v3634, %v3636
        %v3638 = vrot.slane %v3624, %v3637
        %v3639 = vcombine.low %v3442, %v3450
        %v3640 = vcombine.high %v3442, %v3450
        %v3642 = vunpack.c.l.s4 1983009808
        %v3643 = vunpack.c.0.s8 %v3642
        %v3644 = vlaneseq
        %v3645 = vshrl.u32 %v3644, 7
        %v3646 = vsub.s32 %v3643, %v3645
        %v3647 = vrot.slane %v3639, %v3646
        %v3649 = vunpack.c.l.s4 1983009808
        %v3650 = vunpack.c.0.s8 %v3649
        %v3651 = vlaneseq
        %v3652 = vshrl.u32 %v3651, 7
        %v3653 = vsub.s32 %v3650, %v3652
        %v3654 = vrot.slane %v3640, %v3653
        %v3655 = vcombine.low %v3446, %v3454
        %v3656 = vcombine.high %v3446, %v3454
        %v3658 = vunpack.c.l.s4 1983009808
        %v3659 = vunpack.c.0.s8 %v3658
        %v3660 = vlaneseq
        %v3661 = vshrl.u32 %v3660, 7
        %v3662 = vsub.s32 %v3659, %v3661
        %v3663 = vrot.slane %v3655, %v3662
        %v3665 = vunpack.c.l.s4 1983009808
        %v3666 = vunpack.c.0.s8 %v3665
        %v3667 = vlaneseq
        %v3668 = vshrl.u32 %v3667, 7
        %v3669 = vsub.s32 %v3666, %v3668
        %v3670 = vrot.slane %v3656, %v3669
        %v3671 = vcombine.low %v3615, %v3631
        %v3672 = vcombine.high %v3615, %v3631
        %v3674 = vunpack.c.l.s4 1934713408
        %v3675 = vunpack.c.0.s8 %v3674
        %v3676 = vlaneseq
        %v3677 = vshrl.u32 %v3676, 7
        %v3678 = vsub.s32 %v3675, %v3677
        %v3679 = vrot.slane %v3671, %v3678
        %v3681 = vunpack.c.l.s4 1934713408
        %v3682 = vunpack.c.0.s8 %v3681
        %v3683 = vlaneseq
        %v3684 = vshrl.u32 %v3683, 7
        %v3685 = vsub.s32 %v3682, %v3684
        %v3686 = vrot.slane %v3672, %v3685
        %v3687 = vcombine.low %v3622, %v3638
        %v3688 = vcombine.high %v3622, %v3638
        %v3690 = vunpack.c.l.s4 1934713408
        %v3691 = vunpack.c.0.s8 %v3690
        %v3692 = vlaneseq
        %v3693 = vshrl.u32 %v3692, 7
        %v3694 = vsub.s32 %v3691, %v3693
        %v3695 = vrot.slane %v3687, %v3694
        %v3697 = vunpack.c.l.s4 1934713408
        %v3698 = vunpack.c.0.s8 %v3697
        %v3699 = vlaneseq
        %v3700 = vshrl.u32 %v3699, 7
        %v3701 = vsub.s32 %v3698, %v3700
        %v3702 = vrot.slane %v3688, %v3701
        %v3703 = vcombine.low %v3647, %v3663
        %v3704 = vcombine.high %v3647, %v3663
        %v3706 = vunpack.c.l.s4 1934713408
        %v3707 = vunpack.c.0.s8 %v3706
        %v3708 = vlaneseq
        %v3709 = vshrl.u32 %v3708, 7
        %v3710 = vsub.s32 %v3707, %v3709
        %v3711 = vrot.slane %v3703, %v3710
        %v3713 = vunpack.c.l.s4 1934713408
        %v3714 = vunpack.c.0.s8 %v3713
        %v3715 = vlaneseq
        %v3716 = vshrl.u32 %v3715, 7
        %v3717 = vsub.s32 %v3714, %v3716
        %v3718 = vrot.slane %v3704, %v3717
        %v3719 = vcombine.low %v3654, %v3670
        %v3720 = vcombine.high %v3654, %v3670
        %v3722 = vunpack.c.l.s4 1934713408
        %v3723 = vunpack.c.0.s8 %v3722
        %v3724 = vlaneseq
        %v3725 = vshrl.u32 %v3724, 7
        %v3726 = vsub.s32 %v3723, %v3725
        %v3727 = vrot.slane %v3719, %v3726
        %v3729 = vunpack.c.l.s4 1934713408
        %v3730 = vunpack.c.0.s8 %v3729
        %v3731 = vlaneseq
        %v3732 = vshrl.u32 %v3731, 7
        %v3733 = vsub.s32 %v3730, %v3732
        %v3734 = vrot.slane %v3720, %v3733
        %v3735 = vcombine.low %v3679, %v3711
        %v3736 = vcombine.high %v3679, %v3711
        %v3737 = vcombine.low %v3686, %v3718
        %v3738 = vcombine.high %v3686, %v3718
        %v3739 = vcombine.low %v3695, %v3727
        %v3740 = vcombine.high %v3695, %v3727
        %v3741 = vcombine.low %v3702, %v3734
        %v3742 = vcombine.high %v3702, %v3734
        %3744 = vrot.lane.b32.xlu0 %v3600, 16
        %v3745 = vpop.permute.xlu0 %3744
        %3748 = vrot.lane.b32.xlu0 %v3601, 32
        %v3749 = vpop.permute.xlu0 %3748
        %3752 = vrot.lane.b32.xlu0 %v3602, 48
        %v3753 = vpop.permute.xlu0 %3752
        %3756 = vrot.lane.b32.xlu0 %v3603, 64
        %v3757 = vpop.permute.xlu0 %3756
        %3760 = vrot.lane.b32.xlu0 %v3604, 80
        %v3761 = vpop.permute.xlu0 %3760
        %3764 = vrot.lane.b32.xlu0 %v3605, 96
        %v3765 = vpop.permute.xlu0 %3764
        %3768 = vrot.lane.b32.xlu0 %v3606, 112
        %v3769 = vpop.permute.xlu0 %3768
        %3772 = vrot.lane.b32.xlu0 %v3736, 16
        %v3773 = vpop.permute.xlu0 %3772
        %3776 = vrot.lane.b32.xlu0 %v3737, 32
        %v3777 = vpop.permute.xlu0 %3776
        %3780 = vrot.lane.b32.xlu0 %v3738, 48
        %v3781 = vpop.permute.xlu0 %3780
        %3784 = vrot.lane.b32.xlu0 %v3739, 64
        %v3785 = vpop.permute.xlu0 %3784
        %3788 = vrot.lane.b32.xlu0 %v3740, 80
        %v3789 = vpop.permute.xlu0 %3788
        %3792 = vrot.lane.b32.xlu0 %v3741, 96
        %v3793 = vpop.permute.xlu0 %3792
        %3796 = vrot.lane.b32.xlu0 %v3742, 112
        %v3797 = vpop.permute.xlu0 %3796
        %v3799 = vsel %vm1809, %v3599, %v3745
        %v3800 = vsel %vm1811, %v3799, %v3749
        %v3801 = vsel %vm1813, %v3800, %v3753
        %v3802 = vsel %vm1815, %v3801, %v3757
        %v3803 = vsel %vm1817, %v3802, %v3761
        %v3804 = vsel %vm1819, %v3803, %v3765
        %v3805 = vsel %vm1821, %v3804, %v3769
        %v3806 = vsel %vm1809, %v3735, %v3773
        %v3807 = vsel %vm1811, %v3806, %v3777
        %v3808 = vsel %vm1813, %v3807, %v3781
        %v3809 = vsel %vm1815, %v3808, %v3785
        %v3810 = vsel %vm1817, %v3809, %v3789
        %v3811 = vsel %vm1819, %v3810, %v3793
        %v3812 = vsel %vm1821, %v3811, %v3797
        %vm3813 = vcmask 1045504
        %v3814 = vrot.slane %v1271, 2
        %v3815 = vrot.slane %v1407, 2
        %v3816 = vsel %vm3813, %v3814, %v3815
        %v3817 = vrot.slane %v1453, 2
        %v3818 = vsel %vm3813, %v3815, %v3817
        %v3819 = vrot.slane %v1272, 2
        %v3820 = vrot.slane %v1408, 2
        %v3821 = vsel %vm3813, %v3819, %v3820
        %v3822 = vrot.slane %v1477, 2
        %v3823 = vsel %vm3813, %v3820, %v3822
        %v3824 = vrot.slane %v1273, 2
        %v3825 = vrot.slane %v1409, 2
        %v3826 = vsel %vm3813, %v3824, %v3825
        %v3827 = vrot.slane %v1460, 2
        %v3828 = vsel %vm3813, %v3825, %v3827
        %v3829 = vrot.slane %v1274, 2
        %v3830 = vrot.slane %v1410, 2
        %v3831 = vsel %vm3813, %v3829, %v3830
        %v3832 = vrot.slane %v1478, 2
        %v3833 = vsel %vm3813, %v3830, %v3832
        %v3834 = vrot.slane %v1275, 2
        %v3835 = vrot.slane %v1411, 2
        %v3836 = vsel %vm3813, %v3834, %v3835
        %v3837 = vrot.slane %v1469, 2
        %v3838 = vsel %vm3813, %v3835, %v3837
        %v3839 = vrot.slane %v1276, 2
        %v3840 = vrot.slane %v1412, 2
        %v3841 = vsel %vm3813, %v3839, %v3840
        %v3842 = vrot.slane %v1479, 2
        %v3843 = vsel %vm3813, %v3840, %v3842
        %v3844 = vrot.slane %v1277, 2
        %v3845 = vrot.slane %v1413, 2
        %v3846 = vsel %vm3813, %v3844, %v3845
        %v3847 = vrot.slane %v1476, 2
        %v3848 = vsel %vm3813, %v3845, %v3847
        %v3849 = vrot.slane %v1278, 2
        %v3850 = vrot.slane %v1414, 2
        %v3851 = vsel %vm3813, %v3849, %v3850
        %v3852 = vrot.slane %v1480, 2
        %v3853 = vsel %vm3813, %v3850, %v3852
        %v3870 = vcombine.low %v3816, %v3826
        %v3871 = vcombine.high %v3816, %v3826
        %v3873 = vunpack.c.l.s4 1983009808
        %v3874 = vunpack.c.0.s8 %v3873
        %v3875 = vlaneseq
        %v3876 = vshrl.u32 %v3875, 7
        %v3877 = vsub.s32 %v3874, %v3876
        %v3878 = vrot.slane %v3870, %v3877
        %v3880 = vunpack.c.l.s4 1983009808
        %v3881 = vunpack.c.0.s8 %v3880
        %v3882 = vlaneseq
        %v3883 = vshrl.u32 %v3882, 7
        %v3884 = vsub.s32 %v3881, %v3883
        %v3885 = vrot.slane %v3871, %v3884
        %v3886 = vcombine.low %v3821, %v3831
        %v3887 = vcombine.high %v3821, %v3831
        %v3889 = vunpack.c.l.s4 1983009808
        %v3890 = vunpack.c.0.s8 %v3889
        %v3891 = vlaneseq
        %v3892 = vshrl.u32 %v3891, 7
        %v3893 = vsub.s32 %v3890, %v3892
        %v3894 = vrot.slane %v3886, %v3893
        %v3896 = vunpack.c.l.s4 1983009808
        %v3897 = vunpack.c.0.s8 %v3896
        %v3898 = vlaneseq
        %v3899 = vshrl.u32 %v3898, 7
        %v3900 = vsub.s32 %v3897, %v3899
        %v3901 = vrot.slane %v3887, %v3900
        %v3902 = vcombine.low %v3836, %v3846
        %v3903 = vcombine.high %v3836, %v3846
        %v3905 = vunpack.c.l.s4 1983009808
        %v3906 = vunpack.c.0.s8 %v3905
        %v3907 = vlaneseq
        %v3908 = vshrl.u32 %v3907, 7
        %v3909 = vsub.s32 %v3906, %v3908
        %v3910 = vrot.slane %v3902, %v3909
        %v3912 = vunpack.c.l.s4 1983009808
        %v3913 = vunpack.c.0.s8 %v3912
        %v3914 = vlaneseq
        %v3915 = vshrl.u32 %v3914, 7
        %v3916 = vsub.s32 %v3913, %v3915
        %v3917 = vrot.slane %v3903, %v3916
        %v3918 = vcombine.low %v3841, %v3851
        %v3919 = vcombine.high %v3841, %v3851
        %v3921 = vunpack.c.l.s4 1983009808
        %v3922 = vunpack.c.0.s8 %v3921
        %v3923 = vlaneseq
        %v3924 = vshrl.u32 %v3923, 7
        %v3925 = vsub.s32 %v3922, %v3924
        %v3926 = vrot.slane %v3918, %v3925
        %v3928 = vunpack.c.l.s4 1983009808
        %v3929 = vunpack.c.0.s8 %v3928
        %v3930 = vlaneseq
        %v3931 = vshrl.u32 %v3930, 7
        %v3932 = vsub.s32 %v3929, %v3931
        %v3933 = vrot.slane %v3919, %v3932
        %v3934 = vcombine.low %v3878, %v3894
        %v3935 = vcombine.high %v3878, %v3894
        %v3937 = vunpack.c.l.s4 1934713408
        %v3938 = vunpack.c.0.s8 %v3937
        %v3939 = vlaneseq
        %v3940 = vshrl.u32 %v3939, 7
        %v3941 = vsub.s32 %v3938, %v3940
        %v3942 = vrot.slane %v3934, %v3941
        %v3944 = vunpack.c.l.s4 1934713408
        %v3945 = vunpack.c.0.s8 %v3944
        %v3946 = vlaneseq
        %v3947 = vshrl.u32 %v3946, 7
        %v3948 = vsub.s32 %v3945, %v3947
        %v3949 = vrot.slane %v3935, %v3948
        %v3950 = vcombine.low %v3885, %v3901
        %v3951 = vcombine.high %v3885, %v3901
        %v3953 = vunpack.c.l.s4 1934713408
        %v3954 = vunpack.c.0.s8 %v3953
        %v3955 = vlaneseq
        %v3956 = vshrl.u32 %v3955, 7
        %v3957 = vsub.s32 %v3954, %v3956
        %v3958 = vrot.slane %v3950, %v3957
        %v3960 = vunpack.c.l.s4 1934713408
        %v3961 = vunpack.c.0.s8 %v3960
        %v3962 = vlaneseq
        %v3963 = vshrl.u32 %v3962, 7
        %v3964 = vsub.s32 %v3961, %v3963
        %v3965 = vrot.slane %v3951, %v3964
        %v3966 = vcombine.low %v3910, %v3926
        %v3967 = vcombine.high %v3910, %v3926
        %v3969 = vunpack.c.l.s4 1934713408
        %v3970 = vunpack.c.0.s8 %v3969
        %v3971 = vlaneseq
        %v3972 = vshrl.u32 %v3971, 7
        %v3973 = vsub.s32 %v3970, %v3972
        %v3974 = vrot.slane %v3966, %v3973
        %v3976 = vunpack.c.l.s4 1934713408
        %v3977 = vunpack.c.0.s8 %v3976
        %v3978 = vlaneseq
        %v3979 = vshrl.u32 %v3978, 7
        %v3980 = vsub.s32 %v3977, %v3979
        %v3981 = vrot.slane %v3967, %v3980
        %v3982 = vcombine.low %v3917, %v3933
        %v3983 = vcombine.high %v3917, %v3933
        %v3985 = vunpack.c.l.s4 1934713408
        %v3986 = vunpack.c.0.s8 %v3985
        %v3987 = vlaneseq
        %v3988 = vshrl.u32 %v3987, 7
        %v3989 = vsub.s32 %v3986, %v3988
        %v3990 = vrot.slane %v3982, %v3989
        %v3992 = vunpack.c.l.s4 1934713408
        %v3993 = vunpack.c.0.s8 %v3992
        %v3994 = vlaneseq
        %v3995 = vshrl.u32 %v3994, 7
        %v3996 = vsub.s32 %v3993, %v3995
        %v3997 = vrot.slane %v3983, %v3996
        %v3998 = vcombine.low %v3942, %v3974
        %v3999 = vcombine.high %v3942, %v3974
        %v4000 = vcombine.low %v3949, %v3981
        %v4001 = vcombine.high %v3949, %v3981
        %v4002 = vcombine.low %v3958, %v3990
        %v4003 = vcombine.high %v3958, %v3990
        %v4004 = vcombine.low %v3965, %v3997
        %v4005 = vcombine.high %v3965, %v3997
        %v4006 = vcombine.low %v3818, %v3828
        %v4007 = vcombine.high %v3818, %v3828
        %v4009 = vunpack.c.l.s4 1983009808
        %v4010 = vunpack.c.0.s8 %v4009
        %v4011 = vlaneseq
        %v4012 = vshrl.u32 %v4011, 7
        %v4013 = vsub.s32 %v4010, %v4012
        %v4014 = vrot.slane %v4006, %v4013
        %v4016 = vunpack.c.l.s4 1983009808
        %v4017 = vunpack.c.0.s8 %v4016
        %v4018 = vlaneseq
        %v4019 = vshrl.u32 %v4018, 7
        %v4020 = vsub.s32 %v4017, %v4019
        %v4021 = vrot.slane %v4007, %v4020
        %v4022 = vcombine.low %v3823, %v3833
        %v4023 = vcombine.high %v3823, %v3833
        %v4025 = vunpack.c.l.s4 1983009808
        %v4026 = vunpack.c.0.s8 %v4025
        %v4027 = vlaneseq
        %v4028 = vshrl.u32 %v4027, 7
        %v4029 = vsub.s32 %v4026, %v4028
        %v4030 = vrot.slane %v4022, %v4029
        %v4032 = vunpack.c.l.s4 1983009808
        %v4033 = vunpack.c.0.s8 %v4032
        %v4034 = vlaneseq
        %v4035 = vshrl.u32 %v4034, 7
        %v4036 = vsub.s32 %v4033, %v4035
        %v4037 = vrot.slane %v4023, %v4036
        %v4038 = vcombine.low %v3838, %v3848
        %v4039 = vcombine.high %v3838, %v3848
        %v4041 = vunpack.c.l.s4 1983009808
        %v4042 = vunpack.c.0.s8 %v4041
        %v4043 = vlaneseq
        %v4044 = vshrl.u32 %v4043, 7
        %v4045 = vsub.s32 %v4042, %v4044
        %v4046 = vrot.slane %v4038, %v4045
        %v4048 = vunpack.c.l.s4 1983009808
        %v4049 = vunpack.c.0.s8 %v4048
        %v4050 = vlaneseq
        %v4051 = vshrl.u32 %v4050, 7
        %v4052 = vsub.s32 %v4049, %v4051
        %v4053 = vrot.slane %v4039, %v4052
        %v4054 = vcombine.low %v3843, %v3853
        %v4055 = vcombine.high %v3843, %v3853
        %v4057 = vunpack.c.l.s4 1983009808
        %v4058 = vunpack.c.0.s8 %v4057
        %v4059 = vlaneseq
        %v4060 = vshrl.u32 %v4059, 7
        %v4061 = vsub.s32 %v4058, %v4060
        %v4062 = vrot.slane %v4054, %v4061
        %v4064 = vunpack.c.l.s4 1983009808
        %v4065 = vunpack.c.0.s8 %v4064
        %v4066 = vlaneseq
        %v4067 = vshrl.u32 %v4066, 7
        %v4068 = vsub.s32 %v4065, %v4067
        %v4069 = vrot.slane %v4055, %v4068
        %v4070 = vcombine.low %v4014, %v4030
        %v4071 = vcombine.high %v4014, %v4030
        %v4073 = vunpack.c.l.s4 1934713408
        %v4074 = vunpack.c.0.s8 %v4073
        %v4075 = vlaneseq
        %v4076 = vshrl.u32 %v4075, 7
        %v4077 = vsub.s32 %v4074, %v4076
        %v4078 = vrot.slane %v4070, %v4077
        %v4080 = vunpack.c.l.s4 1934713408
        %v4081 = vunpack.c.0.s8 %v4080
        %v4082 = vlaneseq
        %v4083 = vshrl.u32 %v4082, 7
        %v4084 = vsub.s32 %v4081, %v4083
        %v4085 = vrot.slane %v4071, %v4084
        %v4086 = vcombine.low %v4021, %v4037
        %v4087 = vcombine.high %v4021, %v4037
        %v4089 = vunpack.c.l.s4 1934713408
        %v4090 = vunpack.c.0.s8 %v4089
        %v4091 = vlaneseq
        %v4092 = vshrl.u32 %v4091, 7
        %v4093 = vsub.s32 %v4090, %v4092
        %v4094 = vrot.slane %v4086, %v4093
        %v4096 = vunpack.c.l.s4 1934713408
        %v4097 = vunpack.c.0.s8 %v4096
        %v4098 = vlaneseq
        %v4099 = vshrl.u32 %v4098, 7
        %v4100 = vsub.s32 %v4097, %v4099
        %v4101 = vrot.slane %v4087, %v4100
        %v4102 = vcombine.low %v4046, %v4062
        %v4103 = vcombine.high %v4046, %v4062
        %v4105 = vunpack.c.l.s4 1934713408
        %v4106 = vunpack.c.0.s8 %v4105
        %v4107 = vlaneseq
        %v4108 = vshrl.u32 %v4107, 7
        %v4109 = vsub.s32 %v4106, %v4108
        %v4110 = vrot.slane %v4102, %v4109
        %v4112 = vunpack.c.l.s4 1934713408
        %v4113 = vunpack.c.0.s8 %v4112
        %v4114 = vlaneseq
        %v4115 = vshrl.u32 %v4114, 7
        %v4116 = vsub.s32 %v4113, %v4115
        %v4117 = vrot.slane %v4103, %v4116
        %v4118 = vcombine.low %v4053, %v4069
        %v4119 = vcombine.high %v4053, %v4069
        %v4121 = vunpack.c.l.s4 1934713408
        %v4122 = vunpack.c.0.s8 %v4121
        %v4123 = vlaneseq
        %v4124 = vshrl.u32 %v4123, 7
        %v4125 = vsub.s32 %v4122, %v4124
        %v4126 = vrot.slane %v4118, %v4125
        %v4128 = vunpack.c.l.s4 1934713408
        %v4129 = vunpack.c.0.s8 %v4128
        %v4130 = vlaneseq
        %v4131 = vshrl.u32 %v4130, 7
        %v4132 = vsub.s32 %v4129, %v4131
        %v4133 = vrot.slane %v4119, %v4132
        %v4134 = vcombine.low %v4078, %v4110
        %v4135 = vcombine.high %v4078, %v4110
        %v4136 = vcombine.low %v4085, %v4117
        %v4137 = vcombine.high %v4085, %v4117
        %v4138 = vcombine.low %v4094, %v4126
        %v4139 = vcombine.high %v4094, %v4126
        %v4140 = vcombine.low %v4101, %v4133
        %v4141 = vcombine.high %v4101, %v4133
        %4143 = vrot.lane.b32.xlu0 %v3999, 16
        %v4144 = vpop.permute.xlu0 %4143
        %4147 = vrot.lane.b32.xlu0 %v4000, 32
        %v4148 = vpop.permute.xlu0 %4147
        %4151 = vrot.lane.b32.xlu0 %v4001, 48
        %v4152 = vpop.permute.xlu0 %4151
        %4155 = vrot.lane.b32.xlu0 %v4002, 64
        %v4156 = vpop.permute.xlu0 %4155
        %4159 = vrot.lane.b32.xlu0 %v4003, 80
        %v4160 = vpop.permute.xlu0 %4159
        %4163 = vrot.lane.b32.xlu0 %v4004, 96
        %v4164 = vpop.permute.xlu0 %4163
        %4167 = vrot.lane.b32.xlu0 %v4005, 112
        %v4168 = vpop.permute.xlu0 %4167
        %4171 = vrot.lane.b32.xlu0 %v4135, 16
        %v4172 = vpop.permute.xlu0 %4171
        %4175 = vrot.lane.b32.xlu0 %v4136, 32
        %v4176 = vpop.permute.xlu0 %4175
        %4179 = vrot.lane.b32.xlu0 %v4137, 48
        %v4180 = vpop.permute.xlu0 %4179
        %4183 = vrot.lane.b32.xlu0 %v4138, 64
        %v4184 = vpop.permute.xlu0 %4183
        %4187 = vrot.lane.b32.xlu0 %v4139, 80
        %v4188 = vpop.permute.xlu0 %4187
        %4191 = vrot.lane.b32.xlu0 %v4140, 96
        %v4192 = vpop.permute.xlu0 %4191
        %4195 = vrot.lane.b32.xlu0 %v4141, 112
        %v4196 = vpop.permute.xlu0 %4195
        %v4198 = vsel %vm1809, %v3998, %v4144
        %v4199 = vsel %vm1811, %v4198, %v4148
        %v4200 = vsel %vm1813, %v4199, %v4152
        %v4201 = vsel %vm1815, %v4200, %v4156
        %v4202 = vsel %vm1817, %v4201, %v4160
        %v4203 = vsel %vm1819, %v4202, %v4164
        %v4204 = vsel %vm1821, %v4203, %v4168
        %v4205 = vsel %vm1809, %v4134, %v4172
        %v4206 = vsel %vm1811, %v4205, %v4176
        %v4207 = vsel %vm1813, %v4206, %v4180
        %v4208 = vsel %vm1815, %v4207, %v4184
        %v4209 = vsel %vm1817, %v4208, %v4188
        %v4210 = vsel %vm1819, %v4209, %v4192
        %v4211 = vsel %vm1821, %v4210, %v4196
        %4212 = vrot.lane.b32.xlu0 %v3816, 127
        %v4213 = vpop.permute.xlu0 %4212
        %4214 = vrot.lane.b32.xlu0 %v3818, 127
        %v4215 = vpop.permute.xlu0 %4214
        %4216 = vrot.lane.b32.xlu0 %v3821, 127
        %v4217 = vpop.permute.xlu0 %4216
        %4218 = vrot.lane.b32.xlu0 %v3823, 127
        %v4219 = vpop.permute.xlu0 %4218
        %4220 = vrot.lane.b32.xlu0 %v3826, 127
        %v4221 = vpop.permute.xlu0 %4220
        %4222 = vrot.lane.b32.xlu0 %v3828, 127
        %v4223 = vpop.permute.xlu0 %4222
        %4224 = vrot.lane.b32.xlu0 %v3831, 127
        %v4225 = vpop.permute.xlu0 %4224
        %4226 = vrot.lane.b32.xlu0 %v3833, 127
        %v4227 = vpop.permute.xlu0 %4226
        %4228 = vrot.lane.b32.xlu0 %v3836, 127
        %v4229 = vpop.permute.xlu0 %4228
        %4230 = vrot.lane.b32.xlu0 %v3838, 127
        %v4231 = vpop.permute.xlu0 %4230
        %4232 = vrot.lane.b32.xlu0 %v3841, 127
        %v4233 = vpop.permute.xlu0 %4232
        %4234 = vrot.lane.b32.xlu0 %v3843, 127
        %v4235 = vpop.permute.xlu0 %4234
        %4236 = vrot.lane.b32.xlu0 %v3846, 127
        %v4237 = vpop.permute.xlu0 %4236
        %4238 = vrot.lane.b32.xlu0 %v3848, 127
        %v4239 = vpop.permute.xlu0 %4238
        %4240 = vrot.lane.b32.xlu0 %v3851, 127
        %v4241 = vpop.permute.xlu0 %4240
        %4242 = vrot.lane.b32.xlu0 %v3853, 127
        %v4243 = vpop.permute.xlu0 %4242
        %v4260 = vcombine.low %v4213, %v4221
        %v4261 = vcombine.high %v4213, %v4221
        %v4263 = vunpack.c.l.s4 1983009808
        %v4264 = vunpack.c.0.s8 %v4263
        %v4265 = vlaneseq
        %v4266 = vshrl.u32 %v4265, 7
        %v4267 = vsub.s32 %v4264, %v4266
        %v4268 = vrot.slane %v4260, %v4267
        %v4270 = vunpack.c.l.s4 1983009808
        %v4271 = vunpack.c.0.s8 %v4270
        %v4272 = vlaneseq
        %v4273 = vshrl.u32 %v4272, 7
        %v4274 = vsub.s32 %v4271, %v4273
        %v4275 = vrot.slane %v4261, %v4274
        %v4276 = vcombine.low %v4217, %v4225
        %v4277 = vcombine.high %v4217, %v4225
        %v4279 = vunpack.c.l.s4 1983009808
        %v4280 = vunpack.c.0.s8 %v4279
        %v4281 = vlaneseq
        %v4282 = vshrl.u32 %v4281, 7
        %v4283 = vsub.s32 %v4280, %v4282
        %v4284 = vrot.slane %v4276, %v4283
        %v4286 = vunpack.c.l.s4 1983009808
        %v4287 = vunpack.c.0.s8 %v4286
        %v4288 = vlaneseq
        %v4289 = vshrl.u32 %v4288, 7
        %v4290 = vsub.s32 %v4287, %v4289
        %v4291 = vrot.slane %v4277, %v4290
        %v4292 = vcombine.low %v4229, %v4237
        %v4293 = vcombine.high %v4229, %v4237
        %v4295 = vunpack.c.l.s4 1983009808
        %v4296 = vunpack.c.0.s8 %v4295
        %v4297 = vlaneseq
        %v4298 = vshrl.u32 %v4297, 7
        %v4299 = vsub.s32 %v4296, %v4298
        %v4300 = vrot.slane %v4292, %v4299
        %v4302 = vunpack.c.l.s4 1983009808
        %v4303 = vunpack.c.0.s8 %v4302
        %v4304 = vlaneseq
        %v4305 = vshrl.u32 %v4304, 7
        %v4306 = vsub.s32 %v4303, %v4305
        %v4307 = vrot.slane %v4293, %v4306
        %v4308 = vcombine.low %v4233, %v4241
        %v4309 = vcombine.high %v4233, %v4241
        %v4311 = vunpack.c.l.s4 1983009808
        %v4312 = vunpack.c.0.s8 %v4311
        %v4313 = vlaneseq
        %v4314 = vshrl.u32 %v4313, 7
        %v4315 = vsub.s32 %v4312, %v4314
        %v4316 = vrot.slane %v4308, %v4315
        %v4318 = vunpack.c.l.s4 1983009808
        %v4319 = vunpack.c.0.s8 %v4318
        %v4320 = vlaneseq
        %v4321 = vshrl.u32 %v4320, 7
        %v4322 = vsub.s32 %v4319, %v4321
        %v4323 = vrot.slane %v4309, %v4322
        %v4324 = vcombine.low %v4268, %v4284
        %v4325 = vcombine.high %v4268, %v4284
        %v4327 = vunpack.c.l.s4 1934713408
        %v4328 = vunpack.c.0.s8 %v4327
        %v4329 = vlaneseq
        %v4330 = vshrl.u32 %v4329, 7
        %v4331 = vsub.s32 %v4328, %v4330
        %v4332 = vrot.slane %v4324, %v4331
        %v4334 = vunpack.c.l.s4 1934713408
        %v4335 = vunpack.c.0.s8 %v4334
        %v4336 = vlaneseq
        %v4337 = vshrl.u32 %v4336, 7
        %v4338 = vsub.s32 %v4335, %v4337
        %v4339 = vrot.slane %v4325, %v4338
        %v4340 = vcombine.low %v4275, %v4291
        %v4341 = vcombine.high %v4275, %v4291
        %v4343 = vunpack.c.l.s4 1934713408
        %v4344 = vunpack.c.0.s8 %v4343
        %v4345 = vlaneseq
        %v4346 = vshrl.u32 %v4345, 7
        %v4347 = vsub.s32 %v4344, %v4346
        %v4348 = vrot.slane %v4340, %v4347
        %v4350 = vunpack.c.l.s4 1934713408
        %v4351 = vunpack.c.0.s8 %v4350
        %v4352 = vlaneseq
        %v4353 = vshrl.u32 %v4352, 7
        %v4354 = vsub.s32 %v4351, %v4353
        %v4355 = vrot.slane %v4341, %v4354
        %v4356 = vcombine.low %v4300, %v4316
        %v4357 = vcombine.high %v4300, %v4316
        %v4359 = vunpack.c.l.s4 1934713408
        %v4360 = vunpack.c.0.s8 %v4359
        %v4361 = vlaneseq
        %v4362 = vshrl.u32 %v4361, 7
        %v4363 = vsub.s32 %v4360, %v4362
        %v4364 = vrot.slane %v4356, %v4363
        %v4366 = vunpack.c.l.s4 1934713408
        %v4367 = vunpack.c.0.s8 %v4366
        %v4368 = vlaneseq
        %v4369 = vshrl.u32 %v4368, 7
        %v4370 = vsub.s32 %v4367, %v4369
        %v4371 = vrot.slane %v4357, %v4370
        %v4372 = vcombine.low %v4307, %v4323
        %v4373 = vcombine.high %v4307, %v4323
        %v4375 = vunpack.c.l.s4 1934713408
        %v4376 = vunpack.c.0.s8 %v4375
        %v4377 = vlaneseq
        %v4378 = vshrl.u32 %v4377, 7
        %v4379 = vsub.s32 %v4376, %v4378
        %v4380 = vrot.slane %v4372, %v4379
        %v4382 = vunpack.c.l.s4 1934713408
        %v4383 = vunpack.c.0.s8 %v4382
        %v4384 = vlaneseq
        %v4385 = vshrl.u32 %v4384, 7
        %v4386 = vsub.s32 %v4383, %v4385
        %v4387 = vrot.slane %v4373, %v4386
        %v4388 = vcombine.low %v4332, %v4364
        %v4389 = vcombine.high %v4332, %v4364
        %v4390 = vcombine.low %v4339, %v4371
        %v4391 = vcombine.high %v4339, %v4371
        %v4392 = vcombine.low %v4348, %v4380
        %v4393 = vcombine.high %v4348, %v4380
        %v4394 = vcombine.low %v4355, %v4387
        %v4395 = vcombine.high %v4355, %v4387
        %v4396 = vcombine.low %v4215, %v4223
        %v4397 = vcombine.high %v4215, %v4223
        %v4399 = vunpack.c.l.s4 1983009808
        %v4400 = vunpack.c.0.s8 %v4399
        %v4401 = vlaneseq
        %v4402 = vshrl.u32 %v4401, 7
        %v4403 = vsub.s32 %v4400, %v4402
        %v4404 = vrot.slane %v4396, %v4403
        %v4406 = vunpack.c.l.s4 1983009808
        %v4407 = vunpack.c.0.s8 %v4406
        %v4408 = vlaneseq
        %v4409 = vshrl.u32 %v4408, 7
        %v4410 = vsub.s32 %v4407, %v4409
        %v4411 = vrot.slane %v4397, %v4410
        %v4412 = vcombine.low %v4219, %v4227
        %v4413 = vcombine.high %v4219, %v4227
        %v4415 = vunpack.c.l.s4 1983009808
        %v4416 = vunpack.c.0.s8 %v4415
        %v4417 = vlaneseq
        %v4418 = vshrl.u32 %v4417, 7
        %v4419 = vsub.s32 %v4416, %v4418
        %v4420 = vrot.slane %v4412, %v4419
        %v4422 = vunpack.c.l.s4 1983009808
        %v4423 = vunpack.c.0.s8 %v4422
        %v4424 = vlaneseq
        %v4425 = vshrl.u32 %v4424, 7
        %v4426 = vsub.s32 %v4423, %v4425
        %v4427 = vrot.slane %v4413, %v4426
        %v4428 = vcombine.low %v4231, %v4239
        %v4429 = vcombine.high %v4231, %v4239
        %v4431 = vunpack.c.l.s4 1983009808
        %v4432 = vunpack.c.0.s8 %v4431
        %v4433 = vlaneseq
        %v4434 = vshrl.u32 %v4433, 7
        %v4435 = vsub.s32 %v4432, %v4434
        %v4436 = vrot.slane %v4428, %v4435
        %v4438 = vunpack.c.l.s4 1983009808
        %v4439 = vunpack.c.0.s8 %v4438
        %v4440 = vlaneseq
        %v4441 = vshrl.u32 %v4440, 7
        %v4442 = vsub.s32 %v4439, %v4441
        %v4443 = vrot.slane %v4429, %v4442
        %v4444 = vcombine.low %v4235, %v4243
        %v4445 = vcombine.high %v4235, %v4243
        %v4447 = vunpack.c.l.s4 1983009808
        %v4448 = vunpack.c.0.s8 %v4447
        %v4449 = vlaneseq
        %v4450 = vshrl.u32 %v4449, 7
        %v4451 = vsub.s32 %v4448, %v4450
        %v4452 = vrot.slane %v4444, %v4451
        %v4454 = vunpack.c.l.s4 1983009808
        %v4455 = vunpack.c.0.s8 %v4454
        %v4456 = vlaneseq
        %v4457 = vshrl.u32 %v4456, 7
        %v4458 = vsub.s32 %v4455, %v4457
        %v4459 = vrot.slane %v4445, %v4458
        %v4460 = vcombine.low %v4404, %v4420
        %v4461 = vcombine.high %v4404, %v4420
        %v4463 = vunpack.c.l.s4 1934713408
        %v4464 = vunpack.c.0.s8 %v4463
        %v4465 = vlaneseq
        %v4466 = vshrl.u32 %v4465, 7
        %v4467 = vsub.s32 %v4464, %v4466
        %v4468 = vrot.slane %v4460, %v4467
        %v4470 = vunpack.c.l.s4 1934713408
        %v4471 = vunpack.c.0.s8 %v4470
        %v4472 = vlaneseq
        %v4473 = vshrl.u32 %v4472, 7
        %v4474 = vsub.s32 %v4471, %v4473
        %v4475 = vrot.slane %v4461, %v4474
        %v4476 = vcombine.low %v4411, %v4427
        %v4477 = vcombine.high %v4411, %v4427
        %v4479 = vunpack.c.l.s4 1934713408
        %v4480 = vunpack.c.0.s8 %v4479
        %v4481 = vlaneseq
        %v4482 = vshrl.u32 %v4481, 7
        %v4483 = vsub.s32 %v4480, %v4482
        %v4484 = vrot.slane %v4476, %v4483
        %v4486 = vunpack.c.l.s4 1934713408
        %v4487 = vunpack.c.0.s8 %v4486
        %v4488 = vlaneseq
        %v4489 = vshrl.u32 %v4488, 7
        %v4490 = vsub.s32 %v4487, %v4489
        %v4491 = vrot.slane %v4477, %v4490
        %v4492 = vcombine.low %v4436, %v4452
        %v4493 = vcombine.high %v4436, %v4452
        %v4495 = vunpack.c.l.s4 1934713408
        %v4496 = vunpack.c.0.s8 %v4495
        %v4497 = vlaneseq
        %v4498 = vshrl.u32 %v4497, 7
        %v4499 = vsub.s32 %v4496, %v4498
        %v4500 = vrot.slane %v4492, %v4499
        %v4502 = vunpack.c.l.s4 1934713408
        %v4503 = vunpack.c.0.s8 %v4502
        %v4504 = vlaneseq
        %v4505 = vshrl.u32 %v4504, 7
        %v4506 = vsub.s32 %v4503, %v4505
        %v4507 = vrot.slane %v4493, %v4506
        %v4508 = vcombine.low %v4443, %v4459
        %v4509 = vcombine.high %v4443, %v4459
        %v4511 = vunpack.c.l.s4 1934713408
        %v4512 = vunpack.c.0.s8 %v4511
        %v4513 = vlaneseq
        %v4514 = vshrl.u32 %v4513, 7
        %v4515 = vsub.s32 %v4512, %v4514
        %v4516 = vrot.slane %v4508, %v4515
        %v4518 = vunpack.c.l.s4 1934713408
        %v4519 = vunpack.c.0.s8 %v4518
        %v4520 = vlaneseq
        %v4521 = vshrl.u32 %v4520, 7
        %v4522 = vsub.s32 %v4519, %v4521
        %v4523 = vrot.slane %v4509, %v4522
        %v4524 = vcombine.low %v4468, %v4500
        %v4525 = vcombine.high %v4468, %v4500
        %v4526 = vcombine.low %v4475, %v4507
        %v4527 = vcombine.high %v4475, %v4507
        %v4528 = vcombine.low %v4484, %v4516
        %v4529 = vcombine.high %v4484, %v4516
        %v4530 = vcombine.low %v4491, %v4523
        %v4531 = vcombine.high %v4491, %v4523
        %4533 = vrot.lane.b32.xlu0 %v4389, 16
        %v4534 = vpop.permute.xlu0 %4533
        %4537 = vrot.lane.b32.xlu0 %v4390, 32
        %v4538 = vpop.permute.xlu0 %4537
        %4541 = vrot.lane.b32.xlu0 %v4391, 48
        %v4542 = vpop.permute.xlu0 %4541
        %4545 = vrot.lane.b32.xlu0 %v4392, 64
        %v4546 = vpop.permute.xlu0 %4545
        %4549 = vrot.lane.b32.xlu0 %v4393, 80
        %v4550 = vpop.permute.xlu0 %4549
        %4553 = vrot.lane.b32.xlu0 %v4394, 96
        %v4554 = vpop.permute.xlu0 %4553
        %4557 = vrot.lane.b32.xlu0 %v4395, 112
        %v4558 = vpop.permute.xlu0 %4557
        %4561 = vrot.lane.b32.xlu0 %v4525, 16
        %v4562 = vpop.permute.xlu0 %4561
        %4565 = vrot.lane.b32.xlu0 %v4526, 32
        %v4566 = vpop.permute.xlu0 %4565
        %4569 = vrot.lane.b32.xlu0 %v4527, 48
        %v4570 = vpop.permute.xlu0 %4569
        %4573 = vrot.lane.b32.xlu0 %v4528, 64
        %v4574 = vpop.permute.xlu0 %4573
        %4577 = vrot.lane.b32.xlu0 %v4529, 80
        %v4578 = vpop.permute.xlu0 %4577
        %4581 = vrot.lane.b32.xlu0 %v4530, 96
        %v4582 = vpop.permute.xlu0 %4581
        %4585 = vrot.lane.b32.xlu0 %v4531, 112
        %v4586 = vpop.permute.xlu0 %4585
        %v4588 = vsel %vm1809, %v4388, %v4534
        %v4589 = vsel %vm1811, %v4588, %v4538
        %v4590 = vsel %vm1813, %v4589, %v4542
        %v4591 = vsel %vm1815, %v4590, %v4546
        %v4592 = vsel %vm1817, %v4591, %v4550
        %v4593 = vsel %vm1819, %v4592, %v4554
        %v4594 = vsel %vm1821, %v4593, %v4558
        %v4595 = vsel %vm1809, %v4524, %v4562
        %v4596 = vsel %vm1811, %v4595, %v4566
        %v4597 = vsel %vm1813, %v4596, %v4570
        %v4598 = vsel %vm1815, %v4597, %v4574
        %v4599 = vsel %vm1817, %v4598, %v4578
        %v4600 = vsel %vm1819, %v4599, %v4582
        %v4601 = vsel %vm1821, %v4600, %v4586
        %4602 = vrot.lane.b32.xlu0 %v3816, 126
        %v4603 = vpop.permute.xlu0 %4602
        %4604 = vrot.lane.b32.xlu0 %v3818, 126
        %v4605 = vpop.permute.xlu0 %4604
        %4606 = vrot.lane.b32.xlu0 %v3821, 126
        %v4607 = vpop.permute.xlu0 %4606
        %4608 = vrot.lane.b32.xlu0 %v3823, 126
        %v4609 = vpop.permute.xlu0 %4608
        %4610 = vrot.lane.b32.xlu0 %v3826, 126
        %v4611 = vpop.permute.xlu0 %4610
        %4612 = vrot.lane.b32.xlu0 %v3828, 126
        %v4613 = vpop.permute.xlu0 %4612
        %4614 = vrot.lane.b32.xlu0 %v3831, 126
        %v4615 = vpop.permute.xlu0 %4614
        %4616 = vrot.lane.b32.xlu0 %v3833, 126
        %v4617 = vpop.permute.xlu0 %4616
        %4618 = vrot.lane.b32.xlu0 %v3836, 126
        %v4619 = vpop.permute.xlu0 %4618
        %4620 = vrot.lane.b32.xlu0 %v3838, 126
        %v4621 = vpop.permute.xlu0 %4620
        %4622 = vrot.lane.b32.xlu0 %v3841, 126
        %v4623 = vpop.permute.xlu0 %4622
        %4624 = vrot.lane.b32.xlu0 %v3843, 126
        %v4625 = vpop.permute.xlu0 %4624
        %4626 = vrot.lane.b32.xlu0 %v3846, 126
        %v4627 = vpop.permute.xlu0 %4626
        %4628 = vrot.lane.b32.xlu0 %v3848, 126
        %v4629 = vpop.permute.xlu0 %4628
        %4630 = vrot.lane.b32.xlu0 %v3851, 126
        %v4631 = vpop.permute.xlu0 %4630
        %4632 = vrot.lane.b32.xlu0 %v3853, 126
        %v4633 = vpop.permute.xlu0 %4632
        %v4650 = vcombine.low %v4603, %v4611
        %v4651 = vcombine.high %v4603, %v4611
        %v4653 = vunpack.c.l.s4 1983009808
        %v4654 = vunpack.c.0.s8 %v4653
        %v4655 = vlaneseq
        %v4656 = vshrl.u32 %v4655, 7
        %v4657 = vsub.s32 %v4654, %v4656
        %v4658 = vrot.slane %v4650, %v4657
        %v4660 = vunpack.c.l.s4 1983009808
        %v4661 = vunpack.c.0.s8 %v4660
        %v4662 = vlaneseq
        %v4663 = vshrl.u32 %v4662, 7
        %v4664 = vsub.s32 %v4661, %v4663
        %v4665 = vrot.slane %v4651, %v4664
        %v4666 = vcombine.low %v4607, %v4615
        %v4667 = vcombine.high %v4607, %v4615
        %v4669 = vunpack.c.l.s4 1983009808
        %v4670 = vunpack.c.0.s8 %v4669
        %v4671 = vlaneseq
        %v4672 = vshrl.u32 %v4671, 7
        %v4673 = vsub.s32 %v4670, %v4672
        %v4674 = vrot.slane %v4666, %v4673
        %v4676 = vunpack.c.l.s4 1983009808
        %v4677 = vunpack.c.0.s8 %v4676
        %v4678 = vlaneseq
        %v4679 = vshrl.u32 %v4678, 7
        %v4680 = vsub.s32 %v4677, %v4679
        %v4681 = vrot.slane %v4667, %v4680
        %v4682 = vcombine.low %v4619, %v4627
        %v4683 = vcombine.high %v4619, %v4627
        %v4685 = vunpack.c.l.s4 1983009808
        %v4686 = vunpack.c.0.s8 %v4685
        %v4687 = vlaneseq
        %v4688 = vshrl.u32 %v4687, 7
        %v4689 = vsub.s32 %v4686, %v4688
        %v4690 = vrot.slane %v4682, %v4689
        %v4692 = vunpack.c.l.s4 1983009808
        %v4693 = vunpack.c.0.s8 %v4692
        %v4694 = vlaneseq
        %v4695 = vshrl.u32 %v4694, 7
        %v4696 = vsub.s32 %v4693, %v4695
        %v4697 = vrot.slane %v4683, %v4696
        %v4698 = vcombine.low %v4623, %v4631
        %v4699 = vcombine.high %v4623, %v4631
        %v4701 = vunpack.c.l.s4 1983009808
        %v4702 = vunpack.c.0.s8 %v4701
        %v4703 = vlaneseq
        %v4704 = vshrl.u32 %v4703, 7
        %v4705 = vsub.s32 %v4702, %v4704
        %v4706 = vrot.slane %v4698, %v4705
        %v4708 = vunpack.c.l.s4 1983009808
        %v4709 = vunpack.c.0.s8 %v4708
        %v4710 = vlaneseq
        %v4711 = vshrl.u32 %v4710, 7
        %v4712 = vsub.s32 %v4709, %v4711
        %v4713 = vrot.slane %v4699, %v4712
        %v4714 = vcombine.low %v4658, %v4674
        %v4715 = vcombine.high %v4658, %v4674
        %v4717 = vunpack.c.l.s4 1934713408
        %v4718 = vunpack.c.0.s8 %v4717
        %v4719 = vlaneseq
        %v4720 = vshrl.u32 %v4719, 7
        %v4721 = vsub.s32 %v4718, %v4720
        %v4722 = vrot.slane %v4714, %v4721
        %v4724 = vunpack.c.l.s4 1934713408
        %v4725 = vunpack.c.0.s8 %v4724
        %v4726 = vlaneseq
        %v4727 = vshrl.u32 %v4726, 7
        %v4728 = vsub.s32 %v4725, %v4727
        %v4729 = vrot.slane %v4715, %v4728
        %v4730 = vcombine.low %v4665, %v4681
        %v4731 = vcombine.high %v4665, %v4681
        %v4733 = vunpack.c.l.s4 1934713408
        %v4734 = vunpack.c.0.s8 %v4733
        %v4735 = vlaneseq
        %v4736 = vshrl.u32 %v4735, 7
        %v4737 = vsub.s32 %v4734, %v4736
        %v4738 = vrot.slane %v4730, %v4737
        %v4740 = vunpack.c.l.s4 1934713408
        %v4741 = vunpack.c.0.s8 %v4740
        %v4742 = vlaneseq
        %v4743 = vshrl.u32 %v4742, 7
        %v4744 = vsub.s32 %v4741, %v4743
        %v4745 = vrot.slane %v4731, %v4744
        %v4746 = vcombine.low %v4690, %v4706
        %v4747 = vcombine.high %v4690, %v4706
        %v4749 = vunpack.c.l.s4 1934713408
        %v4750 = vunpack.c.0.s8 %v4749
        %v4751 = vlaneseq
        %v4752 = vshrl.u32 %v4751, 7
        %v4753 = vsub.s32 %v4750, %v4752
        %v4754 = vrot.slane %v4746, %v4753
        %v4756 = vunpack.c.l.s4 1934713408
        %v4757 = vunpack.c.0.s8 %v4756
        %v4758 = vlaneseq
        %v4759 = vshrl.u32 %v4758, 7
        %v4760 = vsub.s32 %v4757, %v4759
        %v4761 = vrot.slane %v4747, %v4760
        %v4762 = vcombine.low %v4697, %v4713
        %v4763 = vcombine.high %v4697, %v4713
        %v4765 = vunpack.c.l.s4 1934713408
        %v4766 = vunpack.c.0.s8 %v4765
        %v4767 = vlaneseq
        %v4768 = vshrl.u32 %v4767, 7
        %v4769 = vsub.s32 %v4766, %v4768
        %v4770 = vrot.slane %v4762, %v4769
        %v4772 = vunpack.c.l.s4 1934713408
        %v4773 = vunpack.c.0.s8 %v4772
        %v4774 = vlaneseq
        %v4775 = vshrl.u32 %v4774, 7
        %v4776 = vsub.s32 %v4773, %v4775
        %v4777 = vrot.slane %v4763, %v4776
        %v4778 = vcombine.low %v4722, %v4754
        %v4779 = vcombine.high %v4722, %v4754
        %v4780 = vcombine.low %v4729, %v4761
        %v4781 = vcombine.high %v4729, %v4761
        %v4782 = vcombine.low %v4738, %v4770
        %v4783 = vcombine.high %v4738, %v4770
        %v4784 = vcombine.low %v4745, %v4777
        %v4785 = vcombine.high %v4745, %v4777
        %v4786 = vcombine.low %v4605, %v4613
        %v4787 = vcombine.high %v4605, %v4613
        %v4789 = vunpack.c.l.s4 1983009808
        %v4790 = vunpack.c.0.s8 %v4789
        %v4791 = vlaneseq
        %v4792 = vshrl.u32 %v4791, 7
        %v4793 = vsub.s32 %v4790, %v4792
        %v4794 = vrot.slane %v4786, %v4793
        %v4796 = vunpack.c.l.s4 1983009808
        %v4797 = vunpack.c.0.s8 %v4796
        %v4798 = vlaneseq
        %v4799 = vshrl.u32 %v4798, 7
        %v4800 = vsub.s32 %v4797, %v4799
        %v4801 = vrot.slane %v4787, %v4800
        %v4802 = vcombine.low %v4609, %v4617
        %v4803 = vcombine.high %v4609, %v4617
        %v4805 = vunpack.c.l.s4 1983009808
        %v4806 = vunpack.c.0.s8 %v4805
        %v4807 = vlaneseq
        %v4808 = vshrl.u32 %v4807, 7
        %v4809 = vsub.s32 %v4806, %v4808
        %v4810 = vrot.slane %v4802, %v4809
        %v4812 = vunpack.c.l.s4 1983009808
        %v4813 = vunpack.c.0.s8 %v4812
        %v4814 = vlaneseq
        %v4815 = vshrl.u32 %v4814, 7
        %v4816 = vsub.s32 %v4813, %v4815
        %v4817 = vrot.slane %v4803, %v4816
        %v4818 = vcombine.low %v4621, %v4629
        %v4819 = vcombine.high %v4621, %v4629
        %v4821 = vunpack.c.l.s4 1983009808
        %v4822 = vunpack.c.0.s8 %v4821
        %v4823 = vlaneseq
        %v4824 = vshrl.u32 %v4823, 7
        %v4825 = vsub.s32 %v4822, %v4824
        %v4826 = vrot.slane %v4818, %v4825
        %v4828 = vunpack.c.l.s4 1983009808
        %v4829 = vunpack.c.0.s8 %v4828
        %v4830 = vlaneseq
        %v4831 = vshrl.u32 %v4830, 7
        %v4832 = vsub.s32 %v4829, %v4831
        %v4833 = vrot.slane %v4819, %v4832
        %v4834 = vcombine.low %v4625, %v4633
        %v4835 = vcombine.high %v4625, %v4633
        %v4837 = vunpack.c.l.s4 1983009808
        %v4838 = vunpack.c.0.s8 %v4837
        %v4839 = vlaneseq
        %v4840 = vshrl.u32 %v4839, 7
        %v4841 = vsub.s32 %v4838, %v4840
        %v4842 = vrot.slane %v4834, %v4841
        %v4844 = vunpack.c.l.s4 1983009808
        %v4845 = vunpack.c.0.s8 %v4844
        %v4846 = vlaneseq
        %v4847 = vshrl.u32 %v4846, 7
        %v4848 = vsub.s32 %v4845, %v4847
        %v4849 = vrot.slane %v4835, %v4848
        %v4850 = vcombine.low %v4794, %v4810
        %v4851 = vcombine.high %v4794, %v4810
        %v4853 = vunpack.c.l.s4 1934713408
        %v4854 = vunpack.c.0.s8 %v4853
        %v4855 = vlaneseq
        %v4856 = vshrl.u32 %v4855, 7
        %v4857 = vsub.s32 %v4854, %v4856
        %v4858 = vrot.slane %v4850, %v4857
        %v4860 = vunpack.c.l.s4 1934713408
        %v4861 = vunpack.c.0.s8 %v4860
        %v4862 = vlaneseq
        %v4863 = vshrl.u32 %v4862, 7
        %v4864 = vsub.s32 %v4861, %v4863
        %v4865 = vrot.slane %v4851, %v4864
        %v4866 = vcombine.low %v4801, %v4817
        %v4867 = vcombine.high %v4801, %v4817
        %v4869 = vunpack.c.l.s4 1934713408
        %v4870 = vunpack.c.0.s8 %v4869
        %v4871 = vlaneseq
        %v4872 = vshrl.u32 %v4871, 7
        %v4873 = vsub.s32 %v4870, %v4872
        %v4874 = vrot.slane %v4866, %v4873
        %v4876 = vunpack.c.l.s4 1934713408
        %v4877 = vunpack.c.0.s8 %v4876
        %v4878 = vlaneseq
        %v4879 = vshrl.u32 %v4878, 7
        %v4880 = vsub.s32 %v4877, %v4879
        %v4881 = vrot.slane %v4867, %v4880
        %v4882 = vcombine.low %v4826, %v4842
        %v4883 = vcombine.high %v4826, %v4842
        %v4885 = vunpack.c.l.s4 1934713408
        %v4886 = vunpack.c.0.s8 %v4885
        %v4887 = vlaneseq
        %v4888 = vshrl.u32 %v4887, 7
        %v4889 = vsub.s32 %v4886, %v4888
        %v4890 = vrot.slane %v4882, %v4889
        %v4892 = vunpack.c.l.s4 1934713408
        %v4893 = vunpack.c.0.s8 %v4892
        %v4894 = vlaneseq
        %v4895 = vshrl.u32 %v4894, 7
        %v4896 = vsub.s32 %v4893, %v4895
        %v4897 = vrot.slane %v4883, %v4896
        %v4898 = vcombine.low %v4833, %v4849
        %v4899 = vcombine.high %v4833, %v4849
        %v4901 = vunpack.c.l.s4 1934713408
        %v4902 = vunpack.c.0.s8 %v4901
        %v4903 = vlaneseq
        %v4904 = vshrl.u32 %v4903, 7
        %v4905 = vsub.s32 %v4902, %v4904
        %v4906 = vrot.slane %v4898, %v4905
        %v4908 = vunpack.c.l.s4 1934713408
        %v4909 = vunpack.c.0.s8 %v4908
        %v4910 = vlaneseq
        %v4911 = vshrl.u32 %v4910, 7
        %v4912 = vsub.s32 %v4909, %v4911
        %v4913 = vrot.slane %v4899, %v4912
        %v4914 = vcombine.low %v4858, %v4890
        %v4915 = vcombine.high %v4858, %v4890
        %v4916 = vcombine.low %v4865, %v4897
        %v4917 = vcombine.high %v4865, %v4897
        %v4918 = vcombine.low %v4874, %v4906
        %v4919 = vcombine.high %v4874, %v4906
        %v4920 = vcombine.low %v4881, %v4913
        %v4921 = vcombine.high %v4881, %v4913
        %4923 = vrot.lane.b32.xlu0 %v4779, 16
        %v4924 = vpop.permute.xlu0 %4923
        %4927 = vrot.lane.b32.xlu0 %v4780, 32
        %v4928 = vpop.permute.xlu0 %4927
        %4931 = vrot.lane.b32.xlu0 %v4781, 48
        %v4932 = vpop.permute.xlu0 %4931
        %4935 = vrot.lane.b32.xlu0 %v4782, 64
        %v4936 = vpop.permute.xlu0 %4935
        %4939 = vrot.lane.b32.xlu0 %v4783, 80
        %v4940 = vpop.permute.xlu0 %4939
        %4943 = vrot.lane.b32.xlu0 %v4784, 96
        %v4944 = vpop.permute.xlu0 %4943
        %4947 = vrot.lane.b32.xlu0 %v4785, 112
        %v4948 = vpop.permute.xlu0 %4947
        %4951 = vrot.lane.b32.xlu0 %v4915, 16
        %v4952 = vpop.permute.xlu0 %4951
        %4955 = vrot.lane.b32.xlu0 %v4916, 32
        %v4956 = vpop.permute.xlu0 %4955
        %4959 = vrot.lane.b32.xlu0 %v4917, 48
        %v4960 = vpop.permute.xlu0 %4959
        %4963 = vrot.lane.b32.xlu0 %v4918, 64
        %v4964 = vpop.permute.xlu0 %4963
        %4967 = vrot.lane.b32.xlu0 %v4919, 80
        %v4968 = vpop.permute.xlu0 %4967
        %4971 = vrot.lane.b32.xlu0 %v4920, 96
        %v4972 = vpop.permute.xlu0 %4971
        %4975 = vrot.lane.b32.xlu0 %v4921, 112
        %v4976 = vpop.permute.xlu0 %4975
        %v4978 = vsel %vm1809, %v4778, %v4924
        %v4979 = vsel %vm1811, %v4978, %v4928
        %v4980 = vsel %vm1813, %v4979, %v4932
        %v4981 = vsel %vm1815, %v4980, %v4936
        %v4982 = vsel %vm1817, %v4981, %v4940
        %v4983 = vsel %vm1819, %v4982, %v4944
        %v4984 = vsel %vm1821, %v4983, %v4948
        %v4985 = vsel %vm1809, %v4914, %v4952
        %v4986 = vsel %vm1811, %v4985, %v4956
        %v4987 = vsel %vm1813, %v4986, %v4960
        %v4988 = vsel %vm1815, %v4987, %v4964
        %v4989 = vsel %vm1817, %v4988, %v4968
        %v4990 = vsel %vm1819, %v4989, %v4972
        %v4991 = vsel %vm1821, %v4990, %v4976
        %v4992 = vld [vmem:[%s4] sm:$0xff]
        %v4993 = vld [vmem:[%s4 + $0x8] sm:$0xff]
        %v4994 = vld [vmem:[%s5] sm:$0xff]
        %v4995 = vld [vmem:[%s5 + $0x8] sm:$0xff]
        %4997 = vset.pattern.permute.xlu0 0
        %4998 = vperm.xlu0 %4997, %v4994
        %v4999 = vpop.permute.xlu0 %4998
        %5002 = vset.pattern.permute.xlu0 0
        %5003 = vperm.xlu0 %5002, %v4995
        %v5004 = vpop.permute.xlu0 %5003
        %vm5006 = vcmask 588800
        %v5008 = vsel %vm5006, %v4992, 0
        %v5011 = vsel %vm5006, %v4993, 0
        %5013 = vmatprep.subr.mxu0 %v1829
        %5014 = vmatpush1.msra.mxu0 %v1822
        %5015 = vmatprep.subr.mxu0 %v2235
        %5016 = vmatpush1.msra.mxu0 %v2228
        %5017 = vmatprep.subr.mxu0 %v2625
        %5018 = vmatpush1.msra.mxu0 %v2618
        %5019 = vmatprep.subr.mxu0 %v3032
        %5020 = vmatpush1.msra.mxu0 %v3025
        %5021 = vmatprep.subr.mxu0 %v3422
        %5022 = vmatpush1.msra.mxu0 %v3415
        %5023 = vmatprep.subr.mxu0 %v3812
        %5024 = vmatpush1.msra.mxu0 %v3805
        %5025 = vmatprep.subr.mxu0 %v4211
        %5026 = vmatpush1.msra.mxu0 %v4204
        %5027 = vmatprep.subr.mxu0 %v4601
        %5028 = vmatpush1.msra.mxu0 %v4594
        %5029 = vmatprep.subr.mxu0 %v4991
        %5030 = vmatpush1.msra.mxu0 %v4984
        %5031 = vmatprep.subr.mxu0 0.0
        %5032 = vmatpush1.msra.mxu0 0.0
        %5033 = vmatprep.subr.mxu0 0.0
        %5034 = vmatpush1.msra.mxu0 0.0
        %5035 = vmatprep.subr.mxu0 0.0
        %5036 = vmatpush1.msra.mxu0 0.0
        %5037 = vmatprep.subr.mxu0 0.0
        %5038 = vmatpush1.msra.mxu0 0.0
        %5039 = vmatprep.subr.mxu0 0.0
        %5040 = vmatpush1.msra.mxu0 0.0
        %5041 = vmatprep.subr.mxu0 0.0
        %5042 = vmatpush1.msra.mxu0 0.0
        %5043 = vmatprep.subr.mxu0 0.0
        %5044 = vmatpush1.msra.mxu0 0.0
        %5045 = vmatprep.subr.mxu0 0.0
        %5046 = vmatpush1.msra.mxu0 0.0
        %5047 = vmatprep.subr.mxu0 0.0
        %5048 = vmatpush1.msra.mxu0 0.0
        %5049 = vmatprep.subr.mxu0 0.0
        %5050 = vmatpush1.msra.mxu0 0.0
        %5051 = vmatprep.subr.mxu0 0.0
        %5052 = vmatpush1.msra.mxu0 0.0
        %5053 = vmatprep.subr.mxu0 0.0
        %5054 = vmatpush1.msra.mxu0 0.0
        %5055 = vmatprep.subr.mxu0 0.0
        %5056 = vmatpush1.msra.mxu0 0.0
        %5057 = vmatprep.subr.mxu0 0.0
        %5058 = vmatpush1.msra.mxu0 0.0
        %5059 = vmatprep.subr.mxu0 0.0
        %5060 = vmatpush1.msra.mxu0 0.0
        %5061 = vmatprep.subr.mxu0 0.0
        %5062 = vmatpush1.msra.mxu0 0.0
        %5063 = vmatprep.subr.mxu0 0.0
        %5064 = vmatpush1.msra.mxu0 0.0
        %5065 = vmatprep.subr.mxu0 0.0
        %5066 = vmatpush1.msra.mxu0 0.0
        %5067 = vmatprep.subr.mxu0 0.0
        %5068 = vmatpush1.msra.mxu0 0.0
        %5069 = vmatprep.subr.mxu0 0.0
        %5070 = vmatpush1.msra.mxu0 0.0
        %5071 = vmatprep.subr.mxu0 0.0
        %5072 = vmatpush1.msra.mxu0 0.0
        %5073 = vmatprep.subr.mxu0 0.0
        %5074 = vmatpush1.msra.mxu0 0.0
        %5075 = vmatprep.subr.mxu0 0.0
        %5076 = vmatpush1.msra.mxu0 0.0
        %5077 = vmatprep.mubr.f32.mxu0 0.0
        %5078 = vmatmul.mubr.f32.gmra.mrb[0].mxu0 %v5008
        %v5079 = vpop.f32.mrb[0].mxu0
        %v5080 = vadd.f32 %v4999, %v5079
        %v5081 = vpop.f32.mrb[0].mxu0
        %v5082 = vadd.f32 %v4999, %v5081
        %5083 = vmatprep.mubr.f32.mxu0 0.0
        %5084 = vmatmul.mubr.f32.gmra.mrb[0].mxu0 %v5011
        %v5085 = vpop.f32.mrb[0].mxu0
        %v5086 = vadd.f32 %v5004, %v5085
        %v5087 = vpop.f32.mrb[0].mxu0
        %v5088 = vadd.f32 %v5004, %v5087
        %5089 = vdwg.mxu0
        %v5090 = vmax.f32 %v5080, 0.0
        %v5091 = vmax.f32 %v5082, 0.0
        %v5092 = vmax.f32 %v5086, 0.0
        %v5093 = vmax.f32 %v5088, 0.0
        %v5098 = vcombine.low %v5090, %v5091
        %v5099 = vcombine.high %v5090, %v5091
        %v5100 = vcombine.low %v5092, %v5093
        %v5101 = vcombine.high %v5092, %v5093
        %v5107 = vunpack.c.l.s4 1935823168
        %v5108 = vunpack.c.0.s8 %v5107
        %v5109 = vlaneseq
        %v5110 = vshrl.u32 %v5109, 7
        %v5111 = vsub.s32 %v5108, %v5110
        %v5112 = vrot.slane %v5098, %v5111
        %v5114 = vunpack.c.l.s4 1935823168
        %v5115 = vunpack.c.0.s8 %v5114
        %v5116 = vlaneseq
        %v5117 = vshrl.u32 %v5116, 7
        %v5118 = vsub.s32 %v5115, %v5117
        %v5119 = vrot.slane %v5099, %v5118
        %v5121 = vunpack.c.l.s4 1935823168
        %v5122 = vunpack.c.0.s8 %v5121
        %v5123 = vlaneseq
        %v5124 = vshrl.u32 %v5123, 7
        %v5125 = vsub.s32 %v5122, %v5124
        %v5126 = vrot.slane %v5100, %v5125
        %v5128 = vunpack.c.l.s4 1935823168
        %v5129 = vunpack.c.0.s8 %v5128
        %v5130 = vlaneseq
        %v5131 = vshrl.u32 %v5130, 7
        %v5132 = vsub.s32 %v5129, %v5131
        %v5133 = vrot.slane %v5101, %v5132
        %s5134 = smul.u32 4, 512
        %s5135 = smul.u32 %s5134, 1
        %s5136 = sshll.u32 %s5135, 4
        %5137 = dma.done [#allocation3], %s5136
        %v5142 = vlaneseq
        %v5143 = vshrl.u32 %v5142, 7
        %v5144 = vsub.s32 0, %v5143
        %v5145 = vrot.slane %v5112, %v5144
        %v5146 = vlaneseq
        %v5147 = vshrl.u32 %v5146, 7
        %v5148 = vsub.s32 1, %v5147
        %v5149 = vrot.slane %v5112, %v5148
        %v5150 = vlaneseq
        %v5151 = vshrl.u32 %v5150, 7
        %v5152 = vsub.s32 2, %v5151
        %v5153 = vrot.slane %v5112, %v5152
        %v5154 = vlaneseq
        %v5155 = vshrl.u32 %v5154, 7
        %v5156 = vsub.s32 3, %v5155
        %v5157 = vrot.slane %v5112, %v5156
        %v5158 = vlaneseq
        %v5159 = vshrl.u32 %v5158, 7
        %v5160 = vsub.s32 4, %v5159
        %v5161 = vrot.slane %v5112, %v5160
        %v5162 = vlaneseq
        %v5163 = vshrl.u32 %v5162, 7
        %v5164 = vsub.s32 5, %v5163
        %v5165 = vrot.slane %v5112, %v5164
        %v5166 = vlaneseq
        %v5167 = vshrl.u32 %v5166, 7
        %v5168 = vsub.s32 6, %v5167
        %v5169 = vrot.slane %v5112, %v5168
        %v5170 = vlaneseq
        %v5171 = vshrl.u32 %v5170, 7
        %v5172 = vsub.s32 7, %v5171
        %v5173 = vrot.slane %v5112, %v5172
        %v5174 = vlaneseq
        %v5175 = vshrl.u32 %v5174, 7
        %v5176 = vsub.s32 0, %v5175
        %v5177 = vrot.slane %v5119, %v5176
        %v5178 = vlaneseq
        %v5179 = vshrl.u32 %v5178, 7
        %v5180 = vsub.s32 1, %v5179
        %v5181 = vrot.slane %v5119, %v5180
        %v5182 = vlaneseq
        %v5183 = vshrl.u32 %v5182, 7
        %v5184 = vsub.s32 2, %v5183
        %v5185 = vrot.slane %v5119, %v5184
        %v5186 = vlaneseq
        %v5187 = vshrl.u32 %v5186, 7
        %v5188 = vsub.s32 3, %v5187
        %v5189 = vrot.slane %v5119, %v5188
        %v5190 = vlaneseq
        %v5191 = vshrl.u32 %v5190, 7
        %v5192 = vsub.s32 4, %v5191
        %v5193 = vrot.slane %v5119, %v5192
        %v5194 = vlaneseq
        %v5195 = vshrl.u32 %v5194, 7
        %v5196 = vsub.s32 5, %v5195
        %v5197 = vrot.slane %v5119, %v5196
        %v5198 = vlaneseq
        %v5199 = vshrl.u32 %v5198, 7
        %v5200 = vsub.s32 6, %v5199
        %v5201 = vrot.slane %v5119, %v5200
        %v5202 = vlaneseq
        %v5203 = vshrl.u32 %v5202, 7
        %v5204 = vsub.s32 7, %v5203
        %v5205 = vrot.slane %v5119, %v5204
        %v5206 = vlaneseq
        %v5207 = vshrl.u32 %v5206, 7
        %v5208 = vsub.s32 0, %v5207
        %v5209 = vrot.slane %v5126, %v5208
        %v5210 = vlaneseq
        %v5211 = vshrl.u32 %v5210, 7
        %v5212 = vsub.s32 1, %v5211
        %v5213 = vrot.slane %v5126, %v5212
        %v5214 = vlaneseq
        %v5215 = vshrl.u32 %v5214, 7
        %v5216 = vsub.s32 2, %v5215
        %v5217 = vrot.slane %v5126, %v5216
        %v5218 = vlaneseq
        %v5219 = vshrl.u32 %v5218, 7
        %v5220 = vsub.s32 3, %v5219
        %v5221 = vrot.slane %v5126, %v5220
        %v5222 = vlaneseq
        %v5223 = vshrl.u32 %v5222, 7
        %v5224 = vsub.s32 4, %v5223
        %v5225 = vrot.slane %v5126, %v5224
        %v5226 = vlaneseq
        %v5227 = vshrl.u32 %v5226, 7
        %v5228 = vsub.s32 5, %v5227
        %v5229 = vrot.slane %v5126, %v5228
        %v5230 = vlaneseq
        %v5231 = vshrl.u32 %v5230, 7
        %v5232 = vsub.s32 6, %v5231
        %v5233 = vrot.slane %v5126, %v5232
        %v5234 = vlaneseq
        %v5235 = vshrl.u32 %v5234, 7
        %v5236 = vsub.s32 7, %v5235
        %v5237 = vrot.slane %v5126, %v5236
        %v5238 = vlaneseq
        %v5239 = vshrl.u32 %v5238, 7
        %v5240 = vsub.s32 0, %v5239
        %v5241 = vrot.slane %v5133, %v5240
        %v5242 = vlaneseq
        %v5243 = vshrl.u32 %v5242, 7
        %v5244 = vsub.s32 1, %v5243
        %v5245 = vrot.slane %v5133, %v5244
        %v5246 = vlaneseq
        %v5247 = vshrl.u32 %v5246, 7
        %v5248 = vsub.s32 2, %v5247
        %v5249 = vrot.slane %v5133, %v5248
        %v5250 = vlaneseq
        %v5251 = vshrl.u32 %v5250, 7
        %v5252 = vsub.s32 3, %v5251
        %v5253 = vrot.slane %v5133, %v5252
        %v5254 = vlaneseq
        %v5255 = vshrl.u32 %v5254, 7
        %v5256 = vsub.s32 4, %v5255
        %v5257 = vrot.slane %v5133, %v5256
        %v5258 = vlaneseq
        %v5259 = vshrl.u32 %v5258, 7
        %v5260 = vsub.s32 5, %v5259
        %v5261 = vrot.slane %v5133, %v5260
        %v5262 = vlaneseq
        %v5263 = vshrl.u32 %v5262, 7
        %v5264 = vsub.s32 6, %v5263
        %v5265 = vrot.slane %v5133, %v5264
        %v5266 = vlaneseq
        %v5267 = vshrl.u32 %v5266, 7
        %v5268 = vsub.s32 7, %v5267
        %v5269 = vrot.slane %v5133, %v5268
        %v5302 = vpack.c.bf16 %v5145, %v5145
        %v5303 = vpack.c.bf16 %v5149, %v5149
        %v5304 = vpack.c.bf16 %v5153, %v5153
        %v5305 = vpack.c.bf16 %v5157, %v5157
        %v5306 = vpack.c.bf16 %v5161, %v5161
        %v5307 = vpack.c.bf16 %v5165, %v5165
        %v5308 = vpack.c.bf16 %v5169, %v5169
        %v5309 = vpack.c.bf16 %v5173, %v5173
        %v5310 = vpack.c.bf16 %v5177, %v5177
        %v5311 = vpack.c.bf16 %v5181, %v5181
        %v5312 = vpack.c.bf16 %v5185, %v5185
        %v5313 = vpack.c.bf16 %v5189, %v5189
        %v5314 = vpack.c.bf16 %v5193, %v5193
        %v5315 = vpack.c.bf16 %v5197, %v5197
        %v5316 = vpack.c.bf16 %v5201, %v5201
        %v5317 = vpack.c.bf16 %v5205, %v5205
        %v5318 = vpack.c.bf16 %v5209, %v5209
        %v5319 = vpack.c.bf16 %v5213, %v5213
        %v5320 = vpack.c.bf16 %v5217, %v5217
        %v5321 = vpack.c.bf16 %v5221, %v5221
        %v5322 = vpack.c.bf16 %v5225, %v5225
        %v5323 = vpack.c.bf16 %v5229, %v5229
        %v5324 = vpack.c.bf16 %v5233, %v5233
        %v5325 = vpack.c.bf16 %v5237, %v5237
        %v5326 = vpack.c.bf16 %v5241, %v5241
        %v5327 = vpack.c.bf16 %v5245, %v5245
        %v5328 = vpack.c.bf16 %v5249, %v5249
        %v5329 = vpack.c.bf16 %v5253, %v5253
        %v5330 = vpack.c.bf16 %v5257, %v5257
        %v5331 = vpack.c.bf16 %v5261, %v5261
        %v5332 = vpack.c.bf16 %v5265, %v5265
        %v5333 = vpack.c.bf16 %v5269, %v5269
        %v5334 = vld [vmem:[#allocation2] sm:$0xff]
        %v5335 = vld [vmem:[#allocation2 + $0x8] sm:$0xff]
        %v5336 = vld [vmem:[#allocation2 + $0x10] sm:$0xff]
        %v5337 = vld [vmem:[#allocation2 + $0x18] sm:$0xff]
        %v5338 = vld [vmem:[#allocation2 + $0x20] sm:$0xff]
        %v5339 = vld [vmem:[#allocation2 + $0x28] sm:$0xff]
        %v5340 = vld [vmem:[#allocation2 + $0x30] sm:$0xff]
        %v5341 = vld [vmem:[#allocation2 + $0x38] sm:$0xff]
        %v5342 = vld [vmem:[#allocation2 + $0x40] sm:$0xff]
        %v5343 = vld [vmem:[#allocation2 + $0x48] sm:$0xff]
        %v5344 = vld [vmem:[#allocation2 + $0x50] sm:$0xff]
        %v5345 = vld [vmem:[#allocation2 + $0x58] sm:$0xff]
        %v5346 = vld [vmem:[#allocation2 + $0x60] sm:$0xff]
        %v5347 = vld [vmem:[#allocation2 + $0x68] sm:$0xff]
        %v5348 = vld [vmem:[#allocation2 + $0x70] sm:$0xff]
        %v5349 = vld [vmem:[#allocation2 + $0x78] sm:$0xff]
        %v5350 = vld [vmem:[#allocation2 + $0x80] sm:$0xff]
        %v5351 = vld [vmem:[#allocation2 + $0x88] sm:$0xff]
        %v5352 = vld [vmem:[#allocation2 + $0x90] sm:$0xff]
        %v5353 = vld [vmem:[#allocation2 + $0x98] sm:$0xff]
        %v5354 = vld [vmem:[#allocation2 + $0xa0] sm:$0xff]
        %v5355 = vld [vmem:[#allocation2 + $0xa8] sm:$0xff]
        %v5356 = vld [vmem:[#allocation2 + $0xb0] sm:$0xff]
        %v5357 = vld [vmem:[#allocation2 + $0xb8] sm:$0xff]
        %v5358 = vld [vmem:[#allocation2 + $0xc0] sm:$0xff]
        %v5359 = vld [vmem:[#allocation2 + $0xc8] sm:$0xff]
        %v5360 = vld [vmem:[#allocation2 + $0xd0] sm:$0xff]
        %v5361 = vld [vmem:[#allocation2 + $0xd8] sm:$0xff]
        %v5362 = vld [vmem:[#allocation2 + $0xe0] sm:$0xff]
        %v5363 = vld [vmem:[#allocation2 + $0xe8] sm:$0xff]
        %v5364 = vld [vmem:[#allocation2 + $0xf0] sm:$0xff]
        %v5365 = vld [vmem:[#allocation2 + $0xf8] sm:$0xff]
        %v5366 = vld [vmem:[#allocation2 + $0x100] sm:$0xff]
        %v5367 = vld [vmem:[#allocation2 + $0x108] sm:$0xff]
        %v5368 = vld [vmem:[#allocation2 + $0x110] sm:$0xff]
        %v5369 = vld [vmem:[#allocation2 + $0x118] sm:$0xff]
        %v5370 = vld [vmem:[#allocation2 + $0x120] sm:$0xff]
        %v5371 = vld [vmem:[#allocation2 + $0x128] sm:$0xff]
        %v5372 = vld [vmem:[#allocation2 + $0x130] sm:$0xff]
        %v5373 = vld [vmem:[#allocation2 + $0x138] sm:$0xff]
        %v5374 = vld [vmem:[#allocation2 + $0x140] sm:$0xff]
        %v5375 = vld [vmem:[#allocation2 + $0x148] sm:$0xff]
        %v5376 = vld [vmem:[#allocation2 + $0x150] sm:$0xff]
        %v5377 = vld [vmem:[#allocation2 + $0x158] sm:$0xff]
        %v5378 = vld [vmem:[#allocation2 + $0x160] sm:$0xff]
        %v5379 = vld [vmem:[#allocation2 + $0x168] sm:$0xff]
        %v5380 = vld [vmem:[#allocation2 + $0x170] sm:$0xff]
        %v5381 = vld [vmem:[#allocation2 + $0x178] sm:$0xff]
        %v5382 = vld [vmem:[#allocation2 + $0x180] sm:$0xff]
        %v5383 = vld [vmem:[#allocation2 + $0x188] sm:$0xff]
        %v5384 = vld [vmem:[#allocation2 + $0x190] sm:$0xff]
        %v5385 = vld [vmem:[#allocation2 + $0x198] sm:$0xff]
        %v5386 = vld [vmem:[#allocation2 + $0x1a0] sm:$0xff]
        %v5387 = vld [vmem:[#allocation2 + $0x1a8] sm:$0xff]
        %v5388 = vld [vmem:[#allocation2 + $0x1b0] sm:$0xff]
        %v5389 = vld [vmem:[#allocation2 + $0x1b8] sm:$0xff]
        %v5390 = vld [vmem:[#allocation2 + $0x1c0] sm:$0xff]
        %v5391 = vld [vmem:[#allocation2 + $0x1c8] sm:$0xff]
        %v5392 = vld [vmem:[#allocation2 + $0x1d0] sm:$0xff]
        %v5393 = vld [vmem:[#allocation2 + $0x1d8] sm:$0xff]
        %v5394 = vld [vmem:[#allocation2 + $0x1e0] sm:$0xff]
        %v5395 = vld [vmem:[#allocation2 + $0x1e8] sm:$0xff]
        %v5396 = vld [vmem:[#allocation2 + $0x1f0] sm:$0xff]
        %v5397 = vld [vmem:[#allocation2 + $0x1f8] sm:$0xff]
        %v5398 = vld [vmem:[#allocation2 + $0x200] sm:$0xff]
        %v5399 = vld [vmem:[#allocation2 + $0x208] sm:$0xff]
        %v5400 = vld [vmem:[#allocation2 + $0x210] sm:$0xff]
        %v5401 = vld [vmem:[#allocation2 + $0x218] sm:$0xff]
        %v5402 = vld [vmem:[#allocation2 + $0x220] sm:$0xff]
        %v5403 = vld [vmem:[#allocation2 + $0x228] sm:$0xff]
        %v5404 = vld [vmem:[#allocation2 + $0x230] sm:$0xff]
        %v5405 = vld [vmem:[#allocation2 + $0x238] sm:$0xff]
        %v5406 = vld [vmem:[#allocation2 + $0x240] sm:$0xff]
        %v5407 = vld [vmem:[#allocation2 + $0x248] sm:$0xff]
        %v5408 = vld [vmem:[#allocation2 + $0x250] sm:$0xff]
        %v5409 = vld [vmem:[#allocation2 + $0x258] sm:$0xff]
        %v5410 = vld [vmem:[#allocation2 + $0x260] sm:$0xff]
        %v5411 = vld [vmem:[#allocation2 + $0x268] sm:$0xff]
        %v5412 = vld [vmem:[#allocation2 + $0x270] sm:$0xff]
        %v5413 = vld [vmem:[#allocation2 + $0x278] sm:$0xff]
        %v5414 = vld [vmem:[#allocation2 + $0x280] sm:$0xff]
        %v5415 = vld [vmem:[#allocation2 + $0x288] sm:$0xff]
        %v5416 = vld [vmem:[#allocation2 + $0x290] sm:$0xff]
        %v5417 = vld [vmem:[#allocation2 + $0x298] sm:$0xff]
        %v5418 = vld [vmem:[#allocation2 + $0x2a0] sm:$0xff]
        %v5419 = vld [vmem:[#allocation2 + $0x2a8] sm:$0xff]
        %v5420 = vld [vmem:[#allocation2 + $0x2b0] sm:$0xff]
        %v5421 = vld [vmem:[#allocation2 + $0x2b8] sm:$0xff]
        %v5422 = vld [vmem:[#allocation2 + $0x2c0] sm:$0xff]
        %v5423 = vld [vmem:[#allocation2 + $0x2c8] sm:$0xff]
        %v5424 = vld [vmem:[#allocation2 + $0x2d0] sm:$0xff]
        %v5425 = vld [vmem:[#allocation2 + $0x2d8] sm:$0xff]
        %v5426 = vld [vmem:[#allocation2 + $0x2e0] sm:$0xff]
        %v5427 = vld [vmem:[#allocation2 + $0x2e8] sm:$0xff]
        %v5428 = vld [vmem:[#allocation2 + $0x2f0] sm:$0xff]
        %v5429 = vld [vmem:[#allocation2 + $0x2f8] sm:$0xff]
        %v5430 = vld [vmem:[#allocation2 + $0x300] sm:$0xff]
        %v5431 = vld [vmem:[#allocation2 + $0x308] sm:$0xff]
        %v5432 = vld [vmem:[#allocation2 + $0x310] sm:$0xff]
        %v5433 = vld [vmem:[#allocation2 + $0x318] sm:$0xff]
        %v5434 = vld [vmem:[#allocation2 + $0x320] sm:$0xff]
        %v5435 = vld [vmem:[#allocation2 + $0x328] sm:$0xff]
        %v5436 = vld [vmem:[#allocation2 + $0x330] sm:$0xff]
        %v5437 = vld [vmem:[#allocation2 + $0x338] sm:$0xff]
        %v5438 = vld [vmem:[#allocation2 + $0x340] sm:$0xff]
        %v5439 = vld [vmem:[#allocation2 + $0x348] sm:$0xff]
        %v5440 = vld [vmem:[#allocation2 + $0x350] sm:$0xff]
        %v5441 = vld [vmem:[#allocation2 + $0x358] sm:$0xff]
        %v5442 = vld [vmem:[#allocation2 + $0x360] sm:$0xff]
        %v5443 = vld [vmem:[#allocation2 + $0x368] sm:$0xff]
        %v5444 = vld [vmem:[#allocation2 + $0x370] sm:$0xff]
        %v5445 = vld [vmem:[#allocation2 + $0x378] sm:$0xff]
        %v5446 = vld [vmem:[#allocation2 + $0x380] sm:$0xff]
        %v5447 = vld [vmem:[#allocation2 + $0x388] sm:$0xff]
        %v5448 = vld [vmem:[#allocation2 + $0x390] sm:$0xff]
        %v5449 = vld [vmem:[#allocation2 + $0x398] sm:$0xff]
        %v5450 = vld [vmem:[#allocation2 + $0x3a0] sm:$0xff]
        %v5451 = vld [vmem:[#allocation2 + $0x3a8] sm:$0xff]
        %v5452 = vld [vmem:[#allocation2 + $0x3b0] sm:$0xff]
        %v5453 = vld [vmem:[#allocation2 + $0x3b8] sm:$0xff]
        %v5454 = vld [vmem:[#allocation2 + $0x3c0] sm:$0xff]
        %v5455 = vld [vmem:[#allocation2 + $0x3c8] sm:$0xff]
        %v5456 = vld [vmem:[#allocation2 + $0x3d0] sm:$0xff]
        %v5457 = vld [vmem:[#allocation2 + $0x3d8] sm:$0xff]
        %v5458 = vld [vmem:[#allocation2 + $0x3e0] sm:$0xff]
        %v5459 = vld [vmem:[#allocation2 + $0x3e8] sm:$0xff]
        %v5460 = vld [vmem:[#allocation2 + $0x3f0] sm:$0xff]
        %v5461 = vld [vmem:[#allocation2 + $0x3f8] sm:$0xff]
        %v5462 = vld [vmem:[#allocation2 + $0x400] sm:$0xff]
        %v5463 = vld [vmem:[#allocation2 + $0x408] sm:$0xff]
        %v5464 = vld [vmem:[#allocation2 + $0x410] sm:$0xff]
        %v5465 = vld [vmem:[#allocation2 + $0x418] sm:$0xff]
        %v5466 = vld [vmem:[#allocation2 + $0x420] sm:$0xff]
        %v5467 = vld [vmem:[#allocation2 + $0x428] sm:$0xff]
        %v5468 = vld [vmem:[#allocation2 + $0x430] sm:$0xff]
        %v5469 = vld [vmem:[#allocation2 + $0x438] sm:$0xff]
        %v5470 = vld [vmem:[#allocation2 + $0x440] sm:$0xff]
        %v5471 = vld [vmem:[#allocation2 + $0x448] sm:$0xff]
        %v5472 = vld [vmem:[#allocation2 + $0x450] sm:$0xff]
        %v5473 = vld [vmem:[#allocation2 + $0x458] sm:$0xff]
        %v5474 = vld [vmem:[#allocation2 + $0x460] sm:$0xff]
        %v5475 = vld [vmem:[#allocation2 + $0x468] sm:$0xff]
        %v5476 = vld [vmem:[#allocation2 + $0x470] sm:$0xff]
        %v5477 = vld [vmem:[#allocation2 + $0x478] sm:$0xff]
        %v5478 = vld [vmem:[#allocation2 + $0x480] sm:$0xff]
        %v5479 = vld [vmem:[#allocation2 + $0x488] sm:$0xff]
        %v5480 = vld [vmem:[#allocation2 + $0x490] sm:$0xff]
        %v5481 = vld [vmem:[#allocation2 + $0x498] sm:$0xff]
        %v5482 = vld [vmem:[#allocation2 + $0x4a0] sm:$0xff]
        %v5483 = vld [vmem:[#allocation2 + $0x4a8] sm:$0xff]
        %v5484 = vld [vmem:[#allocation2 + $0x4b0] sm:$0xff]
        %v5485 = vld [vmem:[#allocation2 + $0x4b8] sm:$0xff]
        %v5486 = vld [vmem:[#allocation2 + $0x4c0] sm:$0xff]
        %v5487 = vld [vmem:[#allocation2 + $0x4c8] sm:$0xff]
        %v5488 = vld [vmem:[#allocation2 + $0x4d0] sm:$0xff]
        %v5489 = vld [vmem:[#allocation2 + $0x4d8] sm:$0xff]
        %v5490 = vld [vmem:[#allocation2 + $0x4e0] sm:$0xff]
        %v5491 = vld [vmem:[#allocation2 + $0x4e8] sm:$0xff]
        %v5492 = vld [vmem:[#allocation2 + $0x4f0] sm:$0xff]
        %v5493 = vld [vmem:[#allocation2 + $0x4f8] sm:$0xff]
        %v5494 = vld [vmem:[#allocation2 + $0x500] sm:$0xff]
        %v5495 = vld [vmem:[#allocation2 + $0x508] sm:$0xff]
        %v5496 = vld [vmem:[#allocation2 + $0x510] sm:$0xff]
        %v5497 = vld [vmem:[#allocation2 + $0x518] sm:$0xff]
        %v5498 = vld [vmem:[#allocation2 + $0x520] sm:$0xff]
        %v5499 = vld [vmem:[#allocation2 + $0x528] sm:$0xff]
        %v5500 = vld [vmem:[#allocation2 + $0x530] sm:$0xff]
        %v5501 = vld [vmem:[#allocation2 + $0x538] sm:$0xff]
        %v5502 = vld [vmem:[#allocation2 + $0x540] sm:$0xff]
        %v5503 = vld [vmem:[#allocation2 + $0x548] sm:$0xff]
        %v5504 = vld [vmem:[#allocation2 + $0x550] sm:$0xff]
        %v5505 = vld [vmem:[#allocation2 + $0x558] sm:$0xff]
        %v5506 = vld [vmem:[#allocation2 + $0x560] sm:$0xff]
        %v5507 = vld [vmem:[#allocation2 + $0x568] sm:$0xff]
        %v5508 = vld [vmem:[#allocation2 + $0x570] sm:$0xff]
        %v5509 = vld [vmem:[#allocation2 + $0x578] sm:$0xff]
        %v5510 = vld [vmem:[#allocation2 + $0x580] sm:$0xff]
        %v5511 = vld [vmem:[#allocation2 + $0x588] sm:$0xff]
        %v5512 = vld [vmem:[#allocation2 + $0x590] sm:$0xff]
        %v5513 = vld [vmem:[#allocation2 + $0x598] sm:$0xff]
        %v5514 = vld [vmem:[#allocation2 + $0x5a0] sm:$0xff]
        %v5515 = vld [vmem:[#allocation2 + $0x5a8] sm:$0xff]
        %v5516 = vld [vmem:[#allocation2 + $0x5b0] sm:$0xff]
        %v5517 = vld [vmem:[#allocation2 + $0x5b8] sm:$0xff]
        %v5518 = vld [vmem:[#allocation2 + $0x5c0] sm:$0xff]
        %v5519 = vld [vmem:[#allocation2 + $0x5c8] sm:$0xff]
        %v5520 = vld [vmem:[#allocation2 + $0x5d0] sm:$0xff]
        %v5521 = vld [vmem:[#allocation2 + $0x5d8] sm:$0xff]
        %v5522 = vld [vmem:[#allocation2 + $0x5e0] sm:$0xff]
        %v5523 = vld [vmem:[#allocation2 + $0x5e8] sm:$0xff]
        %v5524 = vld [vmem:[#allocation2 + $0x5f0] sm:$0xff]
        %v5525 = vld [vmem:[#allocation2 + $0x5f8] sm:$0xff]
        %v5526 = vld [vmem:[#allocation2 + $0x600] sm:$0xff]
        %v5527 = vld [vmem:[#allocation2 + $0x608] sm:$0xff]
        %v5528 = vld [vmem:[#allocation2 + $0x610] sm:$0xff]
        %v5529 = vld [vmem:[#allocation2 + $0x618] sm:$0xff]
        %v5530 = vld [vmem:[#allocation2 + $0x620] sm:$0xff]
        %v5531 = vld [vmem:[#allocation2 + $0x628] sm:$0xff]
        %v5532 = vld [vmem:[#allocation2 + $0x630] sm:$0xff]
        %v5533 = vld [vmem:[#allocation2 + $0x638] sm:$0xff]
        %v5534 = vld [vmem:[#allocation2 + $0x640] sm:$0xff]
        %v5535 = vld [vmem:[#allocation2 + $0x648] sm:$0xff]
        %v5536 = vld [vmem:[#allocation2 + $0x650] sm:$0xff]
        %v5537 = vld [vmem:[#allocation2 + $0x658] sm:$0xff]
        %v5538 = vld [vmem:[#allocation2 + $0x660] sm:$0xff]
        %v5539 = vld [vmem:[#allocation2 + $0x668] sm:$0xff]
        %v5540 = vld [vmem:[#allocation2 + $0x670] sm:$0xff]
        %v5541 = vld [vmem:[#allocation2 + $0x678] sm:$0xff]
        %v5542 = vld [vmem:[#allocation2 + $0x680] sm:$0xff]
        %v5543 = vld [vmem:[#allocation2 + $0x688] sm:$0xff]
        %v5544 = vld [vmem:[#allocation2 + $0x690] sm:$0xff]
        %v5545 = vld [vmem:[#allocation2 + $0x698] sm:$0xff]
        %v5546 = vld [vmem:[#allocation2 + $0x6a0] sm:$0xff]
        %v5547 = vld [vmem:[#allocation2 + $0x6a8] sm:$0xff]
        %v5548 = vld [vmem:[#allocation2 + $0x6b0] sm:$0xff]
        %v5549 = vld [vmem:[#allocation2 + $0x6b8] sm:$0xff]
        %v5550 = vld [vmem:[#allocation2 + $0x6c0] sm:$0xff]
        %v5551 = vld [vmem:[#allocation2 + $0x6c8] sm:$0xff]
        %v5552 = vld [vmem:[#allocation2 + $0x6d0] sm:$0xff]
        %v5553 = vld [vmem:[#allocation2 + $0x6d8] sm:$0xff]
        %v5554 = vld [vmem:[#allocation2 + $0x6e0] sm:$0xff]
        %v5555 = vld [vmem:[#allocation2 + $0x6e8] sm:$0xff]
        %v5556 = vld [vmem:[#allocation2 + $0x6f0] sm:$0xff]
        %v5557 = vld [vmem:[#allocation2 + $0x6f8] sm:$0xff]
        %v5558 = vld [vmem:[#allocation2 + $0x700] sm:$0xff]
        %v5559 = vld [vmem:[#allocation2 + $0x708] sm:$0xff]
        %v5560 = vld [vmem:[#allocation2 + $0x710] sm:$0xff]
        %v5561 = vld [vmem:[#allocation2 + $0x718] sm:$0xff]
        %v5562 = vld [vmem:[#allocation2 + $0x720] sm:$0xff]
        %v5563 = vld [vmem:[#allocation2 + $0x728] sm:$0xff]
        %v5564 = vld [vmem:[#allocation2 + $0x730] sm:$0xff]
        %v5565 = vld [vmem:[#allocation2 + $0x738] sm:$0xff]
        %v5566 = vld [vmem:[#allocation2 + $0x740] sm:$0xff]
        %v5567 = vld [vmem:[#allocation2 + $0x748] sm:$0xff]
        %v5568 = vld [vmem:[#allocation2 + $0x750] sm:$0xff]
        %v5569 = vld [vmem:[#allocation2 + $0x758] sm:$0xff]
        %v5570 = vld [vmem:[#allocation2 + $0x760] sm:$0xff]
        %v5571 = vld [vmem:[#allocation2 + $0x768] sm:$0xff]
        %v5572 = vld [vmem:[#allocation2 + $0x770] sm:$0xff]
        %v5573 = vld [vmem:[#allocation2 + $0x778] sm:$0xff]
        %v5574 = vld [vmem:[#allocation2 + $0x780] sm:$0xff]
        %v5575 = vld [vmem:[#allocation2 + $0x788] sm:$0xff]
        %v5576 = vld [vmem:[#allocation2 + $0x790] sm:$0xff]
        %v5577 = vld [vmem:[#allocation2 + $0x798] sm:$0xff]
        %v5578 = vld [vmem:[#allocation2 + $0x7a0] sm:$0xff]
        %v5579 = vld [vmem:[#allocation2 + $0x7a8] sm:$0xff]
        %v5580 = vld [vmem:[#allocation2 + $0x7b0] sm:$0xff]
        %v5581 = vld [vmem:[#allocation2 + $0x7b8] sm:$0xff]
        %v5582 = vld [vmem:[#allocation2 + $0x7c0] sm:$0xff]
        %v5583 = vld [vmem:[#allocation2 + $0x7c8] sm:$0xff]
        %v5584 = vld [vmem:[#allocation2 + $0x7d0] sm:$0xff]
        %v5585 = vld [vmem:[#allocation2 + $0x7d8] sm:$0xff]
        %v5586 = vld [vmem:[#allocation2 + $0x7e0] sm:$0xff]
        %v5587 = vld [vmem:[#allocation2 + $0x7e8] sm:$0xff]
        %v5588 = vld [vmem:[#allocation2 + $0x7f0] sm:$0xff]
        %v5589 = vld [vmem:[#allocation2 + $0x7f8] sm:$0xff]
        %v5590 = vld [vmem:[%s7] sm:$0x1]
        %5591 = vmatprep.subr.bf16.mxu0 0
        %5592 = vmatpush1.bf16.msra.mxu0 %v5334
        %5593 = vmatprep.subr.bf16.mxu0 0
        %5594 = vmatpush1.bf16.msra.mxu0 %v5335
        %5595 = vmatprep.subr.bf16.mxu0 0
        %5596 = vmatpush1.bf16.msra.mxu0 %v5336
        %5597 = vmatprep.subr.bf16.mxu0 0
        %5598 = vmatpush1.bf16.msra.mxu0 %v5337
        %5599 = vmatprep.subr.bf16.mxu0 0
        %5600 = vmatpush1.bf16.msra.mxu0 %v5338
        %5601 = vmatprep.subr.bf16.mxu0 0
        %5602 = vmatpush1.bf16.msra.mxu0 %v5339
        %5603 = vmatprep.subr.bf16.mxu0 0
        %5604 = vmatpush1.bf16.msra.mxu0 %v5340
        %5605 = vmatprep.subr.bf16.mxu0 0
        %5606 = vmatpush1.bf16.msra.mxu0 %v5341
        %5607 = vmatprep.subr.bf16.mxu0 0
        %5608 = vmatpush1.bf16.msra.mxu0 %v5342
        %5609 = vmatprep.subr.bf16.mxu0 0
        %5610 = vmatpush1.bf16.msra.mxu0 %v5343
        %5611 = vmatprep.subr.bf16.mxu0 0
        %5612 = vmatpush1.bf16.msra.mxu0 %v5344
        %5613 = vmatprep.subr.bf16.mxu0 0
        %5614 = vmatpush1.bf16.msra.mxu0 %v5345
        %5615 = vmatprep.subr.bf16.mxu0 0
        %5616 = vmatpush1.bf16.msra.mxu0 %v5346
        %5617 = vmatprep.subr.bf16.mxu0 0
        %5618 = vmatpush1.bf16.msra.mxu0 %v5347
        %5619 = vmatprep.subr.bf16.mxu0 0
        %5620 = vmatpush1.bf16.msra.mxu0 %v5348
        %5621 = vmatprep.subr.bf16.mxu0 0
        %5622 = vmatpush1.bf16.msra.mxu0 %v5349
        %5623 = vmatprep.mubr.bf16.mxu0 %v5303
        %5624 = vmatmul.mubr.bf16.gmra.mrb[0].mxu0 %v5302
        %v5625 = vpop.f32.mrb[0].mxu0
        %v5626 = vadd.f32 %v5590, %v5625
        %v5627 = vpop.f32.mrb[0].mxu0
        %v5628 = vpop.f32.mrb[0].mxu0
        %v5629 = vpop.f32.mrb[0].mxu0
        %5630 = vdwg.mxu0
        %5631 = vmatprep.subr.bf16.mxu0 0
        %5632 = vmatpush1.bf16.msra.mxu0 %v5350
        %5633 = vmatprep.subr.bf16.mxu0 0
        %5634 = vmatpush1.bf16.msra.mxu0 %v5351
        %5635 = vmatprep.subr.bf16.mxu0 0
        %5636 = vmatpush1.bf16.msra.mxu0 %v5352
        %5637 = vmatprep.subr.bf16.mxu0 0
        %5638 = vmatpush1.bf16.msra.mxu0 %v5353
        %5639 = vmatprep.subr.bf16.mxu0 0
        %5640 = vmatpush1.bf16.msra.mxu0 %v5354
        %5641 = vmatprep.subr.bf16.mxu0 0
        %5642 = vmatpush1.bf16.msra.mxu0 %v5355
        %5643 = vmatprep.subr.bf16.mxu0 0
        %5644 = vmatpush1.bf16.msra.mxu0 %v5356
        %5645 = vmatprep.subr.bf16.mxu0 0
        %5646 = vmatpush1.bf16.msra.mxu0 %v5357
        %5647 = vmatprep.subr.bf16.mxu0 0
        %5648 = vmatpush1.bf16.msra.mxu0 %v5358
        %5649 = vmatprep.subr.bf16.mxu0 0
        %5650 = vmatpush1.bf16.msra.mxu0 %v5359
        %5651 = vmatprep.subr.bf16.mxu0 0
        %5652 = vmatpush1.bf16.msra.mxu0 %v5360
        %5653 = vmatprep.subr.bf16.mxu0 0
        %5654 = vmatpush1.bf16.msra.mxu0 %v5361
        %5655 = vmatprep.subr.bf16.mxu0 0
        %5656 = vmatpush1.bf16.msra.mxu0 %v5362
        %5657 = vmatprep.subr.bf16.mxu0 0
        %5658 = vmatpush1.bf16.msra.mxu0 %v5363
        %5659 = vmatprep.subr.bf16.mxu0 0
        %5660 = vmatpush1.bf16.msra.mxu0 %v5364
        %5661 = vmatprep.subr.bf16.mxu0 0
        %5662 = vmatpush1.bf16.msra.mxu0 %v5365
        %5663 = vmatprep.mubr.bf16.mxu0 %v5305
        %5664 = vmatmul.mubr.bf16.gmra.mrb[0].mxu0 %v5304
        %v5665 = vpop.f32.mrb[0].mxu0
        %v5666 = vadd.f32 %v5626, %v5665
        %v5667 = vpop.f32.mrb[0].mxu0
        %v5668 = vpop.f32.mrb[0].mxu0
        %v5669 = vpop.f32.mrb[0].mxu0
        %5670 = vdwg.mxu0
        %5671 = vmatprep.subr.bf16.mxu0 0
        %5672 = vmatpush1.bf16.msra.mxu0 %v5366
        %5673 = vmatprep.subr.bf16.mxu0 0
        %5674 = vmatpush1.bf16.msra.mxu0 %v5367
        %5675 = vmatprep.subr.bf16.mxu0 0
        %5676 = vmatpush1.bf16.msra.mxu0 %v5368
        %5677 = vmatprep.subr.bf16.mxu0 0
        %5678 = vmatpush1.bf16.msra.mxu0 %v5369
        %5679 = vmatprep.subr.bf16.mxu0 0
        %5680 = vmatpush1.bf16.msra.mxu0 %v5370
        %5681 = vmatprep.subr.bf16.mxu0 0
        %5682 = vmatpush1.bf16.msra.mxu0 %v5371
        %5683 = vmatprep.subr.bf16.mxu0 0
        %5684 = vmatpush1.bf16.msra.mxu0 %v5372
        %5685 = vmatprep.subr.bf16.mxu0 0
        %5686 = vmatpush1.bf16.msra.mxu0 %v5373
        %5687 = vmatprep.subr.bf16.mxu0 0
        %5688 = vmatpush1.bf16.msra.mxu0 %v5374
        %5689 = vmatprep.subr.bf16.mxu0 0
        %5690 = vmatpush1.bf16.msra.mxu0 %v5375
        %5691 = vmatprep.subr.bf16.mxu0 0
        %5692 = vmatpush1.bf16.msra.mxu0 %v5376
        %5693 = vmatprep.subr.bf16.mxu0 0
        %5694 = vmatpush1.bf16.msra.mxu0 %v5377
        %5695 = vmatprep.subr.bf16.mxu0 0
        %5696 = vmatpush1.bf16.msra.mxu0 %v5378
        %5697 = vmatprep.subr.bf16.mxu0 0
        %5698 = vmatpush1.bf16.msra.mxu0 %v5379
        %5699 = vmatprep.subr.bf16.mxu0 0
        %5700 = vmatpush1.bf16.msra.mxu0 %v5380
        %5701 = vmatprep.subr.bf16.mxu0 0
        %5702 = vmatpush1.bf16.msra.mxu0 %v5381
        %5703 = vmatprep.mubr.bf16.mxu0 %v5307
        %5704 = vmatmul.mubr.bf16.gmra.mrb[0].mxu0 %v5306
        %v5705 = vpop.f32.mrb[0].mxu0
        %v5706 = vadd.f32 %v5666, %v5705
        %v5707 = vpop.f32.mrb[0].mxu0
        %v5708 = vpop.f32.mrb[0].mxu0
        %v5709 = vpop.f32.mrb[0].mxu0
        %5710 = vdwg.mxu0
        %5711 = vmatprep.subr.bf16.mxu0 0
        %5712 = vmatpush1.bf16.msra.mxu0 %v5382
        %5713 = vmatprep.subr.bf16.mxu0 0
        %5714 = vmatpush1.bf16.msra.mxu0 %v5383
        %5715 = vmatprep.subr.bf16.mxu0 0
        %5716 = vmatpush1.bf16.msra.mxu0 %v5384
        %5717 = vmatprep.subr.bf16.mxu0 0
        %5718 = vmatpush1.bf16.msra.mxu0 %v5385
        %5719 = vmatprep.subr.bf16.mxu0 0
        %5720 = vmatpush1.bf16.msra.mxu0 %v5386
        %5721 = vmatprep.subr.bf16.mxu0 0
        %5722 = vmatpush1.bf16.msra.mxu0 %v5387
        %5723 = vmatprep.subr.bf16.mxu0 0
        %5724 = vmatpush1.bf16.msra.mxu0 %v5388
        %5725 = vmatprep.subr.bf16.mxu0 0
        %5726 = vmatpush1.bf16.msra.mxu0 %v5389
        %5727 = vmatprep.subr.bf16.mxu0 0
        %5728 = vmatpush1.bf16.msra.mxu0 %v5390
        %5729 = vmatprep.subr.bf16.mxu0 0
        %5730 = vmatpush1.bf16.msra.mxu0 %v5391
        %5731 = vmatprep.subr.bf16.mxu0 0
        %5732 = vmatpush1.bf16.msra.mxu0 %v5392
        %5733 = vmatprep.subr.bf16.mxu0 0
        %5734 = vmatpush1.bf16.msra.mxu0 %v5393
        %5735 = vmatprep.subr.bf16.mxu0 0
        %5736 = vmatpush1.bf16.msra.mxu0 %v5394
        %5737 = vmatprep.subr.bf16.mxu0 0
        %5738 = vmatpush1.bf16.msra.mxu0 %v5395
        %5739 = vmatprep.subr.bf16.mxu0 0
        %5740 = vmatpush1.bf16.msra.mxu0 %v5396
        %5741 = vmatprep.subr.bf16.mxu0 0
        %5742 = vmatpush1.bf16.msra.mxu0 %v5397
        %5743 = vmatprep.mubr.bf16.mxu0 %v5309
        %5744 = vmatmul.mubr.bf16.gmra.mrb[0].mxu0 %v5308
        %v5745 = vpop.f32.mrb[0].mxu0
        %v5746 = vadd.f32 %v5706, %v5745
        %v5747 = vpop.f32.mrb[0].mxu0
        %v5748 = vpop.f32.mrb[0].mxu0
        %v5749 = vpop.f32.mrb[0].mxu0
        %5750 = vdwg.mxu0
        %5751 = vmatprep.subr.bf16.mxu0 0
        %5752 = vmatpush1.bf16.msra.mxu0 %v5398
        %5753 = vmatprep.subr.bf16.mxu0 0
        %5754 = vmatpush1.bf16.msra.mxu0 %v5399
        %5755 = vmatprep.subr.bf16.mxu0 0
        %5756 = vmatpush1.bf16.msra.mxu0 %v5400
        %5757 = vmatprep.subr.bf16.mxu0 0
        %5758 = vmatpush1.bf16.msra.mxu0 %v5401
        %5759 = vmatprep.subr.bf16.mxu0 0
        %5760 = vmatpush1.bf16.msra.mxu0 %v5402
        %5761 = vmatprep.subr.bf16.mxu0 0
        %5762 = vmatpush1.bf16.msra.mxu0 %v5403
        %5763 = vmatprep.subr.bf16.mxu0 0
        %5764 = vmatpush1.bf16.msra.mxu0 %v5404
        %5765 = vmatprep.subr.bf16.mxu0 0
        %5766 = vmatpush1.bf16.msra.mxu0 %v5405
        %5767 = vmatprep.subr.bf16.mxu0 0
        %5768 = vmatpush1.bf16.msra.mxu0 %v5406
        %5769 = vmatprep.subr.bf16.mxu0 0
        %5770 = vmatpush1.bf16.msra.mxu0 %v5407
        %5771 = vmatprep.subr.bf16.mxu0 0
        %5772 = vmatpush1.bf16.msra.mxu0 %v5408
        %5773 = vmatprep.subr.bf16.mxu0 0
        %5774 = vmatpush1.bf16.msra.mxu0 %v5409
        %5775 = vmatprep.subr.bf16.mxu0 0
        %5776 = vmatpush1.bf16.msra.mxu0 %v5410
        %5777 = vmatprep.subr.bf16.mxu0 0
        %5778 = vmatpush1.bf16.msra.mxu0 %v5411
        %5779 = vmatprep.subr.bf16.mxu0 0
        %5780 = vmatpush1.bf16.msra.mxu0 %v5412
        %5781 = vmatprep.subr.bf16.mxu0 0
        %5782 = vmatpush1.bf16.msra.mxu0 %v5413
        %5783 = vmatprep.mubr.bf16.mxu0 %v5311
        %5784 = vmatmul.mubr.bf16.gmra.mrb[0].mxu0 %v5310
        %v5785 = vpop.f32.mrb[0].mxu0
        %v5786 = vadd.f32 %v5746, %v5785
        %v5787 = vpop.f32.mrb[0].mxu0
        %v5788 = vpop.f32.mrb[0].mxu0
        %v5789 = vpop.f32.mrb[0].mxu0
        %5790 = vdwg.mxu0
        %5791 = vmatprep.subr.bf16.mxu0 0
        %5792 = vmatpush1.bf16.msra.mxu0 %v5414
        %5793 = vmatprep.subr.bf16.mxu0 0
        %5794 = vmatpush1.bf16.msra.mxu0 %v5415
        %5795 = vmatprep.subr.bf16.mxu0 0
        %5796 = vmatpush1.bf16.msra.mxu0 %v5416
        %5797 = vmatprep.subr.bf16.mxu0 0
        %5798 = vmatpush1.bf16.msra.mxu0 %v5417
        %5799 = vmatprep.subr.bf16.mxu0 0
        %5800 = vmatpush1.bf16.msra.mxu0 %v5418
        %5801 = vmatprep.subr.bf16.mxu0 0
        %5802 = vmatpush1.bf16.msra.mxu0 %v5419
        %5803 = vmatprep.subr.bf16.mxu0 0
        %5804 = vmatpush1.bf16.msra.mxu0 %v5420
        %5805 = vmatprep.subr.bf16.mxu0 0
        %5806 = vmatpush1.bf16.msra.mxu0 %v5421
        %5807 = vmatprep.subr.bf16.mxu0 0
        %5808 = vmatpush1.bf16.msra.mxu0 %v5422
        %5809 = vmatprep.subr.bf16.mxu0 0
        %5810 = vmatpush1.bf16.msra.mxu0 %v5423
        %5811 = vmatprep.subr.bf16.mxu0 0
        %5812 = vmatpush1.bf16.msra.mxu0 %v5424
        %5813 = vmatprep.subr.bf16.mxu0 0
        %5814 = vmatpush1.bf16.msra.mxu0 %v5425
        %5815 = vmatprep.subr.bf16.mxu0 0
        %5816 = vmatpush1.bf16.msra.mxu0 %v5426
        %5817 = vmatprep.subr.bf16.mxu0 0
        %5818 = vmatpush1.bf16.msra.mxu0 %v5427
        %5819 = vmatprep.subr.bf16.mxu0 0
        %5820 = vmatpush1.bf16.msra.mxu0 %v5428
        %5821 = vmatprep.subr.bf16.mxu0 0
        %5822 = vmatpush1.bf16.msra.mxu0 %v5429
        %5823 = vmatprep.mubr.bf16.mxu0 %v5313
        %5824 = vmatmul.mubr.bf16.gmra.mrb[0].mxu0 %v5312
        %v5825 = vpop.f32.mrb[0].mxu0
        %v5826 = vadd.f32 %v5786, %v5825
        %v5827 = vpop.f32.mrb[0].mxu0
        %v5828 = vpop.f32.mrb[0].mxu0
        %v5829 = vpop.f32.mrb[0].mxu0
        %5830 = vdwg.mxu0
        %5831 = vmatprep.subr.bf16.mxu0 0
        %5832 = vmatpush1.bf16.msra.mxu0 %v5430
        %5833 = vmatprep.subr.bf16.mxu0 0
        %5834 = vmatpush1.bf16.msra.mxu0 %v5431
        %5835 = vmatprep.subr.bf16.mxu0 0
        %5836 = vmatpush1.bf16.msra.mxu0 %v5432
        %5837 = vmatprep.subr.bf16.mxu0 0
        %5838 = vmatpush1.bf16.msra.mxu0 %v5433
        %5839 = vmatprep.subr.bf16.mxu0 0
        %5840 = vmatpush1.bf16.msra.mxu0 %v5434
        %5841 = vmatprep.subr.bf16.mxu0 0
        %5842 = vmatpush1.bf16.msra.mxu0 %v5435
        %5843 = vmatprep.subr.bf16.mxu0 0
        %5844 = vmatpush1.bf16.msra.mxu0 %v5436
        %5845 = vmatprep.subr.bf16.mxu0 0
        %5846 = vmatpush1.bf16.msra.mxu0 %v5437
        %5847 = vmatprep.subr.bf16.mxu0 0
        %5848 = vmatpush1.bf16.msra.mxu0 %v5438
        %5849 = vmatprep.subr.bf16.mxu0 0
        %5850 = vmatpush1.bf16.msra.mxu0 %v5439
        %5851 = vmatprep.subr.bf16.mxu0 0
        %5852 = vmatpush1.bf16.msra.mxu0 %v5440
        %5853 = vmatprep.subr.bf16.mxu0 0
        %5854 = vmatpush1.bf16.msra.mxu0 %v5441
        %5855 = vmatprep.subr.bf16.mxu0 0
        %5856 = vmatpush1.bf16.msra.mxu0 %v5442
        %5857 = vmatprep.subr.bf16.mxu0 0
        %5858 = vmatpush1.bf16.msra.mxu0 %v5443
        %5859 = vmatprep.subr.bf16.mxu0 0
        %5860 = vmatpush1.bf16.msra.mxu0 %v5444
        %5861 = vmatprep.subr.bf16.mxu0 0
        %5862 = vmatpush1.bf16.msra.mxu0 %v5445
        %5863 = vmatprep.mubr.bf16.mxu0 %v5315
        %5864 = vmatmul.mubr.bf16.gmra.mrb[0].mxu0 %v5314
        %v5865 = vpop.f32.mrb[0].mxu0
        %v5866 = vadd.f32 %v5826, %v5865
        %v5867 = vpop.f32.mrb[0].mxu0
        %v5868 = vpop.f32.mrb[0].mxu0
        %v5869 = vpop.f32.mrb[0].mxu0
        %5870 = vdwg.mxu0
        %5871 = vmatprep.subr.bf16.mxu0 0
        %5872 = vmatpush1.bf16.msra.mxu0 %v5446
        %5873 = vmatprep.subr.bf16.mxu0 0
        %5874 = vmatpush1.bf16.msra.mxu0 %v5447
        %5875 = vmatprep.subr.bf16.mxu0 0
        %5876 = vmatpush1.bf16.msra.mxu0 %v5448
        %5877 = vmatprep.subr.bf16.mxu0 0
        %5878 = vmatpush1.bf16.msra.mxu0 %v5449
        %5879 = vmatprep.subr.bf16.mxu0 0
        %5880 = vmatpush1.bf16.msra.mxu0 %v5450
        %5881 = vmatprep.subr.bf16.mxu0 0
        %5882 = vmatpush1.bf16.msra.mxu0 %v5451
        %5883 = vmatprep.subr.bf16.mxu0 0
        %5884 = vmatpush1.bf16.msra.mxu0 %v5452
        %5885 = vmatprep.subr.bf16.mxu0 0
        %5886 = vmatpush1.bf16.msra.mxu0 %v5453
        %5887 = vmatprep.subr.bf16.mxu0 0
        %5888 = vmatpush1.bf16.msra.mxu0 %v5454
        %5889 = vmatprep.subr.bf16.mxu0 0
        %5890 = vmatpush1.bf16.msra.mxu0 %v5455
        %5891 = vmatprep.subr.bf16.mxu0 0
        %5892 = vmatpush1.bf16.msra.mxu0 %v5456
        %5893 = vmatprep.subr.bf16.mxu0 0
        %5894 = vmatpush1.bf16.msra.mxu0 %v5457
        %5895 = vmatprep.subr.bf16.mxu0 0
        %5896 = vmatpush1.bf16.msra.mxu0 %v5458
        %5897 = vmatprep.subr.bf16.mxu0 0
        %5898 = vmatpush1.bf16.msra.mxu0 %v5459
        %5899 = vmatprep.subr.bf16.mxu0 0
        %5900 = vmatpush1.bf16.msra.mxu0 %v5460
        %5901 = vmatprep.subr.bf16.mxu0 0
        %5902 = vmatpush1.bf16.msra.mxu0 %v5461
        %5903 = vmatprep.mubr.bf16.mxu0 %v5317
        %5904 = vmatmul.mubr.bf16.gmra.mrb[0].mxu0 %v5316
        %v5905 = vpop.f32.mrb[0].mxu0
        %v5906 = vadd.f32 %v5866, %v5905
        %v5907 = vpop.f32.mrb[0].mxu0
        %v5908 = vpop.f32.mrb[0].mxu0
        %v5909 = vpop.f32.mrb[0].mxu0
        %5910 = vdwg.mxu0
        %5911 = vmatprep.subr.bf16.mxu0 0
        %5912 = vmatpush1.bf16.msra.mxu0 %v5462
        %5913 = vmatprep.subr.bf16.mxu0 0
        %5914 = vmatpush1.bf16.msra.mxu0 %v5463
        %5915 = vmatprep.subr.bf16.mxu0 0
        %5916 = vmatpush1.bf16.msra.mxu0 %v5464
        %5917 = vmatprep.subr.bf16.mxu0 0
        %5918 = vmatpush1.bf16.msra.mxu0 %v5465
        %5919 = vmatprep.subr.bf16.mxu0 0
        %5920 = vmatpush1.bf16.msra.mxu0 %v5466
        %5921 = vmatprep.subr.bf16.mxu0 0
        %5922 = vmatpush1.bf16.msra.mxu0 %v5467
        %5923 = vmatprep.subr.bf16.mxu0 0
        %5924 = vmatpush1.bf16.msra.mxu0 %v5468
        %5925 = vmatprep.subr.bf16.mxu0 0
        %5926 = vmatpush1.bf16.msra.mxu0 %v5469
        %5927 = vmatprep.subr.bf16.mxu0 0
        %5928 = vmatpush1.bf16.msra.mxu0 %v5470
        %5929 = vmatprep.subr.bf16.mxu0 0
        %5930 = vmatpush1.bf16.msra.mxu0 %v5471
        %5931 = vmatprep.subr.bf16.mxu0 0
        %5932 = vmatpush1.bf16.msra.mxu0 %v5472
        %5933 = vmatprep.subr.bf16.mxu0 0
        %5934 = vmatpush1.bf16.msra.mxu0 %v5473
        %5935 = vmatprep.subr.bf16.mxu0 0
        %5936 = vmatpush1.bf16.msra.mxu0 %v5474
        %5937 = vmatprep.subr.bf16.mxu0 0
        %5938 = vmatpush1.bf16.msra.mxu0 %v5475
        %5939 = vmatprep.subr.bf16.mxu0 0
        %5940 = vmatpush1.bf16.msra.mxu0 %v5476
        %5941 = vmatprep.subr.bf16.mxu0 0
        %5942 = vmatpush1.bf16.msra.mxu0 %v5477
        %5943 = vmatprep.mubr.bf16.mxu0 %v5319
        %5944 = vmatmul.mubr.bf16.gmra.mrb[0].mxu0 %v5318
        %v5945 = vpop.f32.mrb[0].mxu0
        %v5946 = vadd.f32 %v5906, %v5945
        %v5947 = vpop.f32.mrb[0].mxu0
        %v5948 = vpop.f32.mrb[0].mxu0
        %v5949 = vpop.f32.mrb[0].mxu0
        %5950 = vdwg.mxu0
        %5951 = vmatprep.subr.bf16.mxu0 0
        %5952 = vmatpush1.bf16.msra.mxu0 %v5478
        %5953 = vmatprep.subr.bf16.mxu0 0
        %5954 = vmatpush1.bf16.msra.mxu0 %v5479
        %5955 = vmatprep.subr.bf16.mxu0 0
        %5956 = vmatpush1.bf16.msra.mxu0 %v5480
        %5957 = vmatprep.subr.bf16.mxu0 0
        %5958 = vmatpush1.bf16.msra.mxu0 %v5481
        %5959 = vmatprep.subr.bf16.mxu0 0
        %5960 = vmatpush1.bf16.msra.mxu0 %v5482
        %5961 = vmatprep.subr.bf16.mxu0 0
        %5962 = vmatpush1.bf16.msra.mxu0 %v5483
        %5963 = vmatprep.subr.bf16.mxu0 0
        %5964 = vmatpush1.bf16.msra.mxu0 %v5484
        %5965 = vmatprep.subr.bf16.mxu0 0
        %5966 = vmatpush1.bf16.msra.mxu0 %v5485
        %5967 = vmatprep.subr.bf16.mxu0 0
        %5968 = vmatpush1.bf16.msra.mxu0 %v5486
        %5969 = vmatprep.subr.bf16.mxu0 0
        %5970 = vmatpush1.bf16.msra.mxu0 %v5487
        %5971 = vmatprep.subr.bf16.mxu0 0
        %5972 = vmatpush1.bf16.msra.mxu0 %v5488
        %5973 = vmatprep.subr.bf16.mxu0 0
        %5974 = vmatpush1.bf16.msra.mxu0 %v5489
        %5975 = vmatprep.subr.bf16.mxu0 0
        %5976 = vmatpush1.bf16.msra.mxu0 %v5490
        %5977 = vmatprep.subr.bf16.mxu0 0
        %5978 = vmatpush1.bf16.msra.mxu0 %v5491
        %5979 = vmatprep.subr.bf16.mxu0 0
        %5980 = vmatpush1.bf16.msra.mxu0 %v5492
        %5981 = vmatprep.subr.bf16.mxu0 0
        %5982 = vmatpush1.bf16.msra.mxu0 %v5493
        %5983 = vmatprep.mubr.bf16.mxu0 %v5321
        %5984 = vmatmul.mubr.bf16.gmra.mrb[0].mxu0 %v5320
        %v5985 = vpop.f32.mrb[0].mxu0
        %v5986 = vadd.f32 %v5946, %v5985
        %v5987 = vpop.f32.mrb[0].mxu0
        %v5988 = vpop.f32.mrb[0].mxu0
        %v5989 = vpop.f32.mrb[0].mxu0
        %5990 = vdwg.mxu0
        %5991 = vmatprep.subr.bf16.mxu0 0
        %5992 = vmatpush1.bf16.msra.mxu0 %v5494
        %5993 = vmatprep.subr.bf16.mxu0 0
        %5994 = vmatpush1.bf16.msra.mxu0 %v5495
        %5995 = vmatprep.subr.bf16.mxu0 0
        %5996 = vmatpush1.bf16.msra.mxu0 %v5496
        %5997 = vmatprep.subr.bf16.mxu0 0
        %5998 = vmatpush1.bf16.msra.mxu0 %v5497
        %5999 = vmatprep.subr.bf16.mxu0 0
        %6000 = vmatpush1.bf16.msra.mxu0 %v5498
        %6001 = vmatprep.subr.bf16.mxu0 0
        %6002 = vmatpush1.bf16.msra.mxu0 %v5499
        %6003 = vmatprep.subr.bf16.mxu0 0
        %6004 = vmatpush1.bf16.msra.mxu0 %v5500
        %6005 = vmatprep.subr.bf16.mxu0 0
        %6006 = vmatpush1.bf16.msra.mxu0 %v5501
        %6007 = vmatprep.subr.bf16.mxu0 0
        %6008 = vmatpush1.bf16.msra.mxu0 %v5502
        %6009 = vmatprep.subr.bf16.mxu0 0
        %6010 = vmatpush1.bf16.msra.mxu0 %v5503
        %6011 = vmatprep.subr.bf16.mxu0 0
        %6012 = vmatpush1.bf16.msra.mxu0 %v5504
        %6013 = vmatprep.subr.bf16.mxu0 0
        %6014 = vmatpush1.bf16.msra.mxu0 %v5505
        %6015 = vmatprep.subr.bf16.mxu0 0
        %6016 = vmatpush1.bf16.msra.mxu0 %v5506
        %6017 = vmatprep.subr.bf16.mxu0 0
        %6018 = vmatpush1.bf16.msra.mxu0 %v5507
        %6019 = vmatprep.subr.bf16.mxu0 0
        %6020 = vmatpush1.bf16.msra.mxu0 %v5508
        %6021 = vmatprep.subr.bf16.mxu0 0
        %6022 = vmatpush1.bf16.msra.mxu0 %v5509
        %6023 = vmatprep.mubr.bf16.mxu0 %v5323
        %6024 = vmatmul.mubr.bf16.gmra.mrb[0].mxu0 %v5322
        %v6025 = vpop.f32.mrb[0].mxu0
        %v6026 = vadd.f32 %v5986, %v6025
        %v6027 = vpop.f32.mrb[0].mxu0
        %v6028 = vpop.f32.mrb[0].mxu0
        %v6029 = vpop.f32.mrb[0].mxu0
        %6030 = vdwg.mxu0
        %6031 = vmatprep.subr.bf16.mxu0 0
        %6032 = vmatpush1.bf16.msra.mxu0 %v5510
        %6033 = vmatprep.subr.bf16.mxu0 0
        %6034 = vmatpush1.bf16.msra.mxu0 %v5511
        %6035 = vmatprep.subr.bf16.mxu0 0
        %6036 = vmatpush1.bf16.msra.mxu0 %v5512
        %6037 = vmatprep.subr.bf16.mxu0 0
        %6038 = vmatpush1.bf16.msra.mxu0 %v5513
        %6039 = vmatprep.subr.bf16.mxu0 0
        %6040 = vmatpush1.bf16.msra.mxu0 %v5514
        %6041 = vmatprep.subr.bf16.mxu0 0
        %6042 = vmatpush1.bf16.msra.mxu0 %v5515
        %6043 = vmatprep.subr.bf16.mxu0 0
        %6044 = vmatpush1.bf16.msra.mxu0 %v5516
        %6045 = vmatprep.subr.bf16.mxu0 0
        %6046 = vmatpush1.bf16.msra.mxu0 %v5517
        %6047 = vmatprep.subr.bf16.mxu0 0
        %6048 = vmatpush1.bf16.msra.mxu0 %v5518
        %6049 = vmatprep.subr.bf16.mxu0 0
        %6050 = vmatpush1.bf16.msra.mxu0 %v5519
        %6051 = vmatprep.subr.bf16.mxu0 0
        %6052 = vmatpush1.bf16.msra.mxu0 %v5520
        %6053 = vmatprep.subr.bf16.mxu0 0
        %6054 = vmatpush1.bf16.msra.mxu0 %v5521
        %6055 = vmatprep.subr.bf16.mxu0 0
        %6056 = vmatpush1.bf16.msra.mxu0 %v5522
        %6057 = vmatprep.subr.bf16.mxu0 0
        %6058 = vmatpush1.bf16.msra.mxu0 %v5523
        %6059 = vmatprep.subr.bf16.mxu0 0
        %6060 = vmatpush1.bf16.msra.mxu0 %v5524
        %6061 = vmatprep.subr.bf16.mxu0 0
        %6062 = vmatpush1.bf16.msra.mxu0 %v5525
        %6063 = vmatprep.mubr.bf16.mxu0 %v5325
        %6064 = vmatmul.mubr.bf16.gmra.mrb[0].mxu0 %v5324
        %v6065 = vpop.f32.mrb[0].mxu0
        %v6066 = vadd.f32 %v6026, %v6065
        %v6067 = vpop.f32.mrb[0].mxu0
        %v6068 = vpop.f32.mrb[0].mxu0
        %v6069 = vpop.f32.mrb[0].mxu0
        %6070 = vdwg.mxu0
        %6071 = vmatprep.subr.bf16.mxu0 0
        %6072 = vmatpush1.bf16.msra.mxu0 %v5526
        %6073 = vmatprep.subr.bf16.mxu0 0
        %6074 = vmatpush1.bf16.msra.mxu0 %v5527
        %6075 = vmatprep.subr.bf16.mxu0 0
        %6076 = vmatpush1.bf16.msra.mxu0 %v5528
        %6077 = vmatprep.subr.bf16.mxu0 0
        %6078 = vmatpush1.bf16.msra.mxu0 %v5529
        %6079 = vmatprep.subr.bf16.mxu0 0
        %6080 = vmatpush1.bf16.msra.mxu0 %v5530
        %6081 = vmatprep.subr.bf16.mxu0 0
        %6082 = vmatpush1.bf16.msra.mxu0 %v5531
        %6083 = vmatprep.subr.bf16.mxu0 0
        %6084 = vmatpush1.bf16.msra.mxu0 %v5532
        %6085 = vmatprep.subr.bf16.mxu0 0
        %6086 = vmatpush1.bf16.msra.mxu0 %v5533
        %6087 = vmatprep.subr.bf16.mxu0 0
        %6088 = vmatpush1.bf16.msra.mxu0 %v5534
        %6089 = vmatprep.subr.bf16.mxu0 0
        %6090 = vmatpush1.bf16.msra.mxu0 %v5535
        %6091 = vmatprep.subr.bf16.mxu0 0
        %6092 = vmatpush1.bf16.msra.mxu0 %v5536
        %6093 = vmatprep.subr.bf16.mxu0 0
        %6094 = vmatpush1.bf16.msra.mxu0 %v5537
        %6095 = vmatprep.subr.bf16.mxu0 0
        %6096 = vmatpush1.bf16.msra.mxu0 %v5538
        %6097 = vmatprep.subr.bf16.mxu0 0
        %6098 = vmatpush1.bf16.msra.mxu0 %v5539
        %6099 = vmatprep.subr.bf16.mxu0 0
        %6100 = vmatpush1.bf16.msra.mxu0 %v5540
        %6101 = vmatprep.subr.bf16.mxu0 0
        %6102 = vmatpush1.bf16.msra.mxu0 %v5541
        %6103 = vmatprep.mubr.bf16.mxu0 %v5327
        %6104 = vmatmul.mubr.bf16.gmra.mrb[0].mxu0 %v5326
        %v6105 = vpop.f32.mrb[0].mxu0
        %v6106 = vadd.f32 %v6066, %v6105
        %v6107 = vpop.f32.mrb[0].mxu0
        %v6108 = vpop.f32.mrb[0].mxu0
        %v6109 = vpop.f32.mrb[0].mxu0
        %6110 = vdwg.mxu0
        %6111 = vmatprep.subr.bf16.mxu0 0
        %6112 = vmatpush1.bf16.msra.mxu0 %v5542
        %6113 = vmatprep.subr.bf16.mxu0 0
        %6114 = vmatpush1.bf16.msra.mxu0 %v5543
        %6115 = vmatprep.subr.bf16.mxu0 0
        %6116 = vmatpush1.bf16.msra.mxu0 %v5544
        %6117 = vmatprep.subr.bf16.mxu0 0
        %6118 = vmatpush1.bf16.msra.mxu0 %v5545
        %6119 = vmatprep.subr.bf16.mxu0 0
        %6120 = vmatpush1.bf16.msra.mxu0 %v5546
        %6121 = vmatprep.subr.bf16.mxu0 0
        %6122 = vmatpush1.bf16.msra.mxu0 %v5547
        %6123 = vmatprep.subr.bf16.mxu0 0
        %6124 = vmatpush1.bf16.msra.mxu0 %v5548
        %6125 = vmatprep.subr.bf16.mxu0 0
        %6126 = vmatpush1.bf16.msra.mxu0 %v5549
        %6127 = vmatprep.subr.bf16.mxu0 0
        %6128 = vmatpush1.bf16.msra.mxu0 %v5550
        %6129 = vmatprep.subr.bf16.mxu0 0
        %6130 = vmatpush1.bf16.msra.mxu0 %v5551
        %6131 = vmatprep.subr.bf16.mxu0 0
        %6132 = vmatpush1.bf16.msra.mxu0 %v5552
        %6133 = vmatprep.subr.bf16.mxu0 0
        %6134 = vmatpush1.bf16.msra.mxu0 %v5553
        %6135 = vmatprep.subr.bf16.mxu0 0
        %6136 = vmatpush1.bf16.msra.mxu0 %v5554
        %6137 = vmatprep.subr.bf16.mxu0 0
        %6138 = vmatpush1.bf16.msra.mxu0 %v5555
        %6139 = vmatprep.subr.bf16.mxu0 0
        %6140 = vmatpush1.bf16.msra.mxu0 %v5556
        %6141 = vmatprep.subr.bf16.mxu0 0
        %6142 = vmatpush1.bf16.msra.mxu0 %v5557
        %6143 = vmatprep.mubr.bf16.mxu0 %v5329
        %6144 = vmatmul.mubr.bf16.gmra.mrb[0].mxu0 %v5328
        %v6145 = vpop.f32.mrb[0].mxu0
        %v6146 = vadd.f32 %v6106, %v6145
        %v6147 = vpop.f32.mrb[0].mxu0
        %v6148 = vpop.f32.mrb[0].mxu0
        %v6149 = vpop.f32.mrb[0].mxu0
        %6150 = vdwg.mxu0
        %6151 = vmatprep.subr.bf16.mxu0 0
        %6152 = vmatpush1.bf16.msra.mxu0 %v5558
        %6153 = vmatprep.subr.bf16.mxu0 0
        %6154 = vmatpush1.bf16.msra.mxu0 %v5559
        %6155 = vmatprep.subr.bf16.mxu0 0
        %6156 = vmatpush1.bf16.msra.mxu0 %v5560
        %6157 = vmatprep.subr.bf16.mxu0 0
        %6158 = vmatpush1.bf16.msra.mxu0 %v5561
        %6159 = vmatprep.subr.bf16.mxu0 0
        %6160 = vmatpush1.bf16.msra.mxu0 %v5562
        %6161 = vmatprep.subr.bf16.mxu0 0
        %6162 = vmatpush1.bf16.msra.mxu0 %v5563
        %6163 = vmatprep.subr.bf16.mxu0 0
        %6164 = vmatpush1.bf16.msra.mxu0 %v5564
        %6165 = vmatprep.subr.bf16.mxu0 0
        %6166 = vmatpush1.bf16.msra.mxu0 %v5565
        %6167 = vmatprep.subr.bf16.mxu0 0
        %6168 = vmatpush1.bf16.msra.mxu0 %v5566
        %6169 = vmatprep.subr.bf16.mxu0 0
        %6170 = vmatpush1.bf16.msra.mxu0 %v5567
        %6171 = vmatprep.subr.bf16.mxu0 0
        %6172 = vmatpush1.bf16.msra.mxu0 %v5568
        %6173 = vmatprep.subr.bf16.mxu0 0
        %6174 = vmatpush1.bf16.msra.mxu0 %v5569
        %6175 = vmatprep.subr.bf16.mxu0 0
        %6176 = vmatpush1.bf16.msra.mxu0 %v5570
        %6177 = vmatprep.subr.bf16.mxu0 0
        %6178 = vmatpush1.bf16.msra.mxu0 %v5571
        %6179 = vmatprep.subr.bf16.mxu0 0
        %6180 = vmatpush1.bf16.msra.mxu0 %v5572
        %6181 = vmatprep.subr.bf16.mxu0 0
        %6182 = vmatpush1.bf16.msra.mxu0 %v5573
        %6183 = vmatprep.mubr.bf16.mxu0 %v5331
        %6184 = vmatmul.mubr.bf16.gmra.mrb[0].mxu0 %v5330
        %v6185 = vpop.f32.mrb[0].mxu0
        %v6186 = vadd.f32 %v6146, %v6185
        %v6187 = vpop.f32.mrb[0].mxu0
        %v6188 = vpop.f32.mrb[0].mxu0
        %v6189 = vpop.f32.mrb[0].mxu0
        %6190 = vdwg.mxu0
        %6191 = vmatprep.subr.bf16.mxu0 0
        %6192 = vmatpush1.bf16.msra.mxu0 %v5574
        %6193 = vmatprep.subr.bf16.mxu0 0
        %6194 = vmatpush1.bf16.msra.mxu0 %v5575
        %6195 = vmatprep.subr.bf16.mxu0 0
        %6196 = vmatpush1.bf16.msra.mxu0 %v5576
        %6197 = vmatprep.subr.bf16.mxu0 0
        %6198 = vmatpush1.bf16.msra.mxu0 %v5577
        %6199 = vmatprep.subr.bf16.mxu0 0
        %6200 = vmatpush1.bf16.msra.mxu0 %v5578
        %6201 = vmatprep.subr.bf16.mxu0 0
        %6202 = vmatpush1.bf16.msra.mxu0 %v5579
        %6203 = vmatprep.subr.bf16.mxu0 0
        %6204 = vmatpush1.bf16.msra.mxu0 %v5580
        %6205 = vmatprep.subr.bf16.mxu0 0
        %6206 = vmatpush1.bf16.msra.mxu0 %v5581
        %6207 = vmatprep.subr.bf16.mxu0 0
        %6208 = vmatpush1.bf16.msra.mxu0 %v5582
        %6209 = vmatprep.subr.bf16.mxu0 0
        %6210 = vmatpush1.bf16.msra.mxu0 %v5583
        %6211 = vmatprep.subr.bf16.mxu0 0
        %6212 = vmatpush1.bf16.msra.mxu0 %v5584
        %6213 = vmatprep.subr.bf16.mxu0 0
        %6214 = vmatpush1.bf16.msra.mxu0 %v5585
        %6215 = vmatprep.subr.bf16.mxu0 0
        %6216 = vmatpush1.bf16.msra.mxu0 %v5586
        %6217 = vmatprep.subr.bf16.mxu0 0
        %6218 = vmatpush1.bf16.msra.mxu0 %v5587
        %6219 = vmatprep.subr.bf16.mxu0 0
        %6220 = vmatpush1.bf16.msra.mxu0 %v5588
        %6221 = vmatprep.subr.bf16.mxu0 0
        %6222 = vmatpush1.bf16.msra.mxu0 %v5589
        %6223 = vmatprep.mubr.bf16.mxu0 %v5333
        %6224 = vmatmul.mubr.bf16.gmra.mrb[0].mxu0 %v5332
        %v6225 = vpop.f32.mrb[0].mxu0
        %v6226 = vadd.f32 %v6186, %v6225
        %v6227 = vpop.f32.mrb[0].mxu0
        %v6228 = vpop.f32.mrb[0].mxu0
        %v6229 = vpop.f32.mrb[0].mxu0
        %6230 = vdwg.mxu0
        %v6231 = vmax.f32 %v6226, 0.0
        %v6232 = vld [vmem:[%s8] sm:$0xff]
        %v6233 = vld [vmem:[%s8 + $0x8] sm:$0xff]
        %v6234 = vld [vmem:[%s8 + $0x10] sm:$0xff]
        %v6235 = vld [vmem:[%s8 + $0x18] sm:$0xff]
        %v6236 = vld [vmem:[%s9] sm:$0x1]
        %v6238 = vsel %vm1811, %v6231, 0
        %6240 = vmatprep.subr.mxu0 0.0
        %6241 = vmatpush1.msra.mxu0 %v6232
        %6242 = vmatprep.subr.mxu0 0.0
        %6243 = vmatpush1.msra.mxu0 %v6233
        %6244 = vmatprep.subr.mxu0 0.0
        %6245 = vmatpush1.msra.mxu0 %v6234
        %6246 = vmatprep.subr.mxu0 0.0
        %6247 = vmatpush1.msra.mxu0 %v6235
        %6248 = vmatprep.subr.mxu0 0.0
        %6249 = vmatpush1.msra.mxu0 0.0
        %6250 = vmatprep.subr.mxu0 0.0
        %6251 = vmatpush1.msra.mxu0 0.0
        %6252 = vmatprep.subr.mxu0 0.0
        %6253 = vmatpush1.msra.mxu0 0.0
        %6254 = vmatprep.subr.mxu0 0.0
        %6255 = vmatpush1.msra.mxu0 0.0
        %6256 = vmatprep.subr.mxu0 0.0
        %6257 = vmatpush1.msra.mxu0 0.0
        %6258 = vmatprep.subr.mxu0 0.0
        %6259 = vmatpush1.msra.mxu0 0.0
        %6260 = vmatprep.subr.mxu0 0.0
        %6261 = vmatpush1.msra.mxu0 0.0
        %6262 = vmatprep.subr.mxu0 0.0
        %6263 = vmatpush1.msra.mxu0 0.0
        %6264 = vmatprep.subr.mxu0 0.0
        %6265 = vmatpush1.msra.mxu0 0.0
        %6266 = vmatprep.subr.mxu0 0.0
        %6267 = vmatpush1.msra.mxu0 0.0
        %6268 = vmatprep.subr.mxu0 0.0
        %6269 = vmatpush1.msra.mxu0 0.0
        %6270 = vmatprep.subr.mxu0 0.0
        %6271 = vmatpush1.msra.mxu0 0.0
        %6272 = vmatprep.subr.mxu0 0.0
        %6273 = vmatpush1.msra.mxu0 0.0
        %6274 = vmatprep.subr.mxu0 0.0
        %6275 = vmatpush1.msra.mxu0 0.0
        %6276 = vmatprep.subr.mxu0 0.0
        %6277 = vmatpush1.msra.mxu0 0.0
        %6278 = vmatprep.subr.mxu0 0.0
        %6279 = vmatpush1.msra.mxu0 0.0
        %6280 = vmatprep.subr.mxu0 0.0
        %6281 = vmatpush1.msra.mxu0 0.0
        %6282 = vmatprep.subr.mxu0 0.0
        %6283 = vmatpush1.msra.mxu0 0.0
        %6284 = vmatprep.subr.mxu0 0.0
        %6285 = vmatpush1.msra.mxu0 0.0
        %6286 = vmatprep.subr.mxu0 0.0
        %6287 = vmatpush1.msra.mxu0 0.0
        %6288 = vmatprep.subr.mxu0 0.0
        %6289 = vmatpush1.msra.mxu0 0.0
        %6290 = vmatprep.subr.mxu0 0.0
        %6291 = vmatpush1.msra.mxu0 0.0
        %6292 = vmatprep.subr.mxu0 0.0
        %6293 = vmatpush1.msra.mxu0 0.0
        %6294 = vmatprep.subr.mxu0 0.0
        %6295 = vmatpush1.msra.mxu0 0.0
        %6296 = vmatprep.subr.mxu0 0.0
        %6297 = vmatpush1.msra.mxu0 0.0
        %6298 = vmatprep.subr.mxu0 0.0
        %6299 = vmatpush1.msra.mxu0 0.0
        %6300 = vmatprep.subr.mxu0 0.0
        %6301 = vmatpush1.msra.mxu0 0.0
        %6302 = vmatprep.subr.mxu0 0.0
        %6303 = vmatpush1.msra.mxu0 0.0
        %6304 = vmatprep.mubr.f32.mxu0 0.0
        %6305 = vmatmul.mubr.f32.gmra.mrb[0].mxu0 %v6238
        %v6306 = vpop.f32.mrb[0].mxu0
        %v6307 = vadd.f32 %v6236, %v6306
        %v6308 = vpop.f32.mrb[0].mxu0
        %6309 = vdwg.mxu0
        %v6310 = vmax.f32 %v6307, 0.0
        %vm6311 = vcmask 73728
        %6312 = vst.msk [vmem:[%s325] sm:$0x1] %vm6311, %v6310
        %s6313 = sand.u32 %s226, 1
        %s6314 = scalar_lea.sflag [#allocation5], %s6313
        %s6315 = sand.u32 %s226, 1
        %s6316 = scalar_lea.vmem [#allocation4], %s6315
        // Predicated region
        $region91: #{convnet_forward.1} parent=55 // pred_check
          %p6317 = pneg %p236
        $region92: #{convnet_forward.1} parent=55 // pred_check_branch
          %6319 = sbr.rel (%p6317) target = $region94
        $region93: #{convnet_forward.1} parent=55 // pred_region
          %s6321 = ssub.s32 16, 16
          %6322 = vsyncadd %s6314, %s6321
          %s6323 = smul.addr %s24, 16
          %s6324 = scalar_lea.hbm %s10, %s6323
          %s6326 = sshll.u32 %s6316, 4
          %s6327 = int_to_ptr.vmem [resolvable:$true] %s6326
          %6329 = dma.vmem_to_hbm [thread:$0]  %s6327, 16, %s6324, %s6314
        $region94: #{convnet_forward.1} parent=55 // pred_fallthru
          _
      $region56: #{convnet_forward.1} parent=5 // pred_fallthru
        _
      %p6330 = scmp.le.s32.totalorder 2, %s19
      // Predicated region
      $region95: #{convnet_forward.1} parent=5 // pred_check
        %p6331 = pneg %p6330
      $region96: #{convnet_forward.1} parent=5 // pred_check_branch
        %6333 = sbr.rel (%p6331) target = $region98
      $region97: #{convnet_forward.1} parent=5 // pred_region
        %s6334 = ssub.s32 %s19, 2
        // Predicated region
        $region99: #{convnet_forward.1} parent=97 // pred_check
          %p6335 = pneg %p242
        $region100: #{convnet_forward.1} parent=97 // pred_check_branch
          %6337 = sbr.rel (%p6335) target = $region102
        $region101: #{convnet_forward.1} parent=97 // pred_region
          %s6338 = sand.u32 %s227, 1
          %s6339 = scalar_lea.sflag [#allocation5], %s6338
          %s6340 = sand.u32 %s227, 1
          %s6341 = scalar_lea.vmem [#allocation4], %s6340
          %6342 = dma.done %s6339, 16
        $region102: #{convnet_forward.1} parent=97 // pred_fallthru
          _
      $region98: #{convnet_forward.1} parent=5 // pred_fallthru
        _
    $region6: #{convnet_forward.1} parent=1 // loop_footer
      %s23 = sadd.s32 1, %s19
    $region7: #{convnet_forward.1} parent=1 // loop_footer_branch
      %18 = sbr.rel target = $region3
    $region8: #{convnet_forward.1} parent=1 // loop_exit
      _
    %6343 = vsyncpa [#allocation5], 1
    %s6344 = scalar_lea.sflag [#allocation5], 1
    %6345 = vsyncpa %s6344, 1
  %6346 = vsyncmov [#allocation3]
  %s6347 = vpop.sfrf %6346
  %p6348 = scmp.eq.s32.totalorder %s6347, 0
  %p6349 = pneg %p6348
  %6351 = shalt.err (%p6349)

</llo_original>
